<compile_context>
chip_gen: v5e
topology: v5e:2x2
jax: 0.10.0
libtpu: 0.0.40
codegen_flags: <defaults>
</compile_context>

<pallas_src>
import math

import jax
import jax.numpy as jnp
from jax import lax
from jax.experimental import pallas as pl
from jax.experimental.pallas import tpu as pltpu  # noqa: F401

# ---------------------------------------------------------------------------
# Hyper-parameters (small, TPU-friendly)
# ---------------------------------------------------------------------------
NUM_CHANNELS = 4            # C
HIDDEN_SIZE = 32            # H
NUM_HEADS = 2               # per-channel heads
BATCH = 2                   # B
STEPS = 8                   # S

D_MODEL = NUM_CHANNELS * HIDDEN_SIZE        # 128 (= one full lane width)
TOTAL_HEADS = NUM_HEADS * NUM_CHANNELS      # 8
HEAD_DIM = D_MODEL // TOTAL_HEADS           # 16
T_Q = NUM_CHANNELS * STEPS                  # 32 query tokens per batch
T_K = STEPS                                 # 8 memory tokens per batch
N_Q = BATCH * T_Q                           # 64 query rows total
N_K = BATCH * T_K                           # 16 memory rows total
LN_EPS = 1e-5
SCALE = 1.0 / math.sqrt(HEAD_DIM)

# Column layout of the single fused (128, 1536) weight operand.
_W_BLOCKS = (('sa_qkv', 3 * D_MODEL), ('sa_wo', D_MODEL), ('ca_wq', D_MODEL),
             ('ca_wkv', 2 * D_MODEL), ('ca_wo', D_MODEL), ('ff1', D_MODEL),
             ('ff2', D_MODEL), ('mavg', D_MODEL), ('seg16', D_MODEL))
W_COL = {}
_off = 0
for _name, _w in _W_BLOCKS:
    W_COL[_name] = (_off, _off + _w)
    _off += _w
W_TOTAL_COLS = _off                         # 1536

# Row layout of the single fused (20, 128) bias / LayerNorm-parameter operand.
_P_ROWS = ('sa_bq', 'sa_bk', 'sa_bv', 'sa_bo',
           'ca_bq', 'ca_bk', 'ca_bv', 'ca_bo',
           'ff_b1', 'ff_b2',
           'ln1_g', 'ln1_b', 'ln2_g', 'ln2_b', 'ln3_g', 'ln3_b',
           'pool_g', 'pool_b', 'add_g', 'add_b')
P_ROW = {n: i for i, n in enumerate(_P_ROWS)}


# ---------------------------------------------------------------------------
# In-kernel helpers
# ---------------------------------------------------------------------------
def _recip(x):
    # EUP approximate reciprocal + one Newton step -> ~f32 accuracy, divide off the VPU.
    r = pl.reciprocal(x, approx=True)
    return r * (2.0 - x * r)


def _layernorm(v, g, b):
    mu = jnp.mean(v, axis=-1, keepdims=True)
    xc = v - mu
    var = jnp.mean(xc * xc, axis=-1, keepdims=True)
    return xc * lax.rsqrt(var + LN_EPS) * g + b


def _group_layernorm(v, m_avg, g, b):
    """LayerNorm over each HIDDEN_SIZE-wide lane group of a (rows, D_MODEL) slab.

    Mean and mean-of-squares come out of ONE block-diagonal averaging matmul by stacking
    [v ; v*v] along rows (var = E[x^2] - mu^2); the slab stays lane-dense throughout."""
    r = v.shape[0]
    mm = jnp.dot(jnp.concatenate([v, v * v], axis=0), m_avg,
                 preferred_element_type=jnp.float32)
    mu = mm[0:r]
    var = mm[r:2 * r] - mu * mu
    return (v - mu) * lax.rsqrt(var + LN_EPS) * g + b


# ---------------------------------------------------------------------------
# Fused kernel: decoder layer + channel pooling + pool-LN + AddNorm
# ---------------------------------------------------------------------------
def _fused_kernel(q_ref, kv_ref, expand_ref, wm_ref, pv_ref, out_ref):
    f32 = jnp.float32

    def W(name):
        lo, hi = W_COL[name]
        return wm_ref[:, lo:hi]                       # 128-lane-aligned static slices

    def P(name):
        i = P_ROW[name]
        return pv_ref[i:i + 1, :]                     # (1, 128) broadcast rows

    # Per-head lane masks (head h owns lanes [h*16, (h+1)*16)), built from an iota.
    lane = lax.broadcasted_iota(jnp.int32, (1, D_MODEL), 1)
    hmask = [jnp.where((lane >= h * HEAD_DIM) & (lane < (h + 1) * HEAD_DIM), 1.0, 0.0)
             for h in range(TOTAL_HEADS)]

    # repeat_interleave(q, C, dim=-1) folded into a (H, D) 0/1 expansion matmul.
    tgt = jnp.dot(q_ref[...], expand_ref[...], preferred_element_type=f32)    # (N_Q, D)
    mem = kv_ref[...]                                                         # (N_K, D)

    # ---------------- self-attention: heads packed along rows ----------------
    qkv = jnp.dot(tgt, W('sa_qkv'), preferred_element_type=f32)               # (N_Q, 3D)
    q = qkv[:, 0:D_MODEL] + P('sa_bq')            # 1/sqrt(dk) folded into Wq/bq at prep
    k = qkv[:, D_MODEL:2 * D_MODEL] + P('sa_bk')
    v = qkv[:, 2 * D_MODEL:3 * D_MODEL] + P('sa_bv')
    q_stack = jnp.concatenate([q * hmask[h] for h in range(TOTAL_HEADS)],
                              axis=0)                                          # (8*N_Q, D)
    s = lax.dot_general(q_stack, k, (((1,), (1,)), ((), ())),
                        preferred_element_type=f32)                            # (8*N_Q, N_Q)
    s = s - jnp.max(s, axis=-1, keepdims=True)
    p = jnp.exp(s)
    rq = lax.broadcasted_iota(jnp.int32, (TOTAL_HEADS * N_Q, N_Q), 0)
    ck = lax.broadcasted_iota(jnp.int32, (TOTAL_HEADS * N_Q, N_Q), 1)
    p = jnp.where(((rq >> 5) & 1) == (ck >> 5), p, 0.0)    # same-batch keys only
    p = p * _recip(jnp.sum(p, axis=-1, keepdims=True))
    av = jnp.dot(p, v, preferred_element_type=f32)                             # (8*N_Q, D)
    ctx = av[0:N_Q] * hmask[0]                             # collapse heads back into lanes
    for h in range(1, TOTAL_HEADS):
        ctx = ctx + av[h * N_Q:(h + 1) * N_Q] * hmask[h]
    sa = jnp.dot(ctx, W('sa_wo'), preferred_element_type=f32) + P('sa_bo')
    t = _layernorm(tgt + sa, P('ln1_g'), P('ln1_b'))

    # ------------- cross-attention: heads packed along key lanes -------------
    qx = jnp.dot(t, W('ca_wq'), preferred_element_type=f32) + P('ca_bq')       # (N_Q, D)
    kvx = jnp.dot(mem, W('ca_wkv'), preferred_element_type=f32)                # (N_K, 2D)
    kx = kvx[:, 0:D_MODEL] + P('ca_bk')
    vx = kvx[:, D_MODEL:2 * D_MODEL] + P('ca_bv')
    ks = jnp.concatenate([kx * hmask[h] for h in range(TOTAL_HEADS)], axis=0)  # (128, D)
    vs = jnp.concatenate([vx * hmask[h] for h in range(TOTAL_HEADS)], axis=0)  # (128, D)
    sx = lax.dot_general(qx, ks, (((1,), (1,)), ((), ())),
                         preferred_element_type=f32)             # (N_Q, 128), col = h*16 + key
    sx = sx - jnp.max(sx, axis=-1, keepdims=True)   # per-row constant shift, cancels per head
    px = jnp.exp(sx)
    rqx = lax.broadcasted_iota(jnp.int32, (N_Q, TOTAL_HEADS * N_K), 0)
    ckx = lax.broadcasted_iota(jnp.int32, (N_Q, TOTAL_HEADS * N_K), 1)
    px = jnp.where((rqx >> 5) == ((ckx >> 3) & 1), px, 0.0)      # query batch == key batch
    denom = jnp.dot(px, W('seg16'), preferred_element_type=f32)  # per-head segmented sums
    px = px * _recip(denom)
    ctxx = jnp.dot(px, vs, preferred_element_type=f32)                          # (N_Q, D)
    ca = jnp.dot(ctxx, W('ca_wo'), preferred_element_type=f32) + P('ca_bo')
    t = _layernorm(t + ca, P('ln2_g'), P('ln2_b'))

    # --------------------------------- FFN -----------------------------------
    hdn = jnp.maximum(
        jnp.dot(t, W('ff1'), preferred_element_type=f32) + P('ff_b1'), 0.0)
    ff = jnp.dot(hdn, W('ff2'), preferred_element_type=f32) + P('ff_b2')
    t = _layernorm(t + ff, P('ln3_g'), P('ln3_b'))                              # (N_Q, D)

    # ------ epilogue: channel pooling (mean + max) + pool-LN + AddNorm --------
    m_avg = W('mavg')
    inv_c = 1.0 / NUM_CHANNELS
    blocks = []
    for b in range(BATCH):                             # static, 2 iterations
        base = b * T_Q
        acc = t[base:base + STEPS]                     # rows = b*T_Q + c*S + s (aligned views)
        mx = acc
        for c in range(1, NUM_CHANNELS):
            sl = t[base + c * STEPS:base + (c + 1) * STEPS]
            acc = acc + sl
            mx = jnp.maximum(mx, sl)
        blocks.append(acc * inv_c + mx)
    pooled = jnp.concatenate(blocks, axis=0)                                    # (N_K, D)
    y = _group_layernorm(pooled, m_avg, P('pool_g'), P('pool_b'))
    # x in (s, c*H+h) layout == kv rows; single full-width lane-dense (16, 128) store.
    out_ref[...] = _group_layernorm(mem + y, m_avg, P('add_g'), P('add_b'))


def _fused_pallas(q2d, kv2d, kp):
    # Whole problem in one invocation: no grid, 5 operands, everything resident in VMEM.
    return pl.pallas_call(
        _fused_kernel,
        out_shape=jax.ShapeDtypeStruct((N_K, D_MODEL), jnp.float32),
    )(q2d, kv2d, kp['expand'], kp['wmats'], kp['pvec'])


# ---------------------------------------------------------------------------
# Full module forward (thin glue: only the layout transposes live outside the kernel)
# ---------------------------------------------------------------------------
def channel_wise_transformer_layer(x, kp):
    C, B, S, H = x.shape
    q2d = jnp.transpose(x, (1, 0, 2, 3)).reshape(B * C * S, H)      # _raw2q rows
    kv2d = jnp.transpose(x, (1, 2, 0, 3)).reshape(B * S, C * H)     # _raw2kv rows (= x for AddNorm)
    out2d = _fused_pallas(q2d, kv2d, kp)                            # (B*S, C*H), lane-dense
    return jnp.transpose(out2d.reshape(B, S, C, H), (2, 0, 1, 3))   # (C, B, S, H)


# ---------------------------------------------------------------------------
# Deterministic parameter init (synthetic, not a checkpoint)
# ---------------------------------------------------------------------------
def init_params(key):
    D, H = D_MODEL, HIDDEN_SIZE
    ks = jax.random.split(key, 12)

    def w(k, shape, scale=0.05):
        return (scale * jax.random.normal(k, shape)).astype(jnp.float32)

    p = {
        'sa_in_w': w(ks[0], (3 * D, D)), 'sa_in_b': w(ks[1], (3 * D,)),
        'sa_out_w': w(ks[2], (D, D)), 'sa_out_b': w(ks[3], (D,)),
        'ca_in_w': w(ks[4], (3 * D, D)), 'ca_in_b': w(ks[5], (3 * D,)),
        'ca_out_w': w(ks[6], (D, D)), 'ca_out_b': w(ks[7], (D,)),
        'ff1_w': w(ks[8], (D, D)), 'ff1_b': w(ks[9], (D,)),
        'ff2_w': w(ks[10], (D, D)), 'ff2_b': w(ks[11], (D,)),
    }
    for name in ('ln1', 'ln2', 'ln3'):
        p[f'{name}_g'] = jnp.ones((D,), jnp.float32)
        p[f'{name}_b'] = jnp.zeros((D,), jnp.float32)
    for name in ('pool', 'add'):
        p[f'{name}_g'] = jnp.ones((H,), jnp.float32)
        p[f'{name}_b'] = jnp.zeros((H,), jnp.float32)
    return p


def prep_kernel_params(p):
    """Fold everything into 3 kernel operands:
       wmats  (128, 1536): all 128-row matrices (QKV fused, scale folded into Q) + the
                           constant group-average and per-head segmented-sum matrices.
       expand (32, 128)  : repeat_interleave(., C, dim=-1) as a 0/1 matmul.
       pvec   (20, 128)  : every bias / LayerNorm gamma / beta as one row."""
    D, H, C = D_MODEL, HIDDEN_SIZE, NUM_CHANNELS
    sa_w, sa_b = p['sa_in_w'], p['sa_in_b']
    ca_w, ca_b = p['ca_in_w'], p['ca_in_b']

    grp = jnp.arange(D) // H
    m_avg = (grp[:, None] == grp[None, :]).astype(jnp.float32) / H      # group-mean matmul
    seg = jnp.arange(D) // HEAD_DIM
    seg16 = (seg[:, None] == seg[None, :]).astype(jnp.float32)          # segmented-sum matmul
    expand = (jnp.arange(D)[None, :] // C ==
              jnp.arange(H)[:, None]).astype(jnp.float32)               # (H, D)

    wmats = jnp.concatenate([
        sa_w[0:D].T * SCALE, sa_w[D:2 * D].T, sa_w[2 * D:3 * D].T,      # fused self QKV
        p['sa_out_w'].T,
        ca_w[0:D].T * SCALE,                                            # cross Q (scaled)
        ca_w[D:2 * D].T, ca_w[2 * D:3 * D].T,                           # fused cross KV
        p['ca_out_w'].T,
        p['ff1_w'].T, p['ff2_w'].T,
        m_avg, seg16,
    ], axis=1).astype(jnp.float32)
    assert wmats.shape == (D, W_TOTAL_COLS), wmats.shape

    rows = [
        sa_b[0:D] * SCALE, sa_b[D:2 * D], sa_b[2 * D:3 * D], p['sa_out_b'],
        ca_b[0:D] * SCALE, ca_b[D:2 * D], ca_b[2 * D:3 * D], p['ca_out_b'],
        p['ff1_b'], p['ff2_b'],
        p['ln1_g'], p['ln1_b'], p['ln2_g'], p['ln2_b'], p['ln3_g'], p['ln3_b'],
        jnp.tile(p['pool_g'], C), jnp.tile(p['pool_b'], C),
        jnp.tile(p['add_g'], C), jnp.tile(p['add_b'], C),
    ]
    pvec = jnp.stack(rows, axis=0).astype(jnp.float32)
    assert pvec.shape == (len(_P_ROWS), D), pvec.shape
    return {'wmats': wmats, 'expand': expand, 'pvec': pvec}


# ---------------------------------------------------------------------------
# Pure-JAX reference (mirrors PyTorch eval-mode semantics) for validation
# ---------------------------------------------------------------------------
def ref_forward(x, p):
    C, B, S, H = x.shape
    D = C * H
    nh, hd = TOTAL_HEADS, HEAD_DIM

    def ln(v, g, b):
        mu = v.mean(-1, keepdims=True)
        var = ((v - mu) ** 2).mean(-1, keepdims=True)
        return (v - mu) / jnp.sqrt(var + LN_EPS) * g + b

    def mha(qx, kvx, in_w, in_b, ow, ob):
        wq, wk, wv = in_w[:D], in_w[D:2 * D], in_w[2 * D:]
        bq, bk, bv = in_b[:D], in_b[D:2 * D], in_b[2 * D:]
        qq = (qx @ wq.T + bq).reshape(B, -1, nh, hd)
        kk = (kvx @ wk.T + bk).reshape(B, -1, nh, hd)
        vv = (kvx @ wv.T + bv).reshape(B, -1, nh, hd)
        s = jnp.einsum('bqhd,bkhd->bhqk', qq, kk) / math.sqrt(hd)
        pr = jax.nn.softmax(s, axis=-1)
        av = jnp.einsum('bhqk,bkhd->bqhd', pr, vv).reshape(B, -1, D)
        return av @ ow.T + ob

    q = jnp.transpose(x, (1, 0, 2, 3)).reshape(B, C * S, H)
    kv = jnp.transpose(x, (1, 2, 0, 3)).reshape(B, S, D)
    t = jnp.repeat(q, C, axis=-1)
    t = ln(t + mha(t, t, p['sa_in_w'], p['sa_in_b'], p['sa_out_w'], p['sa_out_b']),
           p['ln1_g'], p['ln1_b'])
    t = ln(t + mha(t, kv, p['ca_in_w'], p['ca_in_b'], p['ca_out_w'], p['ca_out_b']),
           p['ln2_g'], p['ln2_b'])
    ff = jnp.maximum(t @ p['ff1_w'].T + p['ff1_b'], 0.0) @ p['ff2_w'].T + p['ff2_b']
    t = ln(t + ff, p['ln3_g'], p['ln3_b'])
    o5 = t.reshape(B, C, S, C, H)
    y = ln(o5.mean(1) + o5.max(1), p['pool_g'], p['pool_b'])      # (B,S,C,H)
    y = jnp.transpose(y, (2, 0, 1, 3))                            # (C,B,S,H)
    return ln(x + y, p['add_g'], p['add_b'])


# ---------------------------------------------------------------------------
if __name__ == "__main__":
    key = jax.random.PRNGKey(0)
    kx, kw = jax.random.split(key)
    x = jax.random.normal(kx, (NUM_CHANNELS, BATCH, STEPS, HIDDEN_SIZE), jnp.float32)

    params = init_params(kw)
    kparams = prep_kernel_params(params)

    fwd = jax.jit(channel_wise_transformer_layer)
    out = jax.block_until_ready(fwd(x, kparams))
    assert out.shape == x.shape, out.shape

    with jax.default_matmul_precision("highest"):
        ref = jax.block_until_ready(ref_forward(x, params))
    err = float(jnp.max(jnp.abs(out - ref)))
    # Kernel is f32 end-to-end (f32 MXU passes, Newton-refined EUP reciprocal); observed
    # error is ~1e-5.  1e-3 keeps headroom while still catching e.g. an accidental bf16 cast.
    assert err < 1e-3, f"max abs err vs reference = {err}"

    print("KERNEL_OK")
</pallas_src>

<mosaic_0001>
module attributes {stable_mosaic.version = 11 : i64} {
  func.func @_fused_kernel(%arg0: memref<64x32xf32, #tpu.memory_space<vmem>>, %arg1: memref<16x128xf32, #tpu.memory_space<vmem>>, %arg2: memref<32x128xf32, #tpu.memory_space<vmem>>, %arg3: memref<128x1536xf32, #tpu.memory_space<vmem>>, %arg4: memref<20x128xf32, #tpu.memory_space<vmem>>, %arg5: memref<16x128xf32, #tpu.memory_space<vmem>>) attributes {dimension_semantics = [], scalar_prefetch = 0 : i64, scratch_operands = 0 : i64, tpu.core_type = #tpu.core_type<tc>} {
    %0 = tpu.iota {dimensions = array<i32: 1>} : vector<1x128xi32>
    %c0_i32 = arith.constant 0 : i32
    %1 = vector.broadcast %c0_i32 : i32 to vector<1x128xi32>
    %2 = arith.cmpi sge, %0, %1 : vector<1x128xi32>
    %c16_i32 = arith.constant 16 : i32
    %3 = vector.broadcast %c16_i32 : i32 to vector<1x128xi32>
    %4 = arith.cmpi slt, %0, %3 : vector<1x128xi32>
    %5 = arith.andi %2, %4 : vector<1x128xi1>
    %cst = arith.constant 1.000000e+00 : f32
    %cst_0 = arith.constant 0.000000e+00 : f32
    %6 = vector.broadcast %cst : f32 to vector<1x128xf32>
    %7 = vector.broadcast %cst_0 : f32 to vector<1x128xf32>
    %8 = arith.select %5, %6, %7 : vector<1x128xi1>, vector<1x128xf32>
    %c16_i32_1 = arith.constant 16 : i32
    %9 = vector.broadcast %c16_i32_1 : i32 to vector<1x128xi32>
    %10 = arith.cmpi sge, %0, %9 : vector<1x128xi32>
    %c32_i32 = arith.constant 32 : i32
    %11 = vector.broadcast %c32_i32 : i32 to vector<1x128xi32>
    %12 = arith.cmpi slt, %0, %11 : vector<1x128xi32>
    %13 = arith.andi %10, %12 : vector<1x128xi1>
    %cst_2 = arith.constant 1.000000e+00 : f32
    %cst_3 = arith.constant 0.000000e+00 : f32
    %14 = vector.broadcast %cst_2 : f32 to vector<1x128xf32>
    %15 = vector.broadcast %cst_3 : f32 to vector<1x128xf32>
    %16 = arith.select %13, %14, %15 : vector<1x128xi1>, vector<1x128xf32>
    %c32_i32_4 = arith.constant 32 : i32
    %17 = vector.broadcast %c32_i32_4 : i32 to vector<1x128xi32>
    %18 = arith.cmpi sge, %0, %17 : vector<1x128xi32>
    %c48_i32 = arith.constant 48 : i32
    %19 = vector.broadcast %c48_i32 : i32 to vector<1x128xi32>
    %20 = arith.cmpi slt, %0, %19 : vector<1x128xi32>
    %21 = arith.andi %18, %20 : vector<1x128xi1>
    %cst_5 = arith.constant 1.000000e+00 : f32
    %cst_6 = arith.constant 0.000000e+00 : f32
    %22 = vector.broadcast %cst_5 : f32 to vector<1x128xf32>
    %23 = vector.broadcast %cst_6 : f32 to vector<1x128xf32>
    %24 = arith.select %21, %22, %23 : vector<1x128xi1>, vector<1x128xf32>
    %c48_i32_7 = arith.constant 48 : i32
    %25 = vector.broadcast %c48_i32_7 : i32 to vector<1x128xi32>
    %26 = arith.cmpi sge, %0, %25 : vector<1x128xi32>
    %c64_i32 = arith.constant 64 : i32
    %27 = vector.broadcast %c64_i32 : i32 to vector<1x128xi32>
    %28 = arith.cmpi slt, %0, %27 : vector<1x128xi32>
    %29 = arith.andi %26, %28 : vector<1x128xi1>
    %cst_8 = arith.constant 1.000000e+00 : f32
    %cst_9 = arith.constant 0.000000e+00 : f32
    %30 = vector.broadcast %cst_8 : f32 to vector<1x128xf32>
    %31 = vector.broadcast %cst_9 : f32 to vector<1x128xf32>
    %32 = arith.select %29, %30, %31 : vector<1x128xi1>, vector<1x128xf32>
    %c64_i32_10 = arith.constant 64 : i32
    %33 = vector.broadcast %c64_i32_10 : i32 to vector<1x128xi32>
    %34 = arith.cmpi sge, %0, %33 : vector<1x128xi32>
    %c80_i32 = arith.constant 80 : i32
    %35 = vector.broadcast %c80_i32 : i32 to vector<1x128xi32>
    %36 = arith.cmpi slt, %0, %35 : vector<1x128xi32>
    %37 = arith.andi %34, %36 : vector<1x128xi1>
    %cst_11 = arith.constant 1.000000e+00 : f32
    %cst_12 = arith.constant 0.000000e+00 : f32
    %38 = vector.broadcast %cst_11 : f32 to vector<1x128xf32>
    %39 = vector.broadcast %cst_12 : f32 to vector<1x128xf32>
    %40 = arith.select %37, %38, %39 : vector<1x128xi1>, vector<1x128xf32>
    %c80_i32_13 = arith.constant 80 : i32
    %41 = vector.broadcast %c80_i32_13 : i32 to vector<1x128xi32>
    %42 = arith.cmpi sge, %0, %41 : vector<1x128xi32>
    %c96_i32 = arith.constant 96 : i32
    %43 = vector.broadcast %c96_i32 : i32 to vector<1x128xi32>
    %44 = arith.cmpi slt, %0, %43 : vector<1x128xi32>
    %45 = arith.andi %42, %44 : vector<1x128xi1>
    %cst_14 = arith.constant 1.000000e+00 : f32
    %cst_15 = arith.constant 0.000000e+00 : f32
    %46 = vector.broadcast %cst_14 : f32 to vector<1x128xf32>
    %47 = vector.broadcast %cst_15 : f32 to vector<1x128xf32>
    %48 = arith.select %45, %46, %47 : vector<1x128xi1>, vector<1x128xf32>
    %c96_i32_16 = arith.constant 96 : i32
    %49 = vector.broadcast %c96_i32_16 : i32 to vector<1x128xi32>
    %50 = arith.cmpi sge, %0, %49 : vector<1x128xi32>
    %c112_i32 = arith.constant 112 : i32
    %51 = vector.broadcast %c112_i32 : i32 to vector<1x128xi32>
    %52 = arith.cmpi slt, %0, %51 : vector<1x128xi32>
    %53 = arith.andi %50, %52 : vector<1x128xi1>
    %cst_17 = arith.constant 1.000000e+00 : f32
    %cst_18 = arith.constant 0.000000e+00 : f32
    %54 = vector.broadcast %cst_17 : f32 to vector<1x128xf32>
    %55 = vector.broadcast %cst_18 : f32 to vector<1x128xf32>
    %56 = arith.select %53, %54, %55 : vector<1x128xi1>, vector<1x128xf32>
    %c112_i32_19 = arith.constant 112 : i32
    %57 = vector.broadcast %c112_i32_19 : i32 to vector<1x128xi32>
    %58 = arith.cmpi sge, %0, %57 : vector<1x128xi32>
    %c128_i32 = arith.constant 128 : i32
    %59 = vector.broadcast %c128_i32 : i32 to vector<1x128xi32>
    %60 = arith.cmpi slt, %0, %59 : vector<1x128xi32>
    %61 = arith.andi %58, %60 : vector<1x128xi1>
    %cst_20 = arith.constant 1.000000e+00 : f32
    %cst_21 = arith.constant 0.000000e+00 : f32
    %62 = vector.broadcast %cst_20 : f32 to vector<1x128xf32>
    %63 = vector.broadcast %cst_21 : f32 to vector<1x128xf32>
    %64 = arith.select %61, %62, %63 : vector<1x128xi1>, vector<1x128xf32>
    %c0 = arith.constant 0 : index
    %c0_22 = arith.constant 0 : index
    %65 = vector.load %arg0[%c0, %c0_22] : memref<64x32xf32, #tpu.memory_space<vmem>>, vector<64x32xf32>
    %c0_23 = arith.constant 0 : index
    %c0_24 = arith.constant 0 : index
    %66 = vector.load %arg2[%c0_23, %c0_24] : memref<32x128xf32, #tpu.memory_space<vmem>>, vector<32x128xf32>
    %cst_25 = arith.constant dense<0.000000e+00> : vector<64x128xf32>
    %67 = tpu.matmul %65, %66, %cst_25 {dimension_numbers = #tpu.dot_dimension_numbers<[1], [0], [0], [1], [0, 0, 1, 1], [], []>} : vector<64x32xf32>, vector<32x128xf32>, vector<64x128xf32> -> vector<64x128xf32>
    %c0_26 = arith.constant 0 : index
    %c0_27 = arith.constant 0 : index
    %68 = vector.load %arg1[%c0_26, %c0_27] : memref<16x128xf32, #tpu.memory_space<vmem>>, vector<16x128xf32>
    %c0_28 = arith.constant 0 : index
    %c0_29 = arith.constant 0 : index
    %69 = vector.load %arg3[%c0_28, %c0_29] : memref<128x1536xf32, #tpu.memory_space<vmem>>, vector<128x384xf32>
    %cst_30 = arith.constant dense<0.000000e+00> : vector<64x384xf32>
    %70 = tpu.matmul %67, %69, %cst_30 {dimension_numbers = #tpu.dot_dimension_numbers<[1], [0], [0], [1], [0, 0, 1, 1], [], []>} : vector<64x128xf32>, vector<128x384xf32>, vector<64x384xf32> -> vector<64x384xf32>
    %71 = vector.extract_strided_slice %70 {offsets = [0, 0], sizes = [64, 128], strides = [1, 1]} : vector<64x384xf32> to vector<64x128xf32>
    %c0_31 = arith.constant 0 : index
    %c0_32 = arith.constant 0 : index
    %72 = vector.load %arg4[%c0_31, %c0_32] : memref<20x128xf32, #tpu.memory_space<vmem>>, vector<1x128xf32>
    %73 = vector.broadcast %72 : vector<1x128xf32> to vector<64x128xf32>
    %74 = arith.addf %71, %73 : vector<64x128xf32>
    %75 = vector.extract_strided_slice %70 {offsets = [0, 128], sizes = [64, 128], strides = [1, 1]} : vector<64x384xf32> to vector<64x128xf32>
    %c1 = arith.constant 1 : index
    %c0_33 = arith.constant 0 : index
    %76 = vector.load %arg4[%c1, %c0_33] : memref<20x128xf32, #tpu.memory_space<vmem>>, vector<1x128xf32>
    %77 = vector.broadcast %76 : vector<1x128xf32> to vector<64x128xf32>
    %78 = arith.addf %75, %77 : vector<64x128xf32>
    %79 = vector.extract_strided_slice %70 {offsets = [0, 256], sizes = [64, 128], strides = [1, 1]} : vector<64x384xf32> to vector<64x128xf32>
    %c2 = arith.constant 2 : index
    %c0_34 = arith.constant 0 : index
    %80 = vector.load %arg4[%c2, %c0_34] : memref<20x128xf32, #tpu.memory_space<vmem>>, vector<1x128xf32>
    %81 = vector.broadcast %80 : vector<1x128xf32> to vector<64x128xf32>
    %82 = arith.addf %79, %81 : vector<64x128xf32>
    %83 = vector.broadcast %8 : vector<1x128xf32> to vector<64x128xf32>
    %84 = arith.mulf %74, %83 : vector<64x128xf32>
    %85 = vector.broadcast %16 : vector<1x128xf32> to vector<64x128xf32>
    %86 = arith.mulf %74, %85 : vector<64x128xf32>
    %87 = vector.broadcast %24 : vector<1x128xf32> to vector<64x128xf32>
    %88 = arith.mulf %74, %87 : vector<64x128xf32>
    %89 = vector.broadcast %32 : vector<1x128xf32> to vector<64x128xf32>
    %90 = arith.mulf %74, %89 : vector<64x128xf32>
    %91 = vector.broadcast %40 : vector<1x128xf32> to vector<64x128xf32>
    %92 = arith.mulf %74, %91 : vector<64x128xf32>
    %93 = vector.broadcast %48 : vector<1x128xf32> to vector<64x128xf32>
    %94 = arith.mulf %74, %93 : vector<64x128xf32>
    %95 = vector.broadcast %56 : vector<1x128xf32> to vector<64x128xf32>
    %96 = arith.mulf %74, %95 : vector<64x128xf32>
    %97 = vector.broadcast %64 : vector<1x128xf32> to vector<64x128xf32>
    %98 = arith.mulf %74, %97 : vector<64x128xf32>
    %99 = tpu.concatenate %84, %86, %88, %90, %92, %94, %96, %98 in 0 : vector<64x128xf32>, vector<64x128xf32>, vector<64x128xf32>, vector<64x128xf32>, vector<64x128xf32>, vector<64x128xf32>, vector<64x128xf32>, vector<64x128xf32> -> vector<512x128xf32>
    %cst_35 = arith.constant dense<0.000000e+00> : vector<512x64xf32>
    %100 = tpu.matmul %99, %78, %cst_35 {dimension_numbers = #tpu.dot_dimension_numbers<[1], [1], [0], [0], [0, 0, 1, 0], [], []>} : vector<512x128xf32>, vector<64x128xf32>, vector<512x64xf32> -> vector<512x64xf32>
    %cst_36 = arith.constant dense<0xFF800000> : vector<512xf32>
    %101 = vector.multi_reduction <maximumf>, %100, %cst_36 [1] : vector<512x64xf32> to vector<512xf32>
    %102 = vector.shape_cast %101 : vector<512xf32> to vector<512x1xf32>
    %103 = vector.broadcast %102 : vector<512x1xf32> to vector<512x64xf32>
    %104 = arith.subf %100, %103 : vector<512x64xf32>
    %105 = math.exp %104 : vector<512x64xf32>
    %106 = tpu.iota {dimensions = array<i32: 0>} : vector<512x64xi32>
    %107 = tpu.iota {dimensions = array<i32: 1>} : vector<512x64xi32>
    %c5_i32 = arith.constant 5 : i32
    %108 = vector.broadcast %c5_i32 : i32 to vector<512x64xi32>
    %109 = arith.shrsi %106, %108 : vector<512x64xi32>
    %c1_i32 = arith.constant 1 : i32
    %110 = vector.broadcast %c1_i32 : i32 to vector<512x64xi32>
    %111 = arith.andi %109, %110 : vector<512x64xi32>
    %c5_i32_37 = arith.constant 5 : i32
    %112 = vector.broadcast %c5_i32_37 : i32 to vector<512x64xi32>
    %113 = arith.shrsi %107, %112 : vector<512x64xi32>
    %114 = arith.cmpi eq, %111, %113 : vector<512x64xi32>
    %cst_38 = arith.constant 0.000000e+00 : f32
    %115 = vector.broadcast %cst_38 : f32 to vector<512x64xf32>
    %116 = arith.select %114, %105, %115 : vector<512x64xi1>, vector<512x64xf32>
    %cst_39 = arith.constant dense<0.000000e+00> : vector<512xf32>
    %117 = vector.multi_reduction <add>, %116, %cst_39 [1] : vector<512x64xf32> to vector<512xf32>
    %118 = vector.shape_cast %117 : vector<512xf32> to vector<512x1xf32>
    %119 = tpu.reciprocal %118 {approx = true} : vector<512x1xf32> -> vector<512x1xf32>
    %120 = arith.mulf %118, %119 : vector<512x1xf32>
    %cst_40 = arith.constant 2.000000e+00 : f32
    %121 = vector.broadcast %cst_40 : f32 to vector<512x1xf32>
    %122 = arith.subf %121, %120 : vector<512x1xf32>
    %123 = arith.mulf %119, %122 : vector<512x1xf32>
    %124 = vector.broadcast %123 : vector<512x1xf32> to vector<512x64xf32>
    %125 = arith.mulf %116, %124 : vector<512x64xf32>
    %cst_41 = arith.constant dense<0.000000e+00> : vector<512x128xf32>
    %126 = tpu.matmul %125, %82, %cst_41 {dimension_numbers = #tpu.dot_dimension_numbers<[1], [0], [0], [1], [0, 0, 1, 1], [], []>} : vector<512x64xf32>, vector<64x128xf32>, vector<512x128xf32> -> vector<512x128xf32>
    %127 = vector.extract_strided_slice %126 {offsets = [0, 0], sizes = [64, 128], strides = [1, 1]} : vector<512x128xf32> to vector<64x128xf32>
    %128 = vector.broadcast %8 : vector<1x128xf32> to vector<64x128xf32>
    %129 = arith.mulf %127, %128 : vector<64x128xf32>
    %130 = vector.extract_strided_slice %126 {offsets = [64, 0], sizes = [64, 128], strides = [1, 1]} : vector<512x128xf32> to vector<64x128xf32>
    %131 = vector.broadcast %16 : vector<1x128xf32> to vector<64x128xf32>
    %132 = arith.mulf %130, %131 : vector<64x128xf32>
    %133 = arith.addf %129, %132 : vector<64x128xf32>
    %134 = vector.extract_strided_slice %126 {offsets = [128, 0], sizes = [64, 128], strides = [1, 1]} : vector<512x128xf32> to vector<64x128xf32>
    %135 = vector.broadcast %24 : vector<1x128xf32> to vector<64x128xf32>
    %136 = arith.mulf %134, %135 : vector<64x128xf32>
    %137 = arith.addf %133, %136 : vector<64x128xf32>
    %138 = vector.extract_strided_slice %126 {offsets = [192, 0], sizes = [64, 128], strides = [1, 1]} : vector<512x128xf32> to vector<64x128xf32>
    %139 = vector.broadcast %32 : vector<1x128xf32> to vector<64x128xf32>
    %140 = arith.mulf %138, %139 : vector<64x128xf32>
    %141 = arith.addf %137, %140 : vector<64x128xf32>
    %142 = vector.extract_strided_slice %126 {offsets = [256, 0], sizes = [64, 128], strides = [1, 1]} : vector<512x128xf32> to vector<64x128xf32>
    %143 = vector.broadcast %40 : vector<1x128xf32> to vector<64x128xf32>
    %144 = arith.mulf %142, %143 : vector<64x128xf32>
    %145 = arith.addf %141, %144 : vector<64x128xf32>
    %146 = vector.extract_strided_slice %126 {offsets = [320, 0], sizes = [64, 128], strides = [1, 1]} : vector<512x128xf32> to vector<64x128xf32>
    %147 = vector.broadcast %48 : vector<1x128xf32> to vector<64x128xf32>
    %148 = arith.mulf %146, %147 : vector<64x128xf32>
    %149 = arith.addf %145, %148 : vector<64x128xf32>
    %150 = vector.extract_strided_slice %126 {offsets = [384, 0], sizes = [64, 128], strides = [1, 1]} : vector<512x128xf32> to vector<64x128xf32>
    %151 = vector.broadcast %56 : vector<1x128xf32> to vector<64x128xf32>
    %152 = arith.mulf %150, %151 : vector<64x128xf32>
    %153 = arith.addf %149, %152 : vector<64x128xf32>
    %154 = vector.extract_strided_slice %126 {offsets = [448, 0], sizes = [64, 128], strides = [1, 1]} : vector<512x128xf32> to vector<64x128xf32>
    %155 = vector.broadcast %64 : vector<1x128xf32> to vector<64x128xf32>
    %156 = arith.mulf %154, %155 : vector<64x128xf32>
    %157 = arith.addf %153, %156 : vector<64x128xf32>
    %c0_42 = arith.constant 0 : index
    %c384 = arith.constant 384 : index
    %158 = vector.load %arg3[%c0_42, %c384] : memref<128x1536xf32, #tpu.memory_space<vmem>>, vector<128x128xf32>
    %cst_43 = arith.constant dense<0.000000e+00> : vector<64x128xf32>
    %159 = tpu.matmul %157, %158, %cst_43 {dimension_numbers = #tpu.dot_dimension_numbers<[1], [0], [0], [1], [0, 0, 1, 1], [], []>} : vector<64x128xf32>, vector<128x128xf32>, vector<64x128xf32> -> vector<64x128xf32>
    %c3 = arith.constant 3 : index
    %c0_44 = arith.constant 0 : index
    %160 = vector.load %arg4[%c3, %c0_44] : memref<20x128xf32, #tpu.memory_space<vmem>>, vector<1x128xf32>
    %161 = vector.broadcast %160 : vector<1x128xf32> to vector<64x128xf32>
    %162 = arith.addf %159, %161 : vector<64x128xf32>
    %163 = arith.addf %67, %162 : vector<64x128xf32>
    %c10 = arith.constant 10 : index
    %c0_45 = arith.constant 0 : index
    %164 = vector.load %arg4[%c10, %c0_45] : memref<20x128xf32, #tpu.memory_space<vmem>>, vector<1x128xf32>
    %c11 = arith.constant 11 : index
    %c0_46 = arith.constant 0 : index
    %165 = vector.load %arg4[%c11, %c0_46] : memref<20x128xf32, #tpu.memory_space<vmem>>, vector<1x128xf32>
    %cst_47 = arith.constant dense<0.000000e+00> : vector<64xf32>
    %166 = vector.multi_reduction <add>, %163, %cst_47 [1] : vector<64x128xf32> to vector<64xf32>
    %167 = vector.shape_cast %166 : vector<64xf32> to vector<64x1xf32>
    %cst_48 = arith.constant 1.280000e+02 : f32
    %168 = vector.broadcast %cst_48 : f32 to vector<64x1xf32>
    %169 = arith.divf %167, %168 : vector<64x1xf32>
    %170 = vector.broadcast %169 : vector<64x1xf32> to vector<64x128xf32>
    %171 = arith.subf %163, %170 : vector<64x128xf32>
    %172 = arith.mulf %171, %171 : vector<64x128xf32>
    %cst_49 = arith.constant dense<0.000000e+00> : vector<64xf32>
    %173 = vector.multi_reduction <add>, %172, %cst_49 [1] : vector<64x128xf32> to vector<64xf32>
    %174 = vector.shape_cast %173 : vector<64xf32> to vector<64x1xf32>
    %cst_50 = arith.constant 1.280000e+02 : f32
    %175 = vector.broadcast %cst_50 : f32 to vector<64x1xf32>
    %176 = arith.divf %174, %175 : vector<64x1xf32>
    %cst_51 = arith.constant 9.99999974E-6 : f32
    %177 = vector.broadcast %cst_51 : f32 to vector<64x1xf32>
    %178 = arith.addf %176, %177 : vector<64x1xf32>
    %179 = math.rsqrt %178 : vector<64x1xf32>
    %180 = vector.broadcast %179 : vector<64x1xf32> to vector<64x128xf32>
    %181 = arith.mulf %171, %180 : vector<64x128xf32>
    %182 = vector.broadcast %164 : vector<1x128xf32> to vector<64x128xf32>
    %183 = arith.mulf %181, %182 : vector<64x128xf32>
    %184 = vector.broadcast %165 : vector<1x128xf32> to vector<64x128xf32>
    %185 = arith.addf %183, %184 : vector<64x128xf32>
    %c0_52 = arith.constant 0 : index
    %c512 = arith.constant 512 : index
    %186 = vector.load %arg3[%c0_52, %c512] : memref<128x1536xf32, #tpu.memory_space<vmem>>, vector<128x128xf32>
    %cst_53 = arith.constant dense<0.000000e+00> : vector<64x128xf32>
    %187 = tpu.matmul %185, %186, %cst_53 {dimension_numbers = #tpu.dot_dimension_numbers<[1], [0], [0], [1], [0, 0, 1, 1], [], []>} : vector<64x128xf32>, vector<128x128xf32>, vector<64x128xf32> -> vector<64x128xf32>
    %c4 = arith.constant 4 : index
    %c0_54 = arith.constant 0 : index
    %188 = vector.load %arg4[%c4, %c0_54] : memref<20x128xf32, #tpu.memory_space<vmem>>, vector<1x128xf32>
    %189 = vector.broadcast %188 : vector<1x128xf32> to vector<64x128xf32>
    %190 = arith.addf %187, %189 : vector<64x128xf32>
    %c0_55 = arith.constant 0 : index
    %c640 = arith.constant 640 : index
    %191 = vector.load %arg3[%c0_55, %c640] : memref<128x1536xf32, #tpu.memory_space<vmem>>, vector<128x256xf32>
    %cst_56 = arith.constant dense<0.000000e+00> : vector<16x256xf32>
    %192 = tpu.matmul %68, %191, %cst_56 {dimension_numbers = #tpu.dot_dimension_numbers<[1], [0], [0], [1], [0, 0, 1, 1], [], []>} : vector<16x128xf32>, vector<128x256xf32>, vector<16x256xf32> -> vector<16x256xf32>
    %193 = vector.extract_strided_slice %192 {offsets = [0, 0], sizes = [16, 128], strides = [1, 1]} : vector<16x256xf32> to vector<16x128xf32>
    %c5 = arith.constant 5 : index
    %c0_57 = arith.constant 0 : index
    %194 = vector.load %arg4[%c5, %c0_57] : memref<20x128xf32, #tpu.memory_space<vmem>>, vector<1x128xf32>
    %195 = vector.broadcast %194 : vector<1x128xf32> to vector<16x128xf32>
    %196 = arith.addf %193, %195 : vector<16x128xf32>
    %197 = vector.extract_strided_slice %192 {offsets = [0, 128], sizes = [16, 128], strides = [1, 1]} : vector<16x256xf32> to vector<16x128xf32>
    %c6 = arith.constant 6 : index
    %c0_58 = arith.constant 0 : index
    %198 = vector.load %arg4[%c6, %c0_58] : memref<20x128xf32, #tpu.memory_space<vmem>>, vector<1x128xf32>
    %199 = vector.broadcast %198 : vector<1x128xf32> to vector<16x128xf32>
    %200 = arith.addf %197, %199 : vector<16x128xf32>
    %201 = vector.broadcast %8 : vector<1x128xf32> to vector<16x128xf32>
    %202 = arith.mulf %196, %201 : vector<16x128xf32>
    %203 = vector.broadcast %16 : vector<1x128xf32> to vector<16x128xf32>
    %204 = arith.mulf %196, %203 : vector<16x128xf32>
    %205 = vector.broadcast %24 : vector<1x128xf32> to vector<16x128xf32>
    %206 = arith.mulf %196, %205 : vector<16x128xf32>
    %207 = vector.broadcast %32 : vector<1x128xf32> to vector<16x128xf32>
    %208 = arith.mulf %196, %207 : vector<16x128xf32>
    %209 = vector.broadcast %40 : vector<1x128xf32> to vector<16x128xf32>
    %210 = arith.mulf %196, %209 : vector<16x128xf32>
    %211 = vector.broadcast %48 : vector<1x128xf32> to vector<16x128xf32>
    %212 = arith.mulf %196, %211 : vector<16x128xf32>
    %213 = vector.broadcast %56 : vector<1x128xf32> to vector<16x128xf32>
    %214 = arith.mulf %196, %213 : vector<16x128xf32>
    %215 = vector.broadcast %64 : vector<1x128xf32> to vector<16x128xf32>
    %216 = arith.mulf %196, %215 : vector<16x128xf32>
    %217 = tpu.concatenate %202, %204, %206, %208, %210, %212, %214, %216 in 0 : vector<16x128xf32>, vector<16x128xf32>, vector<16x128xf32>, vector<16x128xf32>, vector<16x128xf32>, vector<16x128xf32>, vector<16x128xf32>, vector<16x128xf32> -> vector<128x128xf32>
    %218 = vector.broadcast %8 : vector<1x128xf32> to vector<16x128xf32>
    %219 = arith.mulf %200, %218 : vector<16x128xf32>
    %220 = vector.broadcast %16 : vector<1x128xf32> to vector<16x128xf32>
    %221 = arith.mulf %200, %220 : vector<16x128xf32>
    %222 = vector.broadcast %24 : vector<1x128xf32> to vector<16x128xf32>
    %223 = arith.mulf %200, %222 : vector<16x128xf32>
    %224 = vector.broadcast %32 : vector<1x128xf32> to vector<16x128xf32>
    %225 = arith.mulf %200, %224 : vector<16x128xf32>
    %226 = vector.broadcast %40 : vector<1x128xf32> to vector<16x128xf32>
    %227 = arith.mulf %200, %226 : vector<16x128xf32>
    %228 = vector.broadcast %48 : vector<1x128xf32> to vector<16x128xf32>
    %229 = arith.mulf %200, %228 : vector<16x128xf32>
    %230 = vector.broadcast %56 : vector<1x128xf32> to vector<16x128xf32>
    %231 = arith.mulf %200, %230 : vector<16x128xf32>
    %232 = vector.broadcast %64 : vector<1x128xf32> to vector<16x128xf32>
    %233 = arith.mulf %200, %232 : vector<16x128xf32>
    %234 = tpu.concatenate %219, %221, %223, %225, %227, %229, %231, %233 in 0 : vector<16x128xf32>, vector<16x128xf32>, vector<16x128xf32>, vector<16x128xf32>, vector<16x128xf32>, vector<16x128xf32>, vector<16x128xf32>, vector<16x128xf32> -> vector<128x128xf32>
    %cst_59 = arith.constant dense<0.000000e+00> : vector<64x128xf32>
    %235 = tpu.matmul %190, %217, %cst_59 {dimension_numbers = #tpu.dot_dimension_numbers<[1], [1], [0], [0], [0, 0, 1, 0], [], []>} : vector<64x128xf32>, vector<128x128xf32>, vector<64x128xf32> -> vector<64x128xf32>
    %cst_60 = arith.constant dense<0xFF800000> : vector<64xf32>
    %236 = vector.multi_reduction <maximumf>, %235, %cst_60 [1] : vector<64x128xf32> to vector<64xf32>
    %237 = vector.shape_cast %236 : vector<64xf32> to vector<64x1xf32>
    %238 = vector.broadcast %237 : vector<64x1xf32> to vector<64x128xf32>
    %239 = arith.subf %235, %238 : vector<64x128xf32>
    %240 = math.exp %239 : vector<64x128xf32>
    %241 = tpu.iota {dimensions = array<i32: 0>} : vector<64x128xi32>
    %242 = tpu.iota {dimensions = array<i32: 1>} : vector<64x128xi32>
    %c5_i32_61 = arith.constant 5 : i32
    %243 = vector.broadcast %c5_i32_61 : i32 to vector<64x128xi32>
    %244 = arith.shrsi %241, %243 : vector<64x128xi32>
    %c3_i32 = arith.constant 3 : i32
    %245 = vector.broadcast %c3_i32 : i32 to vector<64x128xi32>
    %246 = arith.shrsi %242, %245 : vector<64x128xi32>
    %c1_i32_62 = arith.constant 1 : i32
    %247 = vector.broadcast %c1_i32_62 : i32 to vector<64x128xi32>
    %248 = arith.andi %246, %247 : vector<64x128xi32>
    %249 = arith.cmpi eq, %244, %248 : vector<64x128xi32>
    %cst_63 = arith.constant 0.000000e+00 : f32
    %250 = vector.broadcast %cst_63 : f32 to vector<64x128xf32>
    %251 = arith.select %249, %240, %250 : vector<64x128xi1>, vector<64x128xf32>
    %c0_64 = arith.constant 0 : index
    %c1408 = arith.constant 1408 : index
    %252 = vector.load %arg3[%c0_64, %c1408] : memref<128x1536xf32, #tpu.memory_space<vmem>>, vector<128x128xf32>
    %cst_65 = arith.constant dense<0.000000e+00> : vector<64x128xf32>
    %253 = tpu.matmul %251, %252, %cst_65 {dimension_numbers = #tpu.dot_dimension_numbers<[1], [0], [0], [1], [0, 0, 1, 1], [], []>} : vector<64x128xf32>, vector<128x128xf32>, vector<64x128xf32> -> vector<64x128xf32>
    %254 = tpu.reciprocal %253 {approx = true} : vector<64x128xf32> -> vector<64x128xf32>
    %255 = arith.mulf %253, %254 : vector<64x128xf32>
    %cst_66 = arith.constant 2.000000e+00 : f32
    %256 = vector.broadcast %cst_66 : f32 to vector<64x128xf32>
    %257 = arith.subf %256, %255 : vector<64x128xf32>
    %258 = arith.mulf %254, %257 : vector<64x128xf32>
    %259 = arith.mulf %251, %258 : vector<64x128xf32>
    %cst_67 = arith.constant dense<0.000000e+00> : vector<64x128xf32>
    %260 = tpu.matmul %259, %234, %cst_67 {dimension_numbers = #tpu.dot_dimension_numbers<[1], [0], [0], [1], [0, 0, 1, 1], [], []>} : vector<64x128xf32>, vector<128x128xf32>, vector<64x128xf32> -> vector<64x128xf32>
    %c0_68 = arith.constant 0 : index
    %c896 = arith.constant 896 : index
    %261 = vector.load %arg3[%c0_68, %c896] : memref<128x1536xf32, #tpu.memory_space<vmem>>, vector<128x128xf32>
    %cst_69 = arith.constant dense<0.000000e+00> : vector<64x128xf32>
    %262 = tpu.matmul %260, %261, %cst_69 {dimension_numbers = #tpu.dot_dimension_numbers<[1], [0], [0], [1], [0, 0, 1, 1], [], []>} : vector<64x128xf32>, vector<128x128xf32>, vector<64x128xf32> -> vector<64x128xf32>
    %c7 = arith.constant 7 : index
    %c0_70 = arith.constant 0 : index
    %263 = vector.load %arg4[%c7, %c0_70] : memref<20x128xf32, #tpu.memory_space<vmem>>, vector<1x128xf32>
    %264 = vector.broadcast %263 : vector<1x128xf32> to vector<64x128xf32>
    %265 = arith.addf %262, %264 : vector<64x128xf32>
    %266 = arith.addf %185, %265 : vector<64x128xf32>
    %c12 = arith.constant 12 : index
    %c0_71 = arith.constant 0 : index
    %267 = vector.load %arg4[%c12, %c0_71] : memref<20x128xf32, #tpu.memory_space<vmem>>, vector<1x128xf32>
    %c13 = arith.constant 13 : index
    %c0_72 = arith.constant 0 : index
    %268 = vector.load %arg4[%c13, %c0_72] : memref<20x128xf32, #tpu.memory_space<vmem>>, vector<1x128xf32>
    %cst_73 = arith.constant dense<0.000000e+00> : vector<64xf32>
    %269 = vector.multi_reduction <add>, %266, %cst_73 [1] : vector<64x128xf32> to vector<64xf32>
    %270 = vector.shape_cast %269 : vector<64xf32> to vector<64x1xf32>
    %cst_74 = arith.constant 1.280000e+02 : f32
    %271 = vector.broadcast %cst_74 : f32 to vector<64x1xf32>
    %272 = arith.divf %270, %271 : vector<64x1xf32>
    %273 = vector.broadcast %272 : vector<64x1xf32> to vector<64x128xf32>
    %274 = arith.subf %266, %273 : vector<64x128xf32>
    %275 = arith.mulf %274, %274 : vector<64x128xf32>
    %cst_75 = arith.constant dense<0.000000e+00> : vector<64xf32>
    %276 = vector.multi_reduction <add>, %275, %cst_75 [1] : vector<64x128xf32> to vector<64xf32>
    %277 = vector.shape_cast %276 : vector<64xf32> to vector<64x1xf32>
    %cst_76 = arith.constant 1.280000e+02 : f32
    %278 = vector.broadcast %cst_76 : f32 to vector<64x1xf32>
    %279 = arith.divf %277, %278 : vector<64x1xf32>
    %cst_77 = arith.constant 9.99999974E-6 : f32
    %280 = vector.broadcast %cst_77 : f32 to vector<64x1xf32>
    %281 = arith.addf %279, %280 : vector<64x1xf32>
    %282 = math.rsqrt %281 : vector<64x1xf32>
    %283 = vector.broadcast %282 : vector<64x1xf32> to vector<64x128xf32>
    %284 = arith.mulf %274, %283 : vector<64x128xf32>
    %285 = vector.broadcast %267 : vector<1x128xf32> to vector<64x128xf32>
    %286 = arith.mulf %284, %285 : vector<64x128xf32>
    %287 = vector.broadcast %268 : vector<1x128xf32> to vector<64x128xf32>
    %288 = arith.addf %286, %287 : vector<64x128xf32>
    %c0_78 = arith.constant 0 : index
    %c1024 = arith.constant 1024 : index
    %289 = vector.load %arg3[%c0_78, %c1024] : memref<128x1536xf32, #tpu.memory_space<vmem>>, vector<128x128xf32>
    %cst_79 = arith.constant dense<0.000000e+00> : vector<64x128xf32>
    %290 = tpu.matmul %288, %289, %cst_79 {dimension_numbers = #tpu.dot_dimension_numbers<[1], [0], [0], [1], [0, 0, 1, 1], [], []>} : vector<64x128xf32>, vector<128x128xf32>, vector<64x128xf32> -> vector<64x128xf32>
    %c8 = arith.constant 8 : index
    %c0_80 = arith.constant 0 : index
    %291 = vector.load %arg4[%c8, %c0_80] : memref<20x128xf32, #tpu.memory_space<vmem>>, vector<1x128xf32>
    %292 = vector.broadcast %291 : vector<1x128xf32> to vector<64x128xf32>
    %293 = arith.addf %290, %292 : vector<64x128xf32>
    %cst_81 = arith.constant 0.000000e+00 : f32
    %294 = vector.broadcast %cst_81 : f32 to vector<64x128xf32>
    %295 = arith.maximumf %293, %294 : vector<64x128xf32>
    %c0_82 = arith.constant 0 : index
    %c1152 = arith.constant 1152 : index
    %296 = vector.load %arg3[%c0_82, %c1152] : memref<128x1536xf32, #tpu.memory_space<vmem>>, vector<128x128xf32>
    %cst_83 = arith.constant dense<0.000000e+00> : vector<64x128xf32>
    %297 = tpu.matmul %295, %296, %cst_83 {dimension_numbers = #tpu.dot_dimension_numbers<[1], [0], [0], [1], [0, 0, 1, 1], [], []>} : vector<64x128xf32>, vector<128x128xf32>, vector<64x128xf32> -> vector<64x128xf32>
    %c9 = arith.constant 9 : index
    %c0_84 = arith.constant 0 : index
    %298 = vector.load %arg4[%c9, %c0_84] : memref<20x128xf32, #tpu.memory_space<vmem>>, vector<1x128xf32>
    %299 = vector.broadcast %298 : vector<1x128xf32> to vector<64x128xf32>
    %300 = arith.addf %297, %299 : vector<64x128xf32>
    %301 = arith.addf %288, %300 : vector<64x128xf32>
    %c14 = arith.constant 14 : index
    %c0_85 = arith.constant 0 : index
    %302 = vector.load %arg4[%c14, %c0_85] : memref<20x128xf32, #tpu.memory_space<vmem>>, vector<1x128xf32>
    %c15 = arith.constant 15 : index
    %c0_86 = arith.constant 0 : index
    %303 = vector.load %arg4[%c15, %c0_86] : memref<20x128xf32, #tpu.memory_space<vmem>>, vector<1x128xf32>
    %cst_87 = arith.constant dense<0.000000e+00> : vector<64xf32>
    %304 = vector.multi_reduction <add>, %301, %cst_87 [1] : vector<64x128xf32> to vector<64xf32>
    %305 = vector.shape_cast %304 : vector<64xf32> to vector<64x1xf32>
    %cst_88 = arith.constant 1.280000e+02 : f32
    %306 = vector.broadcast %cst_88 : f32 to vector<64x1xf32>
    %307 = arith.divf %305, %306 : vector<64x1xf32>
    %308 = vector.broadcast %307 : vector<64x1xf32> to vector<64x128xf32>
    %309 = arith.subf %301, %308 : vector<64x128xf32>
    %310 = arith.mulf %309, %309 : vector<64x128xf32>
    %cst_89 = arith.constant dense<0.000000e+00> : vector<64xf32>
    %311 = vector.multi_reduction <add>, %310, %cst_89 [1] : vector<64x128xf32> to vector<64xf32>
    %312 = vector.shape_cast %311 : vector<64xf32> to vector<64x1xf32>
    %cst_90 = arith.constant 1.280000e+02 : f32
    %313 = vector.broadcast %cst_90 : f32 to vector<64x1xf32>
    %314 = arith.divf %312, %313 : vector<64x1xf32>
    %cst_91 = arith.constant 9.99999974E-6 : f32
    %315 = vector.broadcast %cst_91 : f32 to vector<64x1xf32>
    %316 = arith.addf %314, %315 : vector<64x1xf32>
    %317 = math.rsqrt %316 : vector<64x1xf32>
    %318 = vector.broadcast %317 : vector<64x1xf32> to vector<64x128xf32>
    %319 = arith.mulf %309, %318 : vector<64x128xf32>
    %320 = vector.broadcast %302 : vector<1x128xf32> to vector<64x128xf32>
    %321 = arith.mulf %319, %320 : vector<64x128xf32>
    %322 = vector.broadcast %303 : vector<1x128xf32> to vector<64x128xf32>
    %323 = arith.addf %321, %322 : vector<64x128xf32>
    %c0_92 = arith.constant 0 : index
    %c1280 = arith.constant 1280 : index
    %324 = vector.load %arg3[%c0_92, %c1280] : memref<128x1536xf32, #tpu.memory_space<vmem>>, vector<128x128xf32>
    %325 = vector.extract_strided_slice %323 {offsets = [0, 0], sizes = [8, 128], strides = [1, 1]} : vector<64x128xf32> to vector<8x128xf32>
    %326 = vector.extract_strided_slice %323 {offsets = [8, 0], sizes = [8, 128], strides = [1, 1]} : vector<64x128xf32> to vector<8x128xf32>
    %327 = arith.addf %325, %326 : vector<8x128xf32>
    %328 = arith.maximumf %325, %326 : vector<8x128xf32>
    %329 = vector.extract_strided_slice %323 {offsets = [16, 0], sizes = [8, 128], strides = [1, 1]} : vector<64x128xf32> to vector<8x128xf32>
    %330 = arith.addf %327, %329 : vector<8x128xf32>
    %331 = arith.maximumf %328, %329 : vector<8x128xf32>
    %332 = vector.extract_strided_slice %323 {offsets = [24, 0], sizes = [8, 128], strides = [1, 1]} : vector<64x128xf32> to vector<8x128xf32>
    %333 = arith.addf %330, %332 : vector<8x128xf32>
    %334 = arith.maximumf %331, %332 : vector<8x128xf32>
    %cst_93 = arith.constant 2.500000e-01 : f32
    %335 = vector.broadcast %cst_93 : f32 to vector<8x128xf32>
    %336 = arith.mulf %333, %335 : vector<8x128xf32>
    %337 = arith.addf %336, %334 : vector<8x128xf32>
    %338 = vector.extract_strided_slice %323 {offsets = [32, 0], sizes = [8, 128], strides = [1, 1]} : vector<64x128xf32> to vector<8x128xf32>
    %339 = vector.extract_strided_slice %323 {offsets = [40, 0], sizes = [8, 128], strides = [1, 1]} : vector<64x128xf32> to vector<8x128xf32>
    %340 = arith.addf %338, %339 : vector<8x128xf32>
    %341 = arith.maximumf %338, %339 : vector<8x128xf32>
    %342 = vector.extract_strided_slice %323 {offsets = [48, 0], sizes = [8, 128], strides = [1, 1]} : vector<64x128xf32> to vector<8x128xf32>
    %343 = arith.addf %340, %342 : vector<8x128xf32>
    %344 = arith.maximumf %341, %342 : vector<8x128xf32>
    %345 = vector.extract_strided_slice %323 {offsets = [56, 0], sizes = [8, 128], strides = [1, 1]} : vector<64x128xf32> to vector<8x128xf32>
    %346 = arith.addf %343, %345 : vector<8x128xf32>
    %347 = arith.maximumf %344, %345 : vector<8x128xf32>
    %cst_94 = arith.constant 2.500000e-01 : f32
    %348 = vector.broadcast %cst_94 : f32 to vector<8x128xf32>
    %349 = arith.mulf %346, %348 : vector<8x128xf32>
    %350 = arith.addf %349, %347 : vector<8x128xf32>
    %351 = tpu.concatenate %337, %350 in 0 : vector<8x128xf32>, vector<8x128xf32> -> vector<16x128xf32>
    %c16 = arith.constant 16 : index
    %c0_95 = arith.constant 0 : index
    %352 = vector.load %arg4[%c16, %c0_95] : memref<20x128xf32, #tpu.memory_space<vmem>>, vector<1x128xf32>
    %c17 = arith.constant 17 : index
    %c0_96 = arith.constant 0 : index
    %353 = vector.load %arg4[%c17, %c0_96] : memref<20x128xf32, #tpu.memory_space<vmem>>, vector<1x128xf32>
    %354 = arith.mulf %351, %351 : vector<16x128xf32>
    %355 = tpu.concatenate %351, %354 in 0 : vector<16x128xf32>, vector<16x128xf32> -> vector<32x128xf32>
    %cst_97 = arith.constant dense<0.000000e+00> : vector<32x128xf32>
    %356 = tpu.matmul %355, %324, %cst_97 {dimension_numbers = #tpu.dot_dimension_numbers<[1], [0], [0], [1], [0, 0, 1, 1], [], []>} : vector<32x128xf32>, vector<128x128xf32>, vector<32x128xf32> -> vector<32x128xf32>
    %357 = vector.extract_strided_slice %356 {offsets = [0, 0], sizes = [16, 128], strides = [1, 1]} : vector<32x128xf32> to vector<16x128xf32>
    %358 = vector.extract_strided_slice %356 {offsets = [16, 0], sizes = [16, 128], strides = [1, 1]} : vector<32x128xf32> to vector<16x128xf32>
    %359 = arith.mulf %357, %357 : vector<16x128xf32>
    %360 = arith.subf %358, %359 : vector<16x128xf32>
    %361 = arith.subf %351, %357 : vector<16x128xf32>
    %cst_98 = arith.constant 9.99999974E-6 : f32
    %362 = vector.broadcast %cst_98 : f32 to vector<16x128xf32>
    %363 = arith.addf %360, %362 : vector<16x128xf32>
    %364 = math.rsqrt %363 : vector<16x128xf32>
    %365 = arith.mulf %361, %364 : vector<16x128xf32>
    %366 = vector.broadcast %352 : vector<1x128xf32> to vector<16x128xf32>
    %367 = arith.mulf %365, %366 : vector<16x128xf32>
    %368 = vector.broadcast %353 : vector<1x128xf32> to vector<16x128xf32>
    %369 = arith.addf %367, %368 : vector<16x128xf32>
    %370 = arith.addf %68, %369 : vector<16x128xf32>
    %c18 = arith.constant 18 : index
    %c0_99 = arith.constant 0 : index
    %371 = vector.load %arg4[%c18, %c0_99] : memref<20x128xf32, #tpu.memory_space<vmem>>, vector<1x128xf32>
    %c19 = arith.constant 19 : index
    %c0_100 = arith.constant 0 : index
    %372 = vector.load %arg4[%c19, %c0_100] : memref<20x128xf32, #tpu.memory_space<vmem>>, vector<1x128xf32>
    %373 = arith.mulf %370, %370 : vector<16x128xf32>
    %374 = tpu.concatenate %370, %373 in 0 : vector<16x128xf32>, vector<16x128xf32> -> vector<32x128xf32>
    %cst_101 = arith.constant dense<0.000000e+00> : vector<32x128xf32>
    %375 = tpu.matmul %374, %324, %cst_101 {dimension_numbers = #tpu.dot_dimension_numbers<[1], [0], [0], [1], [0, 0, 1, 1], [], []>} : vector<32x128xf32>, vector<128x128xf32>, vector<32x128xf32> -> vector<32x128xf32>
    %376 = vector.extract_strided_slice %375 {offsets = [0, 0], sizes = [16, 128], strides = [1, 1]} : vector<32x128xf32> to vector<16x128xf32>
    %377 = vector.extract_strided_slice %375 {offsets = [16, 0], sizes = [16, 128], strides = [1, 1]} : vector<32x128xf32> to vector<16x128xf32>
    %378 = arith.mulf %376, %376 : vector<16x128xf32>
    %379 = arith.subf %377, %378 : vector<16x128xf32>
    %380 = arith.subf %370, %376 : vector<16x128xf32>
    %cst_102 = arith.constant 9.99999974E-6 : f32
    %381 = vector.broadcast %cst_102 : f32 to vector<16x128xf32>
    %382 = arith.addf %379, %381 : vector<16x128xf32>
    %383 = math.rsqrt %382 : vector<16x128xf32>
    %384 = arith.mulf %380, %383 : vector<16x128xf32>
    %385 = vector.broadcast %371 : vector<1x128xf32> to vector<16x128xf32>
    %386 = arith.mulf %384, %385 : vector<16x128xf32>
    %387 = vector.broadcast %372 : vector<1x128xf32> to vector<16x128xf32>
    %388 = arith.addf %386, %387 : vector<16x128xf32>
    %c0_103 = arith.constant 0 : index
    %c0_104 = arith.constant 0 : index
    %389 = vector.load %arg5[%c0_103, %c0_104] : memref<16x128xf32, #tpu.memory_space<vmem>>, vector<16x128xf32>
    tpu.vector_store %arg5[%c0_103, %c0_104], %388 {strides = array<i32>} : memref<16x128xf32, #tpu.memory_space<vmem>>, vector<16x128xf32>,
    return
  }
}

</mosaic_0001>

<llo_original>
// kernel: channel_wise_transformer_layer.1
$region0: #{channel_wise_transformer_layer.1}
  #allocation0 [shape = 'u32[]', space=smem, size = 0x4, offset = 0x4, fixed_abs, tag = 'smem constant byte address 0x4 - core index']
  #allocation1 [shape = 'u32[72,128]{1,0:T(1,128)}', space=vmem, size = 0x9000, scoped, tag = 'internal scratch']
  %s0 = inlined_call_operand.vmem [shape: f32[64,32], index: 0, kind: input, shape index: {}]
  %s1 = inlined_call_operand.vmem [shape: f32[16,128], index: 1, kind: input, shape index: {}]
  %s2 = inlined_call_operand.vmem [shape: f32[32,128], index: 2, kind: input, shape index: {}]
  %s3 = inlined_call_operand.hbm [shape: f32[128,1536], index: 3, kind: input, shape index: {}]
  %s4 = inlined_call_operand.vmem [shape: f32[20,128], index: 4, kind: input, shape index: {}]
  %s5 = inlined_call_operand.vmem [shape: f32[16,128], index: 5, kind: output, shape index: {}]
  %s6 = sld [smem:[#allocation0]]
  $region34: #{channel_wise_transformer_layer.1} parent=0
    _
  %s8 = ssub.s32 1, %s6
  %s9 = scalar_select 0, %s8, %s6
  $region1: #{channel_wise_transformer_layer.1} parent=0
    #allocation2 [shape = 'u8[786432]{0}', space=vmem, size = 0xc0000, scoped, tag = 'input window, operand 3, single buffered']
    #allocation3 [shape = 's32[1]{0}', space=sflag, size = 0x4, scoped, tag = 'scoped memory for channel_wise_transformer_layer.1']
    %10 = vsyncpa [#allocation3], 0
    // Predicated region
    $region2: #{channel_wise_transformer_layer.1} parent=1 // pred_check
      _
    $region3: #{channel_wise_transformer_layer.1} parent=1 // pred_check_branch
      %12 = sbr.rel (0) target = $region5
    $region4: #{channel_wise_transformer_layer.1} parent=1 // pred_region
      _
    $region5: #{channel_wise_transformer_layer.1} parent=1 // pred_fallthru
      _
    // Predicated region
    $region6: #{channel_wise_transformer_layer.1} parent=1 // pred_check
      _
    $region7: #{channel_wise_transformer_layer.1} parent=1 // pred_check_branch
      %14 = sbr.rel (0) target = $region9
    $region8: #{channel_wise_transformer_layer.1} parent=1 // pred_region
      _
    $region9: #{channel_wise_transformer_layer.1} parent=1 // pred_fallthru
      _
    // Predicated region
    $region10: #{channel_wise_transformer_layer.1} parent=1 // pred_check
      _
    $region11: #{channel_wise_transformer_layer.1} parent=1 // pred_check_branch
      %16 = sbr.rel (0) target = $region13
    $region12: #{channel_wise_transformer_layer.1} parent=1 // pred_region
      _
    $region13: #{channel_wise_transformer_layer.1} parent=1 // pred_fallthru
      _
    // Predicated region
    $region14: #{channel_wise_transformer_layer.1} parent=1 // pred_check
      _
    $region15: #{channel_wise_transformer_layer.1} parent=1 // pred_check_branch
      %18 = sbr.rel (0) target = $region17
    $region16: #{channel_wise_transformer_layer.1} parent=1 // pred_region
      %20 = vsyncadd [#allocation3], 0
      %s21 = sshll.u32 %s3, 4
      %s22 = int_to_ptr.hbm [resolvable:$true] %s21
      %s23 = sshll.u32 [#allocation2], 4
      %s24 = int_to_ptr.vmem [resolvable:$true] %s23
      %29 = dma.hbm_to_vmem [thread:$0]  %s22, 24576, %s24, [#allocation3], 1536, 1536, 96
    $region17: #{channel_wise_transformer_layer.1} parent=1 // pred_fallthru
      _
    // Predicated region
    $region18: #{channel_wise_transformer_layer.1} parent=1 // pred_check
      _
    $region19: #{channel_wise_transformer_layer.1} parent=1 // pred_check_branch
      %31 = sbr.rel (0) target = $region21
    $region20: #{channel_wise_transformer_layer.1} parent=1 // pred_region
      _
    $region21: #{channel_wise_transformer_layer.1} parent=1 // pred_fallthru
      _
    // Predicated region
    $region22: #{channel_wise_transformer_layer.1} parent=1 // pred_check
      _
    $region23: #{channel_wise_transformer_layer.1} parent=1 // pred_check_branch
      %33 = sbr.rel (0) target = $region25
    $region24: #{channel_wise_transformer_layer.1} parent=1 // pred_region
      %35 = dma.done [#allocation3], 24576
    $region25: #{channel_wise_transformer_layer.1} parent=1 // pred_fallthru
      _
    %v36 = vlaneseq
    %v37 = vand.u32 %v36, 127
    %vm38 = vcmp.ge.s32.totalorder %v37, 0
    %vm39 = vcmp.lt.s32.totalorder %v37, 16
    %vm40 = vmand %vm38, %vm39
    %v41 = vsel %vm40, 1.0, 0.0
    %vm42 = vcmp.ge.s32.totalorder %v37, 16
    %vm43 = vcmp.lt.s32.totalorder %v37, 32
    %vm44 = vmand %vm42, %vm43
    %v45 = vsel %vm44, 1.0, 0.0
    %vm46 = vcmp.ge.s32.totalorder %v37, 32
    %vm47 = vcmp.lt.s32.totalorder %v37, 48
    %vm48 = vmand %vm46, %vm47
    %v49 = vsel %vm48, 1.0, 0.0
    %vm50 = vcmp.ge.s32.totalorder %v37, 48
    %vm51 = vcmp.lt.s32.totalorder %v37, 64
    %vm52 = vmand %vm50, %vm51
    %v53 = vsel %vm52, 1.0, 0.0
    %vm54 = vcmp.ge.s32.totalorder %v37, 64
    %vm55 = vcmp.lt.s32.totalorder %v37, 80
    %vm56 = vmand %vm54, %vm55
    %v57 = vsel %vm56, 1.0, 0.0
    %vm58 = vcmp.ge.s32.totalorder %v37, 80
    %vm59 = vcmp.lt.s32.totalorder %v37, 96
    %vm60 = vmand %vm58, %vm59
    %v61 = vsel %vm60, 1.0, 0.0
    %vm62 = vcmp.ge.s32.totalorder %v37, 96
    %vm63 = vcmp.lt.s32.totalorder %v37, 112
    %vm64 = vmand %vm62, %vm63
    %v65 = vsel %vm64, 1.0, 0.0
    %vm66 = vcmp.ge.s32.totalorder %v37, 112
    %vm67 = vcmp.lt.s32.totalorder %v37, 128
    %vm68 = vmand %vm66, %vm67
    %v69 = vsel %vm68, 1.0, 0.0
    %v70 = vld [vmem:[%s0] sm:$0xff]
    %v71 = vld [vmem:[%s0 + $0x8] sm:$0xff]
    %v72 = vld [vmem:[%s0 + $0x10] sm:$0xff]
    %v73 = vld [vmem:[%s0 + $0x18] sm:$0xff]
    %v74 = vld [vmem:[%s0 + $0x20] sm:$0xff]
    %v75 = vld [vmem:[%s0 + $0x28] sm:$0xff]
    %v76 = vld [vmem:[%s0 + $0x30] sm:$0xff]
    %v77 = vld [vmem:[%s0 + $0x38] sm:$0xff]
    %v78 = vld [vmem:[%s2] sm:$0xff]
    %v79 = vld [vmem:[%s2 + $0x8] sm:$0xff]
    %v80 = vld [vmem:[%s2 + $0x10] sm:$0xff]
    %v81 = vld [vmem:[%s2 + $0x18] sm:$0xff]
    %vm82 = vcmask 261120
    %v84 = vsel %vm82, %v70, 0
    %v87 = vsel %vm82, %v71, 0
    %v90 = vsel %vm82, %v72, 0
    %v93 = vsel %vm82, %v73, 0
    %v96 = vsel %vm82, %v74, 0
    %v99 = vsel %vm82, %v75, 0
    %v102 = vsel %vm82, %v76, 0
    %v105 = vsel %vm82, %v77, 0
    %107 = vmatpush.msra.mxu0 0.0
    %108 = vmatpush.msra.mxu0 0.0
    %109 = vmatpush.msra.mxu0 0.0
    %110 = vmatpush.msra.mxu0 0.0
    %111 = vmatpush.msra.mxu0 0.0
    %112 = vmatpush.msra.mxu0 0.0
    %113 = vmatpush.msra.mxu0 0.0
    %114 = vmatpush.msra.mxu0 0.0
    %115 = vmatpush.msra.mxu0 0.0
    %116 = vmatpush.msra.mxu0 0.0
    %117 = vmatpush.msra.mxu0 0.0
    %118 = vmatpush.msra.mxu0 0.0
    %119 = vmatpush.msra.mxu0 %v81
    %120 = vmatpush.msra.mxu0 %v80
    %121 = vmatpush.msra.mxu0 %v79
    %122 = vmatpush.msra.mxu0 %v78
    %123 = vmatmul.f32.gmra.mxu0 %v84
    %v124 = vpop.f32.mrf.mxu0
    %v125 = vadd.f32 0.0, %v124
    %126 = vmatmul.f32.gmra.mxu0 %v87
    %v127 = vpop.f32.mrf.mxu0
    %v128 = vadd.f32 0.0, %v127
    %129 = vmatmul.f32.gmra.mxu0 %v90
    %v130 = vpop.f32.mrf.mxu0
    %v131 = vadd.f32 0.0, %v130
    %132 = vmatmul.f32.gmra.mxu0 %v93
    %v133 = vpop.f32.mrf.mxu0
    %v134 = vadd.f32 0.0, %v133
    %135 = vmatmul.f32.gmra.mxu0 %v96
    %v136 = vpop.f32.mrf.mxu0
    %v137 = vadd.f32 0.0, %v136
    %138 = vmatmul.f32.gmra.mxu0 %v99
    %v139 = vpop.f32.mrf.mxu0
    %v140 = vadd.f32 0.0, %v139
    %141 = vmatmul.f32.gmra.mxu0 %v102
    %v142 = vpop.f32.mrf.mxu0
    %v143 = vadd.f32 0.0, %v142
    %144 = vmatmul.f32.gmra.mxu0 %v105
    %v145 = vpop.f32.mrf.mxu0
    %v146 = vadd.f32 0.0, %v145
    %147 = vdwg.mxu0
    %v148 = vld [vmem:[%s1] sm:$0xff]
    %v149 = vld [vmem:[%s1 + $0x8] sm:$0xff]
    %v150 = vld [vmem:[#allocation2] sm:$0xff]
    %v151 = vld [vmem:[#allocation2 + $0x8] sm:$0xff]
    %v152 = vld [vmem:[#allocation2 + $0x10] sm:$0xff]
    %v153 = vld [vmem:[#allocation2 + $0x60] sm:$0xff]
    %v154 = vld [vmem:[#allocation2 + $0x68] sm:$0xff]
    %v155 = vld [vmem:[#allocation2 + $0x70] sm:$0xff]
    %v156 = vld [vmem:[#allocation2 + $0xc0] sm:$0xff]
    %v157 = vld [vmem:[#allocation2 + $0xc8] sm:$0xff]
    %v158 = vld [vmem:[#allocation2 + $0xd0] sm:$0xff]
    %v159 = vld [vmem:[#allocation2 + $0x120] sm:$0xff]
    %v160 = vld [vmem:[#allocation2 + $0x128] sm:$0xff]
    %v161 = vld [vmem:[#allocation2 + $0x130] sm:$0xff]
    %v162 = vld [vmem:[#allocation2 + $0x180] sm:$0xff]
    %v163 = vld [vmem:[#allocation2 + $0x188] sm:$0xff]
    %v164 = vld [vmem:[#allocation2 + $0x190] sm:$0xff]
    %v165 = vld [vmem:[#allocation2 + $0x1e0] sm:$0xff]
    %v166 = vld [vmem:[#allocation2 + $0x1e8] sm:$0xff]
    %v167 = vld [vmem:[#allocation2 + $0x1f0] sm:$0xff]
    %v168 = vld [vmem:[#allocation2 + $0x240] sm:$0xff]
    %v169 = vld [vmem:[#allocation2 + $0x248] sm:$0xff]
    %v170 = vld [vmem:[#allocation2 + $0x250] sm:$0xff]
    %v171 = vld [vmem:[#allocation2 + $0x2a0] sm:$0xff]
    %v172 = vld [vmem:[#allocation2 + $0x2a8] sm:$0xff]
    %v173 = vld [vmem:[#allocation2 + $0x2b0] sm:$0xff]
    %v174 = vld [vmem:[#allocation2 + $0x300] sm:$0xff]
    %v175 = vld [vmem:[#allocation2 + $0x308] sm:$0xff]
    %v176 = vld [vmem:[#allocation2 + $0x310] sm:$0xff]
    %v177 = vld [vmem:[#allocation2 + $0x360] sm:$0xff]
    %v178 = vld [vmem:[#allocation2 + $0x368] sm:$0xff]
    %v179 = vld [vmem:[#allocation2 + $0x370] sm:$0xff]
    %v180 = vld [vmem:[#allocation2 + $0x3c0] sm:$0xff]
    %v181 = vld [vmem:[#allocation2 + $0x3c8] sm:$0xff]
    %v182 = vld [vmem:[#allocation2 + $0x3d0] sm:$0xff]
    %v183 = vld [vmem:[#allocation2 + $0x420] sm:$0xff]
    %v184 = vld [vmem:[#allocation2 + $0x428] sm:$0xff]
    %v185 = vld [vmem:[#allocation2 + $0x430] sm:$0xff]
    %v186 = vld [vmem:[#allocation2 + $0x480] sm:$0xff]
    %v187 = vld [vmem:[#allocation2 + $0x488] sm:$0xff]
    %v188 = vld [vmem:[#allocation2 + $0x490] sm:$0xff]
    %v189 = vld [vmem:[#allocation2 + $0x4e0] sm:$0xff]
    %v190 = vld [vmem:[#allocation2 + $0x4e8] sm:$0xff]
    %v191 = vld [vmem:[#allocation2 + $0x4f0] sm:$0xff]
    %v192 = vld [vmem:[#allocation2 + $0x540] sm:$0xff]
    %v193 = vld [vmem:[#allocation2 + $0x548] sm:$0xff]
    %v194 = vld [vmem:[#allocation2 + $0x550] sm:$0xff]
    %v195 = vld [vmem:[#allocation2 + $0x5a0] sm:$0xff]
    %v196 = vld [vmem:[#allocation2 + $0x5a8] sm:$0xff]
    %v197 = vld [vmem:[#allocation2 + $0x5b0] sm:$0xff]
    %198 = vmatpush.msra.mxu0 %v195
    %199 = vmatpush.msra.mxu0 %v192
    %200 = vmatpush.msra.mxu0 %v189
    %201 = vmatpush.msra.mxu0 %v186
    %202 = vmatpush.msra.mxu0 %v183
    %203 = vmatpush.msra.mxu0 %v180
    %204 = vmatpush.msra.mxu0 %v177
    %205 = vmatpush.msra.mxu0 %v174
    %206 = vmatpush.msra.mxu0 %v171
    %207 = vmatpush.msra.mxu0 %v168
    %208 = vmatpush.msra.mxu0 %v165
    %209 = vmatpush.msra.mxu0 %v162
    %210 = vmatpush.msra.mxu0 %v159
    %211 = vmatpush.msra.mxu0 %v156
    %212 = vmatpush.msra.mxu0 %v153
    %213 = vmatpush.msra.mxu0 %v150
    %214 = vmatmul.f32.gmra.mxu0 %v125
    %v215 = vpop.f32.mrf.mxu0
    %v216 = vadd.f32 0.0, %v215
    %217 = vmatmul.f32.gmra.mxu0 %v128
    %v218 = vpop.f32.mrf.mxu0
    %v219 = vadd.f32 0.0, %v218
    %220 = vmatmul.f32.gmra.mxu0 %v131
    %v221 = vpop.f32.mrf.mxu0
    %v222 = vadd.f32 0.0, %v221
    %223 = vmatmul.f32.gmra.mxu0 %v134
    %v224 = vpop.f32.mrf.mxu0
    %v225 = vadd.f32 0.0, %v224
    %226 = vmatmul.f32.gmra.mxu0 %v137
    %v227 = vpop.f32.mrf.mxu0
    %v228 = vadd.f32 0.0, %v227
    %229 = vmatmul.f32.gmra.mxu0 %v140
    %v230 = vpop.f32.mrf.mxu0
    %v231 = vadd.f32 0.0, %v230
    %232 = vmatmul.f32.gmra.mxu0 %v143
    %v233 = vpop.f32.mrf.mxu0
    %v234 = vadd.f32 0.0, %v233
    %235 = vmatmul.f32.gmra.mxu0 %v146
    %v236 = vpop.f32.mrf.mxu0
    %v237 = vadd.f32 0.0, %v236
    %238 = vdwg.mxu0
    %239 = vmatpush.msra.mxu0 %v196
    %240 = vmatpush.msra.mxu0 %v193
    %241 = vmatpush.msra.mxu0 %v190
    %242 = vmatpush.msra.mxu0 %v187
    %243 = vmatpush.msra.mxu0 %v184
    %244 = vmatpush.msra.mxu0 %v181
    %245 = vmatpush.msra.mxu0 %v178
    %246 = vmatpush.msra.mxu0 %v175
    %247 = vmatpush.msra.mxu0 %v172
    %248 = vmatpush.msra.mxu0 %v169
    %249 = vmatpush.msra.mxu0 %v166
    %250 = vmatpush.msra.mxu0 %v163
    %251 = vmatpush.msra.mxu0 %v160
    %252 = vmatpush.msra.mxu0 %v157
    %253 = vmatpush.msra.mxu0 %v154
    %254 = vmatpush.msra.mxu0 %v151
    %255 = vmatmul.f32.gmra.mxu0 %v125
    %v256 = vpop.f32.mrf.mxu0
    %v257 = vadd.f32 0.0, %v256
    %258 = vmatmul.f32.gmra.mxu0 %v128
    %v259 = vpop.f32.mrf.mxu0
    %v260 = vadd.f32 0.0, %v259
    %261 = vmatmul.f32.gmra.mxu0 %v131
    %v262 = vpop.f32.mrf.mxu0
    %v263 = vadd.f32 0.0, %v262
    %264 = vmatmul.f32.gmra.mxu0 %v134
    %v265 = vpop.f32.mrf.mxu0
    %v266 = vadd.f32 0.0, %v265
    %267 = vmatmul.f32.gmra.mxu0 %v137
    %v268 = vpop.f32.mrf.mxu0
    %v269 = vadd.f32 0.0, %v268
    %270 = vmatmul.f32.gmra.mxu0 %v140
    %v271 = vpop.f32.mrf.mxu0
    %v272 = vadd.f32 0.0, %v271
    %273 = vmatmul.f32.gmra.mxu0 %v143
    %v274 = vpop.f32.mrf.mxu0
    %v275 = vadd.f32 0.0, %v274
    %276 = vmatmul.f32.gmra.mxu0 %v146
    %v277 = vpop.f32.mrf.mxu0
    %v278 = vadd.f32 0.0, %v277
    %279 = vdwg.mxu0
    %280 = vmatpush.msra.mxu0 %v197
    %281 = vmatpush.msra.mxu0 %v194
    %282 = vmatpush.msra.mxu0 %v191
    %283 = vmatpush.msra.mxu0 %v188
    %284 = vmatpush.msra.mxu0 %v185
    %285 = vmatpush.msra.mxu0 %v182
    %286 = vmatpush.msra.mxu0 %v179
    %287 = vmatpush.msra.mxu0 %v176
    %288 = vmatpush.msra.mxu0 %v173
    %289 = vmatpush.msra.mxu0 %v170
    %290 = vmatpush.msra.mxu0 %v167
    %291 = vmatpush.msra.mxu0 %v164
    %292 = vmatpush.msra.mxu0 %v161
    %293 = vmatpush.msra.mxu0 %v158
    %294 = vmatpush.msra.mxu0 %v155
    %295 = vmatpush.msra.mxu0 %v152
    %296 = vmatmul.f32.gmra.mxu0 %v125
    %v297 = vpop.f32.mrf.mxu0
    %v298 = vadd.f32 0.0, %v297
    %299 = vmatmul.f32.gmra.mxu0 %v128
    %v300 = vpop.f32.mrf.mxu0
    %v301 = vadd.f32 0.0, %v300
    %302 = vmatmul.f32.gmra.mxu0 %v131
    %v303 = vpop.f32.mrf.mxu0
    %v304 = vadd.f32 0.0, %v303
    %305 = vmatmul.f32.gmra.mxu0 %v134
    %v306 = vpop.f32.mrf.mxu0
    %v307 = vadd.f32 0.0, %v306
    %308 = vmatmul.f32.gmra.mxu0 %v137
    %v309 = vpop.f32.mrf.mxu0
    %v310 = vadd.f32 0.0, %v309
    %311 = vmatmul.f32.gmra.mxu0 %v140
    %v312 = vpop.f32.mrf.mxu0
    %v313 = vadd.f32 0.0, %v312
    %314 = vmatmul.f32.gmra.mxu0 %v143
    %v315 = vpop.f32.mrf.mxu0
    %v316 = vadd.f32 0.0, %v315
    %317 = vmatmul.f32.gmra.mxu0 %v146
    %v318 = vpop.f32.mrf.mxu0
    %v319 = vadd.f32 0.0, %v318
    %320 = vdwg.mxu0
    %v321 = vld [vmem:[%s4] sm:$0x1]
    %v322 = vperm.slane %v321, 0
    %v323 = vadd.f32 %v216, %v322
    %v324 = vadd.f32 %v219, %v322
    %v325 = vadd.f32 %v222, %v322
    %v326 = vadd.f32 %v225, %v322
    %v327 = vadd.f32 %v228, %v322
    %v328 = vadd.f32 %v231, %v322
    %v329 = vadd.f32 %v234, %v322
    %v330 = vadd.f32 %v237, %v322
    %v331 = vld [vmem:[%s4 + $0x1] sm:$0x1]
    %v332 = vperm.slane %v331, 0
    %v333 = vadd.f32 %v257, %v332
    %v334 = vadd.f32 %v260, %v332
    %v335 = vadd.f32 %v263, %v332
    %v336 = vadd.f32 %v266, %v332
    %v337 = vadd.f32 %v269, %v332
    %v338 = vadd.f32 %v272, %v332
    %v339 = vadd.f32 %v275, %v332
    %v340 = vadd.f32 %v278, %v332
    %v341 = vld [vmem:[%s4 + $0x2] sm:$0x1]
    %v342 = vperm.slane %v341, 0
    %v343 = vadd.f32 %v298, %v342
    %v344 = vadd.f32 %v301, %v342
    %v345 = vadd.f32 %v304, %v342
    %v346 = vadd.f32 %v307, %v342
    %v347 = vadd.f32 %v310, %v342
    %v348 = vadd.f32 %v313, %v342
    %v349 = vadd.f32 %v316, %v342
    %v350 = vadd.f32 %v319, %v342
    %v351 = vmul.f32 %v323, %v41
    %v352 = vmul.f32 %v324, %v41
    %v353 = vmul.f32 %v325, %v41
    %v354 = vmul.f32 %v326, %v41
    %v355 = vmul.f32 %v327, %v41
    %v356 = vmul.f32 %v328, %v41
    %v357 = vmul.f32 %v329, %v41
    %v358 = vmul.f32 %v330, %v41
    %v359 = vmul.f32 %v323, %v45
    %v360 = vmul.f32 %v324, %v45
    %v361 = vmul.f32 %v325, %v45
    %v362 = vmul.f32 %v326, %v45
    %v363 = vmul.f32 %v327, %v45
    %v364 = vmul.f32 %v328, %v45
    %v365 = vmul.f32 %v329, %v45
    %v366 = vmul.f32 %v330, %v45
    %v367 = vmul.f32 %v323, %v49
    %v368 = vmul.f32 %v324, %v49
    %v369 = vmul.f32 %v325, %v49
    %v370 = vmul.f32 %v326, %v49
    %v371 = vmul.f32 %v327, %v49
    %v372 = vmul.f32 %v328, %v49
    %v373 = vmul.f32 %v329, %v49
    %v374 = vmul.f32 %v330, %v49
    %v375 = vmul.f32 %v323, %v53
    %v376 = vmul.f32 %v324, %v53
    %v377 = vmul.f32 %v325, %v53
    %v378 = vmul.f32 %v326, %v53
    %v379 = vmul.f32 %v327, %v53
    %v380 = vmul.f32 %v328, %v53
    %v381 = vmul.f32 %v329, %v53
    %v382 = vmul.f32 %v330, %v53
    %v383 = vmul.f32 %v323, %v57
    %v384 = vmul.f32 %v324, %v57
    %v385 = vmul.f32 %v325, %v57
    %v386 = vmul.f32 %v326, %v57
    %v387 = vmul.f32 %v327, %v57
    %v388 = vmul.f32 %v328, %v57
    %v389 = vmul.f32 %v329, %v57
    %v390 = vmul.f32 %v330, %v57
    %v391 = vmul.f32 %v323, %v61
    %v392 = vmul.f32 %v324, %v61
    %v393 = vmul.f32 %v325, %v61
    %v394 = vmul.f32 %v326, %v61
    %v395 = vmul.f32 %v327, %v61
    %v396 = vmul.f32 %v328, %v61
    %v397 = vmul.f32 %v329, %v61
    %v398 = vmul.f32 %v330, %v61
    %v399 = vmul.f32 %v323, %v65
    %v400 = vmul.f32 %v324, %v65
    %v401 = vmul.f32 %v325, %v65
    %v402 = vmul.f32 %v326, %v65
    %v403 = vmul.f32 %v327, %v65
    %v404 = vmul.f32 %v328, %v65
    %v405 = vmul.f32 %v329, %v65
    %v406 = vmul.f32 %v330, %v65
    %v407 = vmul.f32 %v323, %v69
    %v408 = vmul.f32 %v324, %v69
    %v409 = vmul.f32 %v325, %v69
    %v410 = vmul.f32 %v326, %v69
    %v411 = vmul.f32 %v327, %v69
    %v412 = vmul.f32 %v328, %v69
    %v413 = vmul.f32 %v329, %v69
    %v414 = vmul.f32 %v330, %v69
    %415 = vmatpush.xpose.msra.mxu0 0.0
    %416 = vmatpush.xpose.msra.mxu0 0.0
    %417 = vmatpush.xpose.msra.mxu0 0.0
    %418 = vmatpush.xpose.msra.mxu0 0.0
    %419 = vmatpush.xpose.msra.mxu0 0.0
    %420 = vmatpush.xpose.msra.mxu0 0.0
    %421 = vmatpush.xpose.msra.mxu0 0.0
    %422 = vmatpush.xpose.msra.mxu0 0.0
    %423 = vmatpush.xpose.msra.mxu0 %v340
    %424 = vmatpush.xpose.msra.mxu0 %v339
    %425 = vmatpush.xpose.msra.mxu0 %v338
    %426 = vmatpush.xpose.msra.mxu0 %v337
    %427 = vmatpush.xpose.msra.mxu0 %v336
    %428 = vmatpush.xpose.msra.mxu0 %v335
    %429 = vmatpush.xpose.msra.mxu0 %v334
    %430 = vmatpush.xpose.msra.mxu0 %v333
    %431 = vmatmul.f32.gmra.mxu0 %v351
    %v432 = vpop.f32.mrf.mxu0
    %v433 = vadd.f32 0.0, %v432
    %434 = vmatmul.f32.gmra.mxu0 %v352
    %v435 = vpop.f32.mrf.mxu0
    %v436 = vadd.f32 0.0, %v435
    %437 = vmatmul.f32.gmra.mxu0 %v353
    %v438 = vpop.f32.mrf.mxu0
    %v439 = vadd.f32 0.0, %v438
    %440 = vmatmul.f32.gmra.mxu0 %v354
    %v441 = vpop.f32.mrf.mxu0
    %v442 = vadd.f32 0.0, %v441
    %443 = vmatmul.f32.gmra.mxu0 %v355
    %v444 = vpop.f32.mrf.mxu0
    %v445 = vadd.f32 0.0, %v444
    %446 = vmatmul.f32.gmra.mxu0 %v356
    %v447 = vpop.f32.mrf.mxu0
    %v448 = vadd.f32 0.0, %v447
    %449 = vmatmul.f32.gmra.mxu0 %v357
    %v450 = vpop.f32.mrf.mxu0
    %v451 = vadd.f32 0.0, %v450
    %452 = vmatmul.f32.gmra.mxu0 %v358
    %v453 = vpop.f32.mrf.mxu0
    %v454 = vadd.f32 0.0, %v453
    %455 = vmatmul.f32.gmra.mxu0 %v359
    %v456 = vpop.f32.mrf.mxu0
    %v457 = vadd.f32 0.0, %v456
    %458 = vmatmul.f32.gmra.mxu0 %v360
    %v459 = vpop.f32.mrf.mxu0
    %v460 = vadd.f32 0.0, %v459
    %461 = vmatmul.f32.gmra.mxu0 %v361
    %v462 = vpop.f32.mrf.mxu0
    %v463 = vadd.f32 0.0, %v462
    %464 = vmatmul.f32.gmra.mxu0 %v362
    %v465 = vpop.f32.mrf.mxu0
    %v466 = vadd.f32 0.0, %v465
    %467 = vmatmul.f32.gmra.mxu0 %v363
    %v468 = vpop.f32.mrf.mxu0
    %v469 = vadd.f32 0.0, %v468
    %470 = vmatmul.f32.gmra.mxu0 %v364
    %v471 = vpop.f32.mrf.mxu0
    %v472 = vadd.f32 0.0, %v471
    %473 = vmatmul.f32.gmra.mxu0 %v365
    %v474 = vpop.f32.mrf.mxu0
    %v475 = vadd.f32 0.0, %v474
    %476 = vmatmul.f32.gmra.mxu0 %v366
    %v477 = vpop.f32.mrf.mxu0
    %v478 = vadd.f32 0.0, %v477
    %479 = vmatmul.f32.gmra.mxu0 %v367
    %v480 = vpop.f32.mrf.mxu0
    %v481 = vadd.f32 0.0, %v480
    %482 = vmatmul.f32.gmra.mxu0 %v368
    %v483 = vpop.f32.mrf.mxu0
    %v484 = vadd.f32 0.0, %v483
    %485 = vmatmul.f32.gmra.mxu0 %v369
    %v486 = vpop.f32.mrf.mxu0
    %v487 = vadd.f32 0.0, %v486
    %488 = vmatmul.f32.gmra.mxu0 %v370
    %v489 = vpop.f32.mrf.mxu0
    %v490 = vadd.f32 0.0, %v489
    %491 = vmatmul.f32.gmra.mxu0 %v371
    %v492 = vpop.f32.mrf.mxu0
    %v493 = vadd.f32 0.0, %v492
    %494 = vmatmul.f32.gmra.mxu0 %v372
    %v495 = vpop.f32.mrf.mxu0
    %v496 = vadd.f32 0.0, %v495
    %497 = vmatmul.f32.gmra.mxu0 %v373
    %v498 = vpop.f32.mrf.mxu0
    %v499 = vadd.f32 0.0, %v498
    %500 = vmatmul.f32.gmra.mxu0 %v374
    %v501 = vpop.f32.mrf.mxu0
    %v502 = vadd.f32 0.0, %v501
    %503 = vmatmul.f32.gmra.mxu0 %v375
    %v504 = vpop.f32.mrf.mxu0
    %v505 = vadd.f32 0.0, %v504
    %506 = vmatmul.f32.gmra.mxu0 %v376
    %v507 = vpop.f32.mrf.mxu0
    %v508 = vadd.f32 0.0, %v507
    %509 = vmatmul.f32.gmra.mxu0 %v377
    %v510 = vpop.f32.mrf.mxu0
    %v511 = vadd.f32 0.0, %v510
    %512 = vmatmul.f32.gmra.mxu0 %v378
    %v513 = vpop.f32.mrf.mxu0
    %v514 = vadd.f32 0.0, %v513
    %515 = vmatmul.f32.gmra.mxu0 %v379
    %v516 = vpop.f32.mrf.mxu0
    %v517 = vadd.f32 0.0, %v516
    %518 = vmatmul.f32.gmra.mxu0 %v380
    %v519 = vpop.f32.mrf.mxu0
    %v520 = vadd.f32 0.0, %v519
    %521 = vmatmul.f32.gmra.mxu0 %v381
    %v522 = vpop.f32.mrf.mxu0
    %v523 = vadd.f32 0.0, %v522
    %524 = vmatmul.f32.gmra.mxu0 %v382
    %v525 = vpop.f32.mrf.mxu0
    %v526 = vadd.f32 0.0, %v525
    %527 = vmatmul.f32.gmra.mxu0 %v383
    %v528 = vpop.f32.mrf.mxu0
    %v529 = vadd.f32 0.0, %v528
    %530 = vmatmul.f32.gmra.mxu0 %v384
    %v531 = vpop.f32.mrf.mxu0
    %v532 = vadd.f32 0.0, %v531
    %533 = vmatmul.f32.gmra.mxu0 %v385
    %v534 = vpop.f32.mrf.mxu0
    %v535 = vadd.f32 0.0, %v534
    %536 = vmatmul.f32.gmra.mxu0 %v386
    %v537 = vpop.f32.mrf.mxu0
    %v538 = vadd.f32 0.0, %v537
    %539 = vmatmul.f32.gmra.mxu0 %v387
    %v540 = vpop.f32.mrf.mxu0
    %v541 = vadd.f32 0.0, %v540
    %542 = vmatmul.f32.gmra.mxu0 %v388
    %v543 = vpop.f32.mrf.mxu0
    %v544 = vadd.f32 0.0, %v543
    %545 = vmatmul.f32.gmra.mxu0 %v389
    %v546 = vpop.f32.mrf.mxu0
    %v547 = vadd.f32 0.0, %v546
    %548 = vmatmul.f32.gmra.mxu0 %v390
    %v549 = vpop.f32.mrf.mxu0
    %v550 = vadd.f32 0.0, %v549
    %551 = vmatmul.f32.gmra.mxu0 %v391
    %v552 = vpop.f32.mrf.mxu0
    %v553 = vadd.f32 0.0, %v552
    %554 = vmatmul.f32.gmra.mxu0 %v392
    %v555 = vpop.f32.mrf.mxu0
    %v556 = vadd.f32 0.0, %v555
    %557 = vmatmul.f32.gmra.mxu0 %v393
    %v558 = vpop.f32.mrf.mxu0
    %v559 = vadd.f32 0.0, %v558
    %560 = vmatmul.f32.gmra.mxu0 %v394
    %v561 = vpop.f32.mrf.mxu0
    %v562 = vadd.f32 0.0, %v561
    %563 = vmatmul.f32.gmra.mxu0 %v395
    %v564 = vpop.f32.mrf.mxu0
    %v565 = vadd.f32 0.0, %v564
    %566 = vmatmul.f32.gmra.mxu0 %v396
    %v567 = vpop.f32.mrf.mxu0
    %v568 = vadd.f32 0.0, %v567
    %569 = vmatmul.f32.gmra.mxu0 %v397
    %v570 = vpop.f32.mrf.mxu0
    %v571 = vadd.f32 0.0, %v570
    %572 = vmatmul.f32.gmra.mxu0 %v398
    %v573 = vpop.f32.mrf.mxu0
    %v574 = vadd.f32 0.0, %v573
    %575 = vmatmul.f32.gmra.mxu0 %v399
    %v576 = vpop.f32.mrf.mxu0
    %v577 = vadd.f32 0.0, %v576
    %578 = vmatmul.f32.gmra.mxu0 %v400
    %v579 = vpop.f32.mrf.mxu0
    %v580 = vadd.f32 0.0, %v579
    %581 = vmatmul.f32.gmra.mxu0 %v401
    %v582 = vpop.f32.mrf.mxu0
    %v583 = vadd.f32 0.0, %v582
    %584 = vmatmul.f32.gmra.mxu0 %v402
    %v585 = vpop.f32.mrf.mxu0
    %v586 = vadd.f32 0.0, %v585
    %587 = vmatmul.f32.gmra.mxu0 %v403
    %v588 = vpop.f32.mrf.mxu0
    %v589 = vadd.f32 0.0, %v588
    %590 = vmatmul.f32.gmra.mxu0 %v404
    %v591 = vpop.f32.mrf.mxu0
    %v592 = vadd.f32 0.0, %v591
    %593 = vmatmul.f32.gmra.mxu0 %v405
    %v594 = vpop.f32.mrf.mxu0
    %v595 = vadd.f32 0.0, %v594
    %596 = vmatmul.f32.gmra.mxu0 %v406
    %v597 = vpop.f32.mrf.mxu0
    %v598 = vadd.f32 0.0, %v597
    %599 = vmatmul.f32.gmra.mxu0 %v407
    %v600 = vpop.f32.mrf.mxu0
    %v601 = vadd.f32 0.0, %v600
    %602 = vmatmul.f32.gmra.mxu0 %v408
    %v603 = vpop.f32.mrf.mxu0
    %v604 = vadd.f32 0.0, %v603
    %605 = vmatmul.f32.gmra.mxu0 %v409
    %v606 = vpop.f32.mrf.mxu0
    %v607 = vadd.f32 0.0, %v606
    %608 = vmatmul.f32.gmra.mxu0 %v410
    %v609 = vpop.f32.mrf.mxu0
    %v610 = vadd.f32 0.0, %v609
    %611 = vmatmul.f32.gmra.mxu0 %v411
    %v612 = vpop.f32.mrf.mxu0
    %v613 = vadd.f32 0.0, %v612
    %614 = vmatmul.f32.gmra.mxu0 %v412
    %v615 = vpop.f32.mrf.mxu0
    %v616 = vadd.f32 0.0, %v615
    %617 = vmatmul.f32.gmra.mxu0 %v413
    %v618 = vpop.f32.mrf.mxu0
    %v619 = vadd.f32 0.0, %v618
    %620 = vmatmul.f32.gmra.mxu0 %v414
    %v621 = vpop.f32.mrf.mxu0
    %v622 = vadd.f32 0.0, %v621
    %623 = vdwg.mxu0
    %vm624 = vcmask 523264
    %v625 = vsel %vm624, %v433, -inf
    %626 = vmax.xlane.f32.xlu0 %v625
    %v627 = vpop.xlane.xlu0 %626
    %v628 = vsel %vm624, %v436, -inf
    %629 = vmax.xlane.f32.xlu0 %v628
    %v630 = vpop.xlane.xlu0 %629
    %v631 = vsel %vm624, %v439, -inf
    %632 = vmax.xlane.f32.xlu0 %v631
    %v633 = vpop.xlane.xlu0 %632
    %v634 = vsel %vm624, %v442, -inf
    %635 = vmax.xlane.f32.xlu0 %v634
    %v636 = vpop.xlane.xlu0 %635
    %v637 = vsel %vm624, %v445, -inf
    %638 = vmax.xlane.f32.xlu0 %v637
    %v639 = vpop.xlane.xlu0 %638
    %v640 = vsel %vm624, %v448, -inf
    %641 = vmax.xlane.f32.xlu0 %v640
    %v642 = vpop.xlane.xlu0 %641
    %v643 = vsel %vm624, %v451, -inf
    %644 = vmax.xlane.f32.xlu0 %v643
    %v645 = vpop.xlane.xlu0 %644
    %v646 = vsel %vm624, %v454, -inf
    %647 = vmax.xlane.f32.xlu0 %v646
    %v648 = vpop.xlane.xlu0 %647
    %v649 = vsel %vm624, %v457, -inf
    %650 = vmax.xlane.f32.xlu0 %v649
    %v651 = vpop.xlane.xlu0 %650
    %v652 = vsel %vm624, %v460, -inf
    %653 = vmax.xlane.f32.xlu0 %v652
    %v654 = vpop.xlane.xlu0 %653
    %v655 = vsel %vm624, %v463, -inf
    %656 = vmax.xlane.f32.xlu0 %v655
    %v657 = vpop.xlane.xlu0 %656
    %v658 = vsel %vm624, %v466, -inf
    %659 = vmax.xlane.f32.xlu0 %v658
    %v660 = vpop.xlane.xlu0 %659
    %v661 = vsel %vm624, %v469, -inf
    %662 = vmax.xlane.f32.xlu0 %v661
    %v663 = vpop.xlane.xlu0 %662
    %v664 = vsel %vm624, %v472, -inf
    %665 = vmax.xlane.f32.xlu0 %v664
    %v666 = vpop.xlane.xlu0 %665
    %v667 = vsel %vm624, %v475, -inf
    %668 = vmax.xlane.f32.xlu0 %v667
    %v669 = vpop.xlane.xlu0 %668
    %v670 = vsel %vm624, %v478, -inf
    %671 = vmax.xlane.f32.xlu0 %v670
    %v672 = vpop.xlane.xlu0 %671
    %v673 = vsel %vm624, %v481, -inf
    %674 = vmax.xlane.f32.xlu0 %v673
    %v675 = vpop.xlane.xlu0 %674
    %v676 = vsel %vm624, %v484, -inf
    %677 = vmax.xlane.f32.xlu0 %v676
    %v678 = vpop.xlane.xlu0 %677
    %v679 = vsel %vm624, %v487, -inf
    %680 = vmax.xlane.f32.xlu0 %v679
    %v681 = vpop.xlane.xlu0 %680
    %v682 = vsel %vm624, %v490, -inf
    %683 = vmax.xlane.f32.xlu0 %v682
    %v684 = vpop.xlane.xlu0 %683
    %v685 = vsel %vm624, %v493, -inf
    %686 = vmax.xlane.f32.xlu0 %v685
    %v687 = vpop.xlane.xlu0 %686
    %v688 = vsel %vm624, %v496, -inf
    %689 = vmax.xlane.f32.xlu0 %v688
    %v690 = vpop.xlane.xlu0 %689
    %v691 = vsel %vm624, %v499, -inf
    %692 = vmax.xlane.f32.xlu0 %v691
    %v693 = vpop.xlane.xlu0 %692
    %v694 = vsel %vm624, %v502, -inf
    %695 = vmax.xlane.f32.xlu0 %v694
    %v696 = vpop.xlane.xlu0 %695
    %v697 = vsel %vm624, %v505, -inf
    %698 = vmax.xlane.f32.xlu0 %v697
    %v699 = vpop.xlane.xlu0 %698
    %v700 = vsel %vm624, %v508, -inf
    %701 = vmax.xlane.f32.xlu0 %v700
    %v702 = vpop.xlane.xlu0 %701
    %v703 = vsel %vm624, %v511, -inf
    %704 = vmax.xlane.f32.xlu0 %v703
    %v705 = vpop.xlane.xlu0 %704
    %v706 = vsel %vm624, %v514, -inf
    %707 = vmax.xlane.f32.xlu0 %v706
    %v708 = vpop.xlane.xlu0 %707
    %v709 = vsel %vm624, %v517, -inf
    %710 = vmax.xlane.f32.xlu0 %v709
    %v711 = vpop.xlane.xlu0 %710
    %v712 = vsel %vm624, %v520, -inf
    %713 = vmax.xlane.f32.xlu0 %v712
    %v714 = vpop.xlane.xlu0 %713
    %v715 = vsel %vm624, %v523, -inf
    %716 = vmax.xlane.f32.xlu0 %v715
    %v717 = vpop.xlane.xlu0 %716
    %v718 = vsel %vm624, %v526, -inf
    %719 = vmax.xlane.f32.xlu0 %v718
    %v720 = vpop.xlane.xlu0 %719
    %v721 = vsel %vm624, %v529, -inf
    %722 = vmax.xlane.f32.xlu0 %v721
    %v723 = vpop.xlane.xlu0 %722
    %v724 = vsel %vm624, %v532, -inf
    %725 = vmax.xlane.f32.xlu0 %v724
    %v726 = vpop.xlane.xlu0 %725
    %v727 = vsel %vm624, %v535, -inf
    %728 = vmax.xlane.f32.xlu0 %v727
    %v729 = vpop.xlane.xlu0 %728
    %v730 = vsel %vm624, %v538, -inf
    %731 = vmax.xlane.f32.xlu0 %v730
    %v732 = vpop.xlane.xlu0 %731
    %v733 = vsel %vm624, %v541, -inf
    %734 = vmax.xlane.f32.xlu0 %v733
    %v735 = vpop.xlane.xlu0 %734
    %v736 = vsel %vm624, %v544, -inf
    %737 = vmax.xlane.f32.xlu0 %v736
    %v738 = vpop.xlane.xlu0 %737
    %v739 = vsel %vm624, %v547, -inf
    %740 = vmax.xlane.f32.xlu0 %v739
    %v741 = vpop.xlane.xlu0 %740
    %v742 = vsel %vm624, %v550, -inf
    %743 = vmax.xlane.f32.xlu0 %v742
    %v744 = vpop.xlane.xlu0 %743
    %v745 = vsel %vm624, %v553, -inf
    %746 = vmax.xlane.f32.xlu0 %v745
    %v747 = vpop.xlane.xlu0 %746
    %v748 = vsel %vm624, %v556, -inf
    %749 = vmax.xlane.f32.xlu0 %v748
    %v750 = vpop.xlane.xlu0 %749
    %v751 = vsel %vm624, %v559, -inf
    %752 = vmax.xlane.f32.xlu0 %v751
    %v753 = vpop.xlane.xlu0 %752
    %v754 = vsel %vm624, %v562, -inf
    %755 = vmax.xlane.f32.xlu0 %v754
    %v756 = vpop.xlane.xlu0 %755
    %v757 = vsel %vm624, %v565, -inf
    %758 = vmax.xlane.f32.xlu0 %v757
    %v759 = vpop.xlane.xlu0 %758
    %v760 = vsel %vm624, %v568, -inf
    %761 = vmax.xlane.f32.xlu0 %v760
    %v762 = vpop.xlane.xlu0 %761
    %v763 = vsel %vm624, %v571, -inf
    %764 = vmax.xlane.f32.xlu0 %v763
    %v765 = vpop.xlane.xlu0 %764
    %v766 = vsel %vm624, %v574, -inf
    %767 = vmax.xlane.f32.xlu0 %v766
    %v768 = vpop.xlane.xlu0 %767
    %v769 = vsel %vm624, %v577, -inf
    %770 = vmax.xlane.f32.xlu0 %v769
    %v771 = vpop.xlane.xlu0 %770
    %v772 = vsel %vm624, %v580, -inf
    %773 = vmax.xlane.f32.xlu0 %v772
    %v774 = vpop.xlane.xlu0 %773
    %v775 = vsel %vm624, %v583, -inf
    %776 = vmax.xlane.f32.xlu0 %v775
    %v777 = vpop.xlane.xlu0 %776
    %v778 = vsel %vm624, %v586, -inf
    %779 = vmax.xlane.f32.xlu0 %v778
    %v780 = vpop.xlane.xlu0 %779
    %v781 = vsel %vm624, %v589, -inf
    %782 = vmax.xlane.f32.xlu0 %v781
    %v783 = vpop.xlane.xlu0 %782
    %v784 = vsel %vm624, %v592, -inf
    %785 = vmax.xlane.f32.xlu0 %v784
    %v786 = vpop.xlane.xlu0 %785
    %v787 = vsel %vm624, %v595, -inf
    %788 = vmax.xlane.f32.xlu0 %v787
    %v789 = vpop.xlane.xlu0 %788
    %v790 = vsel %vm624, %v598, -inf
    %791 = vmax.xlane.f32.xlu0 %v790
    %v792 = vpop.xlane.xlu0 %791
    %v793 = vsel %vm624, %v601, -inf
    %794 = vmax.xlane.f32.xlu0 %v793
    %v795 = vpop.xlane.xlu0 %794
    %v796 = vsel %vm624, %v604, -inf
    %797 = vmax.xlane.f32.xlu0 %v796
    %v798 = vpop.xlane.xlu0 %797
    %v799 = vsel %vm624, %v607, -inf
    %800 = vmax.xlane.f32.xlu0 %v799
    %v801 = vpop.xlane.xlu0 %800
    %v802 = vsel %vm624, %v610, -inf
    %803 = vmax.xlane.f32.xlu0 %v802
    %v804 = vpop.xlane.xlu0 %803
    %v805 = vsel %vm624, %v613, -inf
    %806 = vmax.xlane.f32.xlu0 %v805
    %v807 = vpop.xlane.xlu0 %806
    %v808 = vsel %vm624, %v616, -inf
    %809 = vmax.xlane.f32.xlu0 %v808
    %v810 = vpop.xlane.xlu0 %809
    %v811 = vsel %vm624, %v619, -inf
    %812 = vmax.xlane.f32.xlu0 %v811
    %v813 = vpop.xlane.xlu0 %812
    %v814 = vsel %vm624, %v622, -inf
    %815 = vmax.xlane.f32.xlu0 %v814
    %v816 = vpop.xlane.xlu0 %815
    %v817 = vsub.f32 %v433, %v627
    %v818 = vsub.f32 %v436, %v630
    %v819 = vsub.f32 %v439, %v633
    %v820 = vsub.f32 %v442, %v636
    %v821 = vsub.f32 %v445, %v639
    %v822 = vsub.f32 %v448, %v642
    %v823 = vsub.f32 %v451, %v645
    %v824 = vsub.f32 %v454, %v648
    %v825 = vsub.f32 %v457, %v651
    %v826 = vsub.f32 %v460, %v654
    %v827 = vsub.f32 %v463, %v657
    %v828 = vsub.f32 %v466, %v660
    %v829 = vsub.f32 %v469, %v663
    %v830 = vsub.f32 %v472, %v666
    %v831 = vsub.f32 %v475, %v669
    %v832 = vsub.f32 %v478, %v672
    %v833 = vsub.f32 %v481, %v675
    %v834 = vsub.f32 %v484, %v678
    %v835 = vsub.f32 %v487, %v681
    %v836 = vsub.f32 %v490, %v684
    %v837 = vsub.f32 %v493, %v687
    %v838 = vsub.f32 %v496, %v690
    %v839 = vsub.f32 %v499, %v693
    %v840 = vsub.f32 %v502, %v696
    %v841 = vsub.f32 %v505, %v699
    %v842 = vsub.f32 %v508, %v702
    %v843 = vsub.f32 %v511, %v705
    %v844 = vsub.f32 %v514, %v708
    %v845 = vsub.f32 %v517, %v711
    %v846 = vsub.f32 %v520, %v714
    %v847 = vsub.f32 %v523, %v717
    %v848 = vsub.f32 %v526, %v720
    %v849 = vsub.f32 %v529, %v723
    %v850 = vsub.f32 %v532, %v726
    %v851 = vsub.f32 %v535, %v729
    %v852 = vsub.f32 %v538, %v732
    %v853 = vsub.f32 %v541, %v735
    %v854 = vsub.f32 %v544, %v738
    %v855 = vsub.f32 %v547, %v741
    %v856 = vsub.f32 %v550, %v744
    %v857 = vsub.f32 %v553, %v747
    %v858 = vsub.f32 %v556, %v750
    %v859 = vsub.f32 %v559, %v753
    %v860 = vsub.f32 %v562, %v756
    %v861 = vsub.f32 %v565, %v759
    %v862 = vsub.f32 %v568, %v762
    %v863 = vsub.f32 %v571, %v765
    %v864 = vsub.f32 %v574, %v768
    %v865 = vsub.f32 %v577, %v771
    %v866 = vsub.f32 %v580, %v774
    %v867 = vsub.f32 %v583, %v777
    %v868 = vsub.f32 %v586, %v780
    %v869 = vsub.f32 %v589, %v783
    %v870 = vsub.f32 %v592, %v786
    %v871 = vsub.f32 %v595, %v789
    %v872 = vsub.f32 %v598, %v792
    %v873 = vsub.f32 %v601, %v795
    %v874 = vsub.f32 %v604, %v798
    %v875 = vsub.f32 %v607, %v801
    %v876 = vsub.f32 %v610, %v804
    %v877 = vsub.f32 %v613, %v807
    %v878 = vsub.f32 %v616, %v810
    %v879 = vsub.f32 %v619, %v813
    %v880 = vsub.f32 %v622, %v816
    %v881 = vmul.f32 %v817, 1.442695
    %v882 = vpow.pop %v881
    %v883 = vmul.f32 %v818, 1.442695
    %v884 = vpow.pop %v883
    %v885 = vmul.f32 %v819, 1.442695
    %v886 = vpow.pop %v885
    %v887 = vmul.f32 %v820, 1.442695
    %v888 = vpow.pop %v887
    %v889 = vmul.f32 %v821, 1.442695
    %v890 = vpow.pop %v889
    %v891 = vmul.f32 %v822, 1.442695
    %v892 = vpow.pop %v891
    %v893 = vmul.f32 %v823, 1.442695
    %v894 = vpow.pop %v893
    %v895 = vmul.f32 %v824, 1.442695
    %v896 = vpow.pop %v895
    %v897 = vmul.f32 %v825, 1.442695
    %v898 = vpow.pop %v897
    %v899 = vmul.f32 %v826, 1.442695
    %v900 = vpow.pop %v899
    %v901 = vmul.f32 %v827, 1.442695
    %v902 = vpow.pop %v901
    %v903 = vmul.f32 %v828, 1.442695
    %v904 = vpow.pop %v903
    %v905 = vmul.f32 %v829, 1.442695
    %v906 = vpow.pop %v905
    %v907 = vmul.f32 %v830, 1.442695
    %v908 = vpow.pop %v907
    %v909 = vmul.f32 %v831, 1.442695
    %v910 = vpow.pop %v909
    %v911 = vmul.f32 %v832, 1.442695
    %v912 = vpow.pop %v911
    %v913 = vmul.f32 %v833, 1.442695
    %v914 = vpow.pop %v913
    %v915 = vmul.f32 %v834, 1.442695
    %v916 = vpow.pop %v915
    %v917 = vmul.f32 %v835, 1.442695
    %v918 = vpow.pop %v917
    %v919 = vmul.f32 %v836, 1.442695
    %v920 = vpow.pop %v919
    %v921 = vmul.f32 %v837, 1.442695
    %v922 = vpow.pop %v921
    %v923 = vmul.f32 %v838, 1.442695
    %v924 = vpow.pop %v923
    %v925 = vmul.f32 %v839, 1.442695
    %v926 = vpow.pop %v925
    %v927 = vmul.f32 %v840, 1.442695
    %v928 = vpow.pop %v927
    %v929 = vmul.f32 %v841, 1.442695
    %v930 = vpow.pop %v929
    %v931 = vmul.f32 %v842, 1.442695
    %v932 = vpow.pop %v931
    %v933 = vmul.f32 %v843, 1.442695
    %v934 = vpow.pop %v933
    %v935 = vmul.f32 %v844, 1.442695
    %v936 = vpow.pop %v935
    %v937 = vmul.f32 %v845, 1.442695
    %v938 = vpow.pop %v937
    %v939 = vmul.f32 %v846, 1.442695
    %v940 = vpow.pop %v939
    %v941 = vmul.f32 %v847, 1.442695
    %v942 = vpow.pop %v941
    %v943 = vmul.f32 %v848, 1.442695
    %v944 = vpow.pop %v943
    %v945 = vmul.f32 %v849, 1.442695
    %v946 = vpow.pop %v945
    %v947 = vmul.f32 %v850, 1.442695
    %v948 = vpow.pop %v947
    %v949 = vmul.f32 %v851, 1.442695
    %v950 = vpow.pop %v949
    %v951 = vmul.f32 %v852, 1.442695
    %v952 = vpow.pop %v951
    %v953 = vmul.f32 %v853, 1.442695
    %v954 = vpow.pop %v953
    %v955 = vmul.f32 %v854, 1.442695
    %v956 = vpow.pop %v955
    %v957 = vmul.f32 %v855, 1.442695
    %v958 = vpow.pop %v957
    %v959 = vmul.f32 %v856, 1.442695
    %v960 = vpow.pop %v959
    %v961 = vmul.f32 %v857, 1.442695
    %v962 = vpow.pop %v961
    %v963 = vmul.f32 %v858, 1.442695
    %v964 = vpow.pop %v963
    %v965 = vmul.f32 %v859, 1.442695
    %v966 = vpow.pop %v965
    %v967 = vmul.f32 %v860, 1.442695
    %v968 = vpow.pop %v967
    %v969 = vmul.f32 %v861, 1.442695
    %v970 = vpow.pop %v969
    %v971 = vmul.f32 %v862, 1.442695
    %v972 = vpow.pop %v971
    %v973 = vmul.f32 %v863, 1.442695
    %v974 = vpow.pop %v973
    %v975 = vmul.f32 %v864, 1.442695
    %v976 = vpow.pop %v975
    %v977 = vmul.f32 %v865, 1.442695
    %v978 = vpow.pop %v977
    %v979 = vmul.f32 %v866, 1.442695
    %v980 = vpow.pop %v979
    %v981 = vmul.f32 %v867, 1.442695
    %v982 = vpow.pop %v981
    %v983 = vmul.f32 %v868, 1.442695
    %v984 = vpow.pop %v983
    %v985 = vmul.f32 %v869, 1.442695
    %v986 = vpow.pop %v985
    %v987 = vmul.f32 %v870, 1.442695
    %v988 = vpow.pop %v987
    %v989 = vmul.f32 %v871, 1.442695
    %v990 = vpow.pop %v989
    %v991 = vmul.f32 %v872, 1.442695
    %v992 = vpow.pop %v991
    %v993 = vmul.f32 %v873, 1.442695
    %v994 = vpow.pop %v993
    %v995 = vmul.f32 %v874, 1.442695
    %v996 = vpow.pop %v995
    %v997 = vmul.f32 %v875, 1.442695
    %v998 = vpow.pop %v997
    %v999 = vmul.f32 %v876, 1.442695
    %v1000 = vpow.pop %v999
    %v1001 = vmul.f32 %v877, 1.442695
    %v1002 = vpow.pop %v1001
    %v1003 = vmul.f32 %v878, 1.442695
    %v1004 = vpow.pop %v1003
    %v1005 = vmul.f32 %v879, 1.442695
    %v1006 = vpow.pop %v1005
    %v1007 = vmul.f32 %v880, 1.442695
    %v1008 = vpow.pop %v1007
    %v1009 = vlaneseq
    %v1010 = vshrl.u32 %v1009, 7
    %v1011 = vadd.s32 %v1010, 8
    %v1012 = vadd.s32 %v1010, 16
    %v1013 = vadd.s32 %v1010, 24
    %v1014 = vadd.s32 %v1010, 32
    %v1015 = vadd.s32 %v1010, 40
    %v1016 = vadd.s32 %v1010, 48
    %v1017 = vadd.s32 %v1010, 56
    %v1018 = vadd.s32 %v1010, 64
    %v1019 = vadd.s32 %v1010, 72
    %v1020 = vadd.s32 %v1010, 80
    %v1021 = vadd.s32 %v1010, 88
    %v1022 = vadd.s32 %v1010, 96
    %v1023 = vadd.s32 %v1010, 104
    %v1024 = vadd.s32 %v1010, 112
    %v1025 = vadd.s32 %v1010, 120
    %v1026 = vadd.s32 %v1010, 128
    %v1027 = vadd.s32 %v1010, 136
    %v1028 = vadd.s32 %v1010, 144
    %v1029 = vadd.s32 %v1010, 152
    %v1030 = vadd.s32 %v1010, 160
    %v1031 = vadd.s32 %v1010, 168
    %v1032 = vadd.s32 %v1010, 176
    %v1033 = vadd.s32 %v1010, 184
    %v1034 = vadd.s32 %v1010, 192
    %v1035 = vadd.s32 %v1010, 200
    %v1036 = vadd.s32 %v1010, 208
    %v1037 = vadd.s32 %v1010, 216
    %v1038 = vadd.s32 %v1010, 224
    %v1039 = vadd.s32 %v1010, 232
    %v1040 = vadd.s32 %v1010, 240
    %v1041 = vadd.s32 %v1010, 248
    %v1042 = vadd.s32 %v1010, 256
    %v1043 = vadd.s32 %v1010, 264
    %v1044 = vadd.s32 %v1010, 272
    %v1045 = vadd.s32 %v1010, 280
    %v1046 = vadd.s32 %v1010, 288
    %v1047 = vadd.s32 %v1010, 296
    %v1048 = vadd.s32 %v1010, 304
    %v1049 = vadd.s32 %v1010, 312
    %v1050 = vadd.s32 %v1010, 320
    %v1051 = vadd.s32 %v1010, 328
    %v1052 = vadd.s32 %v1010, 336
    %v1053 = vadd.s32 %v1010, 344
    %v1054 = vadd.s32 %v1010, 352
    %v1055 = vadd.s32 %v1010, 360
    %v1056 = vadd.s32 %v1010, 368
    %v1057 = vadd.s32 %v1010, 376
    %v1058 = vadd.s32 %v1010, 384
    %v1059 = vadd.s32 %v1010, 392
    %v1060 = vadd.s32 %v1010, 400
    %v1061 = vadd.s32 %v1010, 408
    %v1062 = vadd.s32 %v1010, 416
    %v1063 = vadd.s32 %v1010, 424
    %v1064 = vadd.s32 %v1010, 432
    %v1065 = vadd.s32 %v1010, 440
    %v1066 = vadd.s32 %v1010, 448
    %v1067 = vadd.s32 %v1010, 456
    %v1068 = vadd.s32 %v1010, 464
    %v1069 = vadd.s32 %v1010, 472
    %v1070 = vadd.s32 %v1010, 480
    %v1071 = vadd.s32 %v1010, 488
    %v1072 = vadd.s32 %v1010, 496
    %v1073 = vadd.s32 %v1010, 504
    %v1074 = vshra.s32 %v1010, 5
    %v1075 = vshra.s32 %v1011, 5
    %v1076 = vshra.s32 %v1012, 5
    %v1077 = vshra.s32 %v1013, 5
    %v1078 = vshra.s32 %v1014, 5
    %v1079 = vshra.s32 %v1015, 5
    %v1080 = vshra.s32 %v1016, 5
    %v1081 = vshra.s32 %v1017, 5
    %v1082 = vshra.s32 %v1018, 5
    %v1083 = vshra.s32 %v1019, 5
    %v1084 = vshra.s32 %v1020, 5
    %v1085 = vshra.s32 %v1021, 5
    %v1086 = vshra.s32 %v1022, 5
    %v1087 = vshra.s32 %v1023, 5
    %v1088 = vshra.s32 %v1024, 5
    %v1089 = vshra.s32 %v1025, 5
    %v1090 = vshra.s32 %v1026, 5
    %v1091 = vshra.s32 %v1027, 5
    %v1092 = vshra.s32 %v1028, 5
    %v1093 = vshra.s32 %v1029, 5
    %v1094 = vshra.s32 %v1030, 5
    %v1095 = vshra.s32 %v1031, 5
    %v1096 = vshra.s32 %v1032, 5
    %v1097 = vshra.s32 %v1033, 5
    %v1098 = vshra.s32 %v1034, 5
    %v1099 = vshra.s32 %v1035, 5
    %v1100 = vshra.s32 %v1036, 5
    %v1101 = vshra.s32 %v1037, 5
    %v1102 = vshra.s32 %v1038, 5
    %v1103 = vshra.s32 %v1039, 5
    %v1104 = vshra.s32 %v1040, 5
    %v1105 = vshra.s32 %v1041, 5
    %v1106 = vshra.s32 %v1042, 5
    %v1107 = vshra.s32 %v1043, 5
    %v1108 = vshra.s32 %v1044, 5
    %v1109 = vshra.s32 %v1045, 5
    %v1110 = vshra.s32 %v1046, 5
    %v1111 = vshra.s32 %v1047, 5
    %v1112 = vshra.s32 %v1048, 5
    %v1113 = vshra.s32 %v1049, 5
    %v1114 = vshra.s32 %v1050, 5
    %v1115 = vshra.s32 %v1051, 5
    %v1116 = vshra.s32 %v1052, 5
    %v1117 = vshra.s32 %v1053, 5
    %v1118 = vshra.s32 %v1054, 5
    %v1119 = vshra.s32 %v1055, 5
    %v1120 = vshra.s32 %v1056, 5
    %v1121 = vshra.s32 %v1057, 5
    %v1122 = vshra.s32 %v1058, 5
    %v1123 = vshra.s32 %v1059, 5
    %v1124 = vshra.s32 %v1060, 5
    %v1125 = vshra.s32 %v1061, 5
    %v1126 = vshra.s32 %v1062, 5
    %v1127 = vshra.s32 %v1063, 5
    %v1128 = vshra.s32 %v1064, 5
    %v1129 = vshra.s32 %v1065, 5
    %v1130 = vshra.s32 %v1066, 5
    %v1131 = vshra.s32 %v1067, 5
    %v1132 = vshra.s32 %v1068, 5
    %v1133 = vshra.s32 %v1069, 5
    %v1134 = vshra.s32 %v1070, 5
    %v1135 = vshra.s32 %v1071, 5
    %v1136 = vshra.s32 %v1072, 5
    %v1137 = vshra.s32 %v1073, 5
    %v1138 = vand.u32 %v1074, 1
    %v1139 = vand.u32 %v1075, 1
    %v1140 = vand.u32 %v1076, 1
    %v1141 = vand.u32 %v1077, 1
    %v1142 = vand.u32 %v1078, 1
    %v1143 = vand.u32 %v1079, 1
    %v1144 = vand.u32 %v1080, 1
    %v1145 = vand.u32 %v1081, 1
    %v1146 = vand.u32 %v1082, 1
    %v1147 = vand.u32 %v1083, 1
    %v1148 = vand.u32 %v1084, 1
    %v1149 = vand.u32 %v1085, 1
    %v1150 = vand.u32 %v1086, 1
    %v1151 = vand.u32 %v1087, 1
    %v1152 = vand.u32 %v1088, 1
    %v1153 = vand.u32 %v1089, 1
    %v1154 = vand.u32 %v1090, 1
    %v1155 = vand.u32 %v1091, 1
    %v1156 = vand.u32 %v1092, 1
    %v1157 = vand.u32 %v1093, 1
    %v1158 = vand.u32 %v1094, 1
    %v1159 = vand.u32 %v1095, 1
    %v1160 = vand.u32 %v1096, 1
    %v1161 = vand.u32 %v1097, 1
    %v1162 = vand.u32 %v1098, 1
    %v1163 = vand.u32 %v1099, 1
    %v1164 = vand.u32 %v1100, 1
    %v1165 = vand.u32 %v1101, 1
    %v1166 = vand.u32 %v1102, 1
    %v1167 = vand.u32 %v1103, 1
    %v1168 = vand.u32 %v1104, 1
    %v1169 = vand.u32 %v1105, 1
    %v1170 = vand.u32 %v1106, 1
    %v1171 = vand.u32 %v1107, 1
    %v1172 = vand.u32 %v1108, 1
    %v1173 = vand.u32 %v1109, 1
    %v1174 = vand.u32 %v1110, 1
    %v1175 = vand.u32 %v1111, 1
    %v1176 = vand.u32 %v1112, 1
    %v1177 = vand.u32 %v1113, 1
    %v1178 = vand.u32 %v1114, 1
    %v1179 = vand.u32 %v1115, 1
    %v1180 = vand.u32 %v1116, 1
    %v1181 = vand.u32 %v1117, 1
    %v1182 = vand.u32 %v1118, 1
    %v1183 = vand.u32 %v1119, 1
    %v1184 = vand.u32 %v1120, 1
    %v1185 = vand.u32 %v1121, 1
    %v1186 = vand.u32 %v1122, 1
    %v1187 = vand.u32 %v1123, 1
    %v1188 = vand.u32 %v1124, 1
    %v1189 = vand.u32 %v1125, 1
    %v1190 = vand.u32 %v1126, 1
    %v1191 = vand.u32 %v1127, 1
    %v1192 = vand.u32 %v1128, 1
    %v1193 = vand.u32 %v1129, 1
    %v1194 = vand.u32 %v1130, 1
    %v1195 = vand.u32 %v1131, 1
    %v1196 = vand.u32 %v1132, 1
    %v1197 = vand.u32 %v1133, 1
    %v1198 = vand.u32 %v1134, 1
    %v1199 = vand.u32 %v1135, 1
    %v1200 = vand.u32 %v1136, 1
    %v1201 = vand.u32 %v1137, 1
    %v1202 = vshra.s32 %v37, 5
    %vm1203 = vcmp.eq.s32.totalorder %v1138, %v1202
    %vm1204 = vcmp.eq.s32.totalorder %v1139, %v1202
    %vm1205 = vcmp.eq.s32.totalorder %v1140, %v1202
    %vm1206 = vcmp.eq.s32.totalorder %v1141, %v1202
    %vm1207 = vcmp.eq.s32.totalorder %v1142, %v1202
    %vm1208 = vcmp.eq.s32.totalorder %v1143, %v1202
    %vm1209 = vcmp.eq.s32.totalorder %v1144, %v1202
    %vm1210 = vcmp.eq.s32.totalorder %v1145, %v1202
    %vm1211 = vcmp.eq.s32.totalorder %v1146, %v1202
    %vm1212 = vcmp.eq.s32.totalorder %v1147, %v1202
    %vm1213 = vcmp.eq.s32.totalorder %v1148, %v1202
    %vm1214 = vcmp.eq.s32.totalorder %v1149, %v1202
    %vm1215 = vcmp.eq.s32.totalorder %v1150, %v1202
    %vm1216 = vcmp.eq.s32.totalorder %v1151, %v1202
    %vm1217 = vcmp.eq.s32.totalorder %v1152, %v1202
    %vm1218 = vcmp.eq.s32.totalorder %v1153, %v1202
    %vm1219 = vcmp.eq.s32.totalorder %v1154, %v1202
    %vm1220 = vcmp.eq.s32.totalorder %v1155, %v1202
    %vm1221 = vcmp.eq.s32.totalorder %v1156, %v1202
    %vm1222 = vcmp.eq.s32.totalorder %v1157, %v1202
    %vm1223 = vcmp.eq.s32.totalorder %v1158, %v1202
    %vm1224 = vcmp.eq.s32.totalorder %v1159, %v1202
    %vm1225 = vcmp.eq.s32.totalorder %v1160, %v1202
    %vm1226 = vcmp.eq.s32.totalorder %v1161, %v1202
    %vm1227 = vcmp.eq.s32.totalorder %v1162, %v1202
    %vm1228 = vcmp.eq.s32.totalorder %v1163, %v1202
    %vm1229 = vcmp.eq.s32.totalorder %v1164, %v1202
    %vm1230 = vcmp.eq.s32.totalorder %v1165, %v1202
    %vm1231 = vcmp.eq.s32.totalorder %v1166, %v1202
    %vm1232 = vcmp.eq.s32.totalorder %v1167, %v1202
    %vm1233 = vcmp.eq.s32.totalorder %v1168, %v1202
    %vm1234 = vcmp.eq.s32.totalorder %v1169, %v1202
    %vm1235 = vcmp.eq.s32.totalorder %v1170, %v1202
    %vm1236 = vcmp.eq.s32.totalorder %v1171, %v1202
    %vm1237 = vcmp.eq.s32.totalorder %v1172, %v1202
    %vm1238 = vcmp.eq.s32.totalorder %v1173, %v1202
    %vm1239 = vcmp.eq.s32.totalorder %v1174, %v1202
    %vm1240 = vcmp.eq.s32.totalorder %v1175, %v1202
    %vm1241 = vcmp.eq.s32.totalorder %v1176, %v1202
    %vm1242 = vcmp.eq.s32.totalorder %v1177, %v1202
    %vm1243 = vcmp.eq.s32.totalorder %v1178, %v1202
    %vm1244 = vcmp.eq.s32.totalorder %v1179, %v1202
    %vm1245 = vcmp.eq.s32.totalorder %v1180, %v1202
    %vm1246 = vcmp.eq.s32.totalorder %v1181, %v1202
    %vm1247 = vcmp.eq.s32.totalorder %v1182, %v1202
    %vm1248 = vcmp.eq.s32.totalorder %v1183, %v1202
    %vm1249 = vcmp.eq.s32.totalorder %v1184, %v1202
    %vm1250 = vcmp.eq.s32.totalorder %v1185, %v1202
    %vm1251 = vcmp.eq.s32.totalorder %v1186, %v1202
    %vm1252 = vcmp.eq.s32.totalorder %v1187, %v1202
    %vm1253 = vcmp.eq.s32.totalorder %v1188, %v1202
    %vm1254 = vcmp.eq.s32.totalorder %v1189, %v1202
    %vm1255 = vcmp.eq.s32.totalorder %v1190, %v1202
    %vm1256 = vcmp.eq.s32.totalorder %v1191, %v1202
    %vm1257 = vcmp.eq.s32.totalorder %v1192, %v1202
    %vm1258 = vcmp.eq.s32.totalorder %v1193, %v1202
    %vm1259 = vcmp.eq.s32.totalorder %v1194, %v1202
    %vm1260 = vcmp.eq.s32.totalorder %v1195, %v1202
    %vm1261 = vcmp.eq.s32.totalorder %v1196, %v1202
    %vm1262 = vcmp.eq.s32.totalorder %v1197, %v1202
    %vm1263 = vcmp.eq.s32.totalorder %v1198, %v1202
    %vm1264 = vcmp.eq.s32.totalorder %v1199, %v1202
    %vm1265 = vcmp.eq.s32.totalorder %v1200, %v1202
    %vm1266 = vcmp.eq.s32.totalorder %v1201, %v1202
    %v1267 = vsel %vm1203, %v882, 0.0
    %v1268 = vsel %vm1204, %v884, 0.0
    %v1269 = vsel %vm1205, %v886, 0.0
    %v1270 = vsel %vm1206, %v888, 0.0
    %v1271 = vsel %vm1207, %v890, 0.0
    %v1272 = vsel %vm1208, %v892, 0.0
    %v1273 = vsel %vm1209, %v894, 0.0
    %v1274 = vsel %vm1210, %v896, 0.0
    %v1275 = vsel %vm1211, %v898, 0.0
    %v1276 = vsel %vm1212, %v900, 0.0
    %v1277 = vsel %vm1213, %v902, 0.0
    %v1278 = vsel %vm1214, %v904, 0.0
    %v1279 = vsel %vm1215, %v906, 0.0
    %v1280 = vsel %vm1216, %v908, 0.0
    %v1281 = vsel %vm1217, %v910, 0.0
    %v1282 = vsel %vm1218, %v912, 0.0
    %v1283 = vsel %vm1219, %v914, 0.0
    %v1284 = vsel %vm1220, %v916, 0.0
    %v1285 = vsel %vm1221, %v918, 0.0
    %v1286 = vsel %vm1222, %v920, 0.0
    %v1287 = vsel %vm1223, %v922, 0.0
    %v1288 = vsel %vm1224, %v924, 0.0
    %v1289 = vsel %vm1225, %v926, 0.0
    %v1290 = vsel %vm1226, %v928, 0.0
    %v1291 = vsel %vm1227, %v930, 0.0
    %v1292 = vsel %vm1228, %v932, 0.0
    %v1293 = vsel %vm1229, %v934, 0.0
    %v1294 = vsel %vm1230, %v936, 0.0
    %v1295 = vsel %vm1231, %v938, 0.0
    %v1296 = vsel %vm1232, %v940, 0.0
    %v1297 = vsel %vm1233, %v942, 0.0
    %v1298 = vsel %vm1234, %v944, 0.0
    %v1299 = vsel %vm1235, %v946, 0.0
    %v1300 = vsel %vm1236, %v948, 0.0
    %v1301 = vsel %vm1237, %v950, 0.0
    %v1302 = vsel %vm1238, %v952, 0.0
    %v1303 = vsel %vm1239, %v954, 0.0
    %v1304 = vsel %vm1240, %v956, 0.0
    %v1305 = vsel %vm1241, %v958, 0.0
    %v1306 = vsel %vm1242, %v960, 0.0
    %v1307 = vsel %vm1243, %v962, 0.0
    %v1308 = vsel %vm1244, %v964, 0.0
    %v1309 = vsel %vm1245, %v966, 0.0
    %v1310 = vsel %vm1246, %v968, 0.0
    %v1311 = vsel %vm1247, %v970, 0.0
    %v1312 = vsel %vm1248, %v972, 0.0
    %v1313 = vsel %vm1249, %v974, 0.0
    %v1314 = vsel %vm1250, %v976, 0.0
    %v1315 = vsel %vm1251, %v978, 0.0
    %v1316 = vsel %vm1252, %v980, 0.0
    %v1317 = vsel %vm1253, %v982, 0.0
    %v1318 = vsel %vm1254, %v984, 0.0
    %v1319 = vsel %vm1255, %v986, 0.0
    %v1320 = vsel %vm1256, %v988, 0.0
    %v1321 = vsel %vm1257, %v990, 0.0
    %v1322 = vsel %vm1258, %v992, 0.0
    %v1323 = vsel %vm1259, %v994, 0.0
    %v1324 = vsel %vm1260, %v996, 0.0
    %v1325 = vsel %vm1261, %v998, 0.0
    %v1326 = vsel %vm1262, %v1000, 0.0
    %v1327 = vsel %vm1263, %v1002, 0.0
    %v1328 = vsel %vm1264, %v1004, 0.0
    %v1329 = vsel %vm1265, %v1006, 0.0
    %v1330 = vsel %vm1266, %v1008, 0.0
    %v1331 = vsel %vm624, %v1267, 0.0
    %1332 = vadd.xlane.f32.xlu0 %v1331
    %v1333 = vpop.xlane.xlu0 %1332
    %v1334 = vsel %vm624, %v1268, 0.0
    %1335 = vadd.xlane.f32.xlu0 %v1334
    %v1336 = vpop.xlane.xlu0 %1335
    %v1337 = vsel %vm624, %v1269, 0.0
    %1338 = vadd.xlane.f32.xlu0 %v1337
    %v1339 = vpop.xlane.xlu0 %1338
    %v1340 = vsel %vm624, %v1270, 0.0
    %1341 = vadd.xlane.f32.xlu0 %v1340
    %v1342 = vpop.xlane.xlu0 %1341
    %v1343 = vsel %vm624, %v1271, 0.0
    %1344 = vadd.xlane.f32.xlu0 %v1343
    %v1345 = vpop.xlane.xlu0 %1344
    %v1346 = vsel %vm624, %v1272, 0.0
    %1347 = vadd.xlane.f32.xlu0 %v1346
    %v1348 = vpop.xlane.xlu0 %1347
    %v1349 = vsel %vm624, %v1273, 0.0
    %1350 = vadd.xlane.f32.xlu0 %v1349
    %v1351 = vpop.xlane.xlu0 %1350
    %v1352 = vsel %vm624, %v1274, 0.0
    %1353 = vadd.xlane.f32.xlu0 %v1352
    %v1354 = vpop.xlane.xlu0 %1353
    %v1355 = vsel %vm624, %v1275, 0.0
    %1356 = vadd.xlane.f32.xlu0 %v1355
    %v1357 = vpop.xlane.xlu0 %1356
    %v1358 = vsel %vm624, %v1276, 0.0
    %1359 = vadd.xlane.f32.xlu0 %v1358
    %v1360 = vpop.xlane.xlu0 %1359
    %v1361 = vsel %vm624, %v1277, 0.0
    %1362 = vadd.xlane.f32.xlu0 %v1361
    %v1363 = vpop.xlane.xlu0 %1362
    %v1364 = vsel %vm624, %v1278, 0.0
    %1365 = vadd.xlane.f32.xlu0 %v1364
    %v1366 = vpop.xlane.xlu0 %1365
    %v1367 = vsel %vm624, %v1279, 0.0
    %1368 = vadd.xlane.f32.xlu0 %v1367
    %v1369 = vpop.xlane.xlu0 %1368
    %v1370 = vsel %vm624, %v1280, 0.0
    %1371 = vadd.xlane.f32.xlu0 %v1370
    %v1372 = vpop.xlane.xlu0 %1371
    %v1373 = vsel %vm624, %v1281, 0.0
    %1374 = vadd.xlane.f32.xlu0 %v1373
    %v1375 = vpop.xlane.xlu0 %1374
    %v1376 = vsel %vm624, %v1282, 0.0
    %1377 = vadd.xlane.f32.xlu0 %v1376
    %v1378 = vpop.xlane.xlu0 %1377
    %v1379 = vsel %vm624, %v1283, 0.0
    %1380 = vadd.xlane.f32.xlu0 %v1379
    %v1381 = vpop.xlane.xlu0 %1380
    %v1382 = vsel %vm624, %v1284, 0.0
    %1383 = vadd.xlane.f32.xlu0 %v1382
    %v1384 = vpop.xlane.xlu0 %1383
    %v1385 = vsel %vm624, %v1285, 0.0
    %1386 = vadd.xlane.f32.xlu0 %v1385
    %v1387 = vpop.xlane.xlu0 %1386
    %v1388 = vsel %vm624, %v1286, 0.0
    %1389 = vadd.xlane.f32.xlu0 %v1388
    %v1390 = vpop.xlane.xlu0 %1389
    %v1391 = vsel %vm624, %v1287, 0.0
    %1392 = vadd.xlane.f32.xlu0 %v1391
    %v1393 = vpop.xlane.xlu0 %1392
    %v1394 = vsel %vm624, %v1288, 0.0
    %1395 = vadd.xlane.f32.xlu0 %v1394
    %v1396 = vpop.xlane.xlu0 %1395
    %v1397 = vsel %vm624, %v1289, 0.0
    %1398 = vadd.xlane.f32.xlu0 %v1397
    %v1399 = vpop.xlane.xlu0 %1398
    %v1400 = vsel %vm624, %v1290, 0.0
    %1401 = vadd.xlane.f32.xlu0 %v1400
    %v1402 = vpop.xlane.xlu0 %1401
    %v1403 = vsel %vm624, %v1291, 0.0
    %1404 = vadd.xlane.f32.xlu0 %v1403
    %v1405 = vpop.xlane.xlu0 %1404
    %v1406 = vsel %vm624, %v1292, 0.0
    %1407 = vadd.xlane.f32.xlu0 %v1406
    %v1408 = vpop.xlane.xlu0 %1407
    %v1409 = vsel %vm624, %v1293, 0.0
    %1410 = vadd.xlane.f32.xlu0 %v1409
    %v1411 = vpop.xlane.xlu0 %1410
    %v1412 = vsel %vm624, %v1294, 0.0
    %1413 = vadd.xlane.f32.xlu0 %v1412
    %v1414 = vpop.xlane.xlu0 %1413
    %v1415 = vsel %vm624, %v1295, 0.0
    %1416 = vadd.xlane.f32.xlu0 %v1415
    %v1417 = vpop.xlane.xlu0 %1416
    %v1418 = vsel %vm624, %v1296, 0.0
    %1419 = vadd.xlane.f32.xlu0 %v1418
    %v1420 = vpop.xlane.xlu0 %1419
    %v1421 = vsel %vm624, %v1297, 0.0
    %1422 = vadd.xlane.f32.xlu0 %v1421
    %v1423 = vpop.xlane.xlu0 %1422
    %v1424 = vsel %vm624, %v1298, 0.0
    %1425 = vadd.xlane.f32.xlu0 %v1424
    %v1426 = vpop.xlane.xlu0 %1425
    %v1427 = vsel %vm624, %v1299, 0.0
    %1428 = vadd.xlane.f32.xlu0 %v1427
    %v1429 = vpop.xlane.xlu0 %1428
    %v1430 = vsel %vm624, %v1300, 0.0
    %1431 = vadd.xlane.f32.xlu0 %v1430
    %v1432 = vpop.xlane.xlu0 %1431
    %v1433 = vsel %vm624, %v1301, 0.0
    %1434 = vadd.xlane.f32.xlu0 %v1433
    %v1435 = vpop.xlane.xlu0 %1434
    %v1436 = vsel %vm624, %v1302, 0.0
    %1437 = vadd.xlane.f32.xlu0 %v1436
    %v1438 = vpop.xlane.xlu0 %1437
    %v1439 = vsel %vm624, %v1303, 0.0
    %1440 = vadd.xlane.f32.xlu0 %v1439
    %v1441 = vpop.xlane.xlu0 %1440
    %v1442 = vsel %vm624, %v1304, 0.0
    %1443 = vadd.xlane.f32.xlu0 %v1442
    %v1444 = vpop.xlane.xlu0 %1443
    %v1445 = vsel %vm624, %v1305, 0.0
    %1446 = vadd.xlane.f32.xlu0 %v1445
    %v1447 = vpop.xlane.xlu0 %1446
    %v1448 = vsel %vm624, %v1306, 0.0
    %1449 = vadd.xlane.f32.xlu0 %v1448
    %v1450 = vpop.xlane.xlu0 %1449
    %v1451 = vsel %vm624, %v1307, 0.0
    %1452 = vadd.xlane.f32.xlu0 %v1451
    %v1453 = vpop.xlane.xlu0 %1452
    %v1454 = vsel %vm624, %v1308, 0.0
    %1455 = vadd.xlane.f32.xlu0 %v1454
    %v1456 = vpop.xlane.xlu0 %1455
    %v1457 = vsel %vm624, %v1309, 0.0
    %1458 = vadd.xlane.f32.xlu0 %v1457
    %v1459 = vpop.xlane.xlu0 %1458
    %v1460 = vsel %vm624, %v1310, 0.0
    %1461 = vadd.xlane.f32.xlu0 %v1460
    %v1462 = vpop.xlane.xlu0 %1461
    %v1463 = vsel %vm624, %v1311, 0.0
    %1464 = vadd.xlane.f32.xlu0 %v1463
    %v1465 = vpop.xlane.xlu0 %1464
    %v1466 = vsel %vm624, %v1312, 0.0
    %1467 = vadd.xlane.f32.xlu0 %v1466
    %v1468 = vpop.xlane.xlu0 %1467
    %v1469 = vsel %vm624, %v1313, 0.0
    %1470 = vadd.xlane.f32.xlu0 %v1469
    %v1471 = vpop.xlane.xlu0 %1470
    %v1472 = vsel %vm624, %v1314, 0.0
    %1473 = vadd.xlane.f32.xlu0 %v1472
    %v1474 = vpop.xlane.xlu0 %1473
    %v1475 = vsel %vm624, %v1315, 0.0
    %1476 = vadd.xlane.f32.xlu0 %v1475
    %v1477 = vpop.xlane.xlu0 %1476
    %v1478 = vsel %vm624, %v1316, 0.0
    %1479 = vadd.xlane.f32.xlu0 %v1478
    %v1480 = vpop.xlane.xlu0 %1479
    %v1481 = vsel %vm624, %v1317, 0.0
    %1482 = vadd.xlane.f32.xlu0 %v1481
    %v1483 = vpop.xlane.xlu0 %1482
    %v1484 = vsel %vm624, %v1318, 0.0
    %1485 = vadd.xlane.f32.xlu0 %v1484
    %v1486 = vpop.xlane.xlu0 %1485
    %v1487 = vsel %vm624, %v1319, 0.0
    %1488 = vadd.xlane.f32.xlu0 %v1487
    %v1489 = vpop.xlane.xlu0 %1488
    %v1490 = vsel %vm624, %v1320, 0.0
    %1491 = vadd.xlane.f32.xlu0 %v1490
    %v1492 = vpop.xlane.xlu0 %1491
    %v1493 = vsel %vm624, %v1321, 0.0
    %1494 = vadd.xlane.f32.xlu0 %v1493
    %v1495 = vpop.xlane.xlu0 %1494
    %v1496 = vsel %vm624, %v1322, 0.0
    %1497 = vadd.xlane.f32.xlu0 %v1496
    %v1498 = vpop.xlane.xlu0 %1497
    %v1499 = vsel %vm624, %v1323, 0.0
    %1500 = vadd.xlane.f32.xlu0 %v1499
    %v1501 = vpop.xlane.xlu0 %1500
    %v1502 = vsel %vm624, %v1324, 0.0
    %1503 = vadd.xlane.f32.xlu0 %v1502
    %v1504 = vpop.xlane.xlu0 %1503
    %v1505 = vsel %vm624, %v1325, 0.0
    %1506 = vadd.xlane.f32.xlu0 %v1505
    %v1507 = vpop.xlane.xlu0 %1506
    %v1508 = vsel %vm624, %v1326, 0.0
    %1509 = vadd.xlane.f32.xlu0 %v1508
    %v1510 = vpop.xlane.xlu0 %1509
    %v1511 = vsel %vm624, %v1327, 0.0
    %1512 = vadd.xlane.f32.xlu0 %v1511
    %v1513 = vpop.xlane.xlu0 %1512
    %v1514 = vsel %vm624, %v1328, 0.0
    %1515 = vadd.xlane.f32.xlu0 %v1514
    %v1516 = vpop.xlane.xlu0 %1515
    %v1517 = vsel %vm624, %v1329, 0.0
    %1518 = vadd.xlane.f32.xlu0 %v1517
    %v1519 = vpop.xlane.xlu0 %1518
    %v1520 = vsel %vm624, %v1330, 0.0
    %1521 = vadd.xlane.f32.xlu0 %v1520
    %v1522 = vpop.xlane.xlu0 %1521
    %v1523 = vrcp.pop %v1333
    %v1524 = vrcp.pop %v1336
    %v1525 = vrcp.pop %v1339
    %v1526 = vrcp.pop %v1342
    %v1527 = vrcp.pop %v1345
    %v1528 = vrcp.pop %v1348
    %v1529 = vrcp.pop %v1351
    %v1530 = vrcp.pop %v1354
    %v1531 = vrcp.pop %v1357
    %v1532 = vrcp.pop %v1360
    %v1533 = vrcp.pop %v1363
    %v1534 = vrcp.pop %v1366
    %v1535 = vrcp.pop %v1369
    %v1536 = vrcp.pop %v1372
    %v1537 = vrcp.pop %v1375
    %v1538 = vrcp.pop %v1378
    %v1539 = vrcp.pop %v1381
    %v1540 = vrcp.pop %v1384
    %v1541 = vrcp.pop %v1387
    %v1542 = vrcp.pop %v1390
    %v1543 = vrcp.pop %v1393
    %v1544 = vrcp.pop %v1396
    %v1545 = vrcp.pop %v1399
    %v1546 = vrcp.pop %v1402
    %v1547 = vrcp.pop %v1405
    %v1548 = vrcp.pop %v1408
    %v1549 = vrcp.pop %v1411
    %v1550 = vrcp.pop %v1414
    %v1551 = vrcp.pop %v1417
    %v1552 = vrcp.pop %v1420
    %v1553 = vrcp.pop %v1423
    %v1554 = vrcp.pop %v1426
    %v1555 = vrcp.pop %v1429
    %v1556 = vrcp.pop %v1432
    %v1557 = vrcp.pop %v1435
    %v1558 = vrcp.pop %v1438
    %v1559 = vrcp.pop %v1441
    %v1560 = vrcp.pop %v1444
    %v1561 = vrcp.pop %v1447
    %v1562 = vrcp.pop %v1450
    %v1563 = vrcp.pop %v1453
    %v1564 = vrcp.pop %v1456
    %v1565 = vrcp.pop %v1459
    %v1566 = vrcp.pop %v1462
    %v1567 = vrcp.pop %v1465
    %v1568 = vrcp.pop %v1468
    %v1569 = vrcp.pop %v1471
    %v1570 = vrcp.pop %v1474
    %v1571 = vrcp.pop %v1477
    %v1572 = vrcp.pop %v1480
    %v1573 = vrcp.pop %v1483
    %v1574 = vrcp.pop %v1486
    %v1575 = vrcp.pop %v1489
    %v1576 = vrcp.pop %v1492
    %v1577 = vrcp.pop %v1495
    %v1578 = vrcp.pop %v1498
    %v1579 = vrcp.pop %v1501
    %v1580 = vrcp.pop %v1504
    %v1581 = vrcp.pop %v1507
    %v1582 = vrcp.pop %v1510
    %v1583 = vrcp.pop %v1513
    %v1584 = vrcp.pop %v1516
    %v1585 = vrcp.pop %v1519
    %v1586 = vrcp.pop %v1522
    %v1587 = vmul.f32 %v1333, %v1523
    %v1588 = vmul.f32 %v1336, %v1524
    %v1589 = vmul.f32 %v1339, %v1525
    %v1590 = vmul.f32 %v1342, %v1526
    %v1591 = vmul.f32 %v1345, %v1527
    %v1592 = vmul.f32 %v1348, %v1528
    %v1593 = vmul.f32 %v1351, %v1529
    %v1594 = vmul.f32 %v1354, %v1530
    %v1595 = vmul.f32 %v1357, %v1531
    %v1596 = vmul.f32 %v1360, %v1532
    %v1597 = vmul.f32 %v1363, %v1533
    %v1598 = vmul.f32 %v1366, %v1534
    %v1599 = vmul.f32 %v1369, %v1535
    %v1600 = vmul.f32 %v1372, %v1536
    %v1601 = vmul.f32 %v1375, %v1537
    %v1602 = vmul.f32 %v1378, %v1538
    %v1603 = vmul.f32 %v1381, %v1539
    %v1604 = vmul.f32 %v1384, %v1540
    %v1605 = vmul.f32 %v1387, %v1541
    %v1606 = vmul.f32 %v1390, %v1542
    %v1607 = vmul.f32 %v1393, %v1543
    %v1608 = vmul.f32 %v1396, %v1544
    %v1609 = vmul.f32 %v1399, %v1545
    %v1610 = vmul.f32 %v1402, %v1546
    %v1611 = vmul.f32 %v1405, %v1547
    %v1612 = vmul.f32 %v1408, %v1548
    %v1613 = vmul.f32 %v1411, %v1549
    %v1614 = vmul.f32 %v1414, %v1550
    %v1615 = vmul.f32 %v1417, %v1551
    %v1616 = vmul.f32 %v1420, %v1552
    %v1617 = vmul.f32 %v1423, %v1553
    %v1618 = vmul.f32 %v1426, %v1554
    %v1619 = vmul.f32 %v1429, %v1555
    %v1620 = vmul.f32 %v1432, %v1556
    %v1621 = vmul.f32 %v1435, %v1557
    %v1622 = vmul.f32 %v1438, %v1558
    %v1623 = vmul.f32 %v1441, %v1559
    %v1624 = vmul.f32 %v1444, %v1560
    %v1625 = vmul.f32 %v1447, %v1561
    %v1626 = vmul.f32 %v1450, %v1562
    %v1627 = vmul.f32 %v1453, %v1563
    %v1628 = vmul.f32 %v1456, %v1564
    %v1629 = vmul.f32 %v1459, %v1565
    %v1630 = vmul.f32 %v1462, %v1566
    %v1631 = vmul.f32 %v1465, %v1567
    %v1632 = vmul.f32 %v1468, %v1568
    %v1633 = vmul.f32 %v1471, %v1569
    %v1634 = vmul.f32 %v1474, %v1570
    %v1635 = vmul.f32 %v1477, %v1571
    %v1636 = vmul.f32 %v1480, %v1572
    %v1637 = vmul.f32 %v1483, %v1573
    %v1638 = vmul.f32 %v1486, %v1574
    %v1639 = vmul.f32 %v1489, %v1575
    %v1640 = vmul.f32 %v1492, %v1576
    %v1641 = vmul.f32 %v1495, %v1577
    %v1642 = vmul.f32 %v1498, %v1578
    %v1643 = vmul.f32 %v1501, %v1579
    %v1644 = vmul.f32 %v1504, %v1580
    %v1645 = vmul.f32 %v1507, %v1581
    %v1646 = vmul.f32 %v1510, %v1582
    %v1647 = vmul.f32 %v1513, %v1583
    %v1648 = vmul.f32 %v1516, %v1584
    %v1649 = vmul.f32 %v1519, %v1585
    %v1650 = vmul.f32 %v1522, %v1586
    %v1651 = vsub.f32 2.0, %v1587
    %v1652 = vsub.f32 2.0, %v1588
    %v1653 = vsub.f32 2.0, %v1589
    %v1654 = vsub.f32 2.0, %v1590
    %v1655 = vsub.f32 2.0, %v1591
    %v1656 = vsub.f32 2.0, %v1592
    %v1657 = vsub.f32 2.0, %v1593
    %v1658 = vsub.f32 2.0, %v1594
    %v1659 = vsub.f32 2.0, %v1595
    %v1660 = vsub.f32 2.0, %v1596
    %v1661 = vsub.f32 2.0, %v1597
    %v1662 = vsub.f32 2.0, %v1598
    %v1663 = vsub.f32 2.0, %v1599
    %v1664 = vsub.f32 2.0, %v1600
    %v1665 = vsub.f32 2.0, %v1601
    %v1666 = vsub.f32 2.0, %v1602
    %v1667 = vsub.f32 2.0, %v1603
    %v1668 = vsub.f32 2.0, %v1604
    %v1669 = vsub.f32 2.0, %v1605
    %v1670 = vsub.f32 2.0, %v1606
    %v1671 = vsub.f32 2.0, %v1607
    %v1672 = vsub.f32 2.0, %v1608
    %v1673 = vsub.f32 2.0, %v1609
    %v1674 = vsub.f32 2.0, %v1610
    %v1675 = vsub.f32 2.0, %v1611
    %v1676 = vsub.f32 2.0, %v1612
    %v1677 = vsub.f32 2.0, %v1613
    %v1678 = vsub.f32 2.0, %v1614
    %v1679 = vsub.f32 2.0, %v1615
    %v1680 = vsub.f32 2.0, %v1616
    %v1681 = vsub.f32 2.0, %v1617
    %v1682 = vsub.f32 2.0, %v1618
    %v1683 = vsub.f32 2.0, %v1619
    %v1684 = vsub.f32 2.0, %v1620
    %v1685 = vsub.f32 2.0, %v1621
    %v1686 = vsub.f32 2.0, %v1622
    %v1687 = vsub.f32 2.0, %v1623
    %v1688 = vsub.f32 2.0, %v1624
    %v1689 = vsub.f32 2.0, %v1625
    %v1690 = vsub.f32 2.0, %v1626
    %v1691 = vsub.f32 2.0, %v1627
    %v1692 = vsub.f32 2.0, %v1628
    %v1693 = vsub.f32 2.0, %v1629
    %v1694 = vsub.f32 2.0, %v1630
    %v1695 = vsub.f32 2.0, %v1631
    %v1696 = vsub.f32 2.0, %v1632
    %v1697 = vsub.f32 2.0, %v1633
    %v1698 = vsub.f32 2.0, %v1634
    %v1699 = vsub.f32 2.0, %v1635
    %v1700 = vsub.f32 2.0, %v1636
    %v1701 = vsub.f32 2.0, %v1637
    %v1702 = vsub.f32 2.0, %v1638
    %v1703 = vsub.f32 2.0, %v1639
    %v1704 = vsub.f32 2.0, %v1640
    %v1705 = vsub.f32 2.0, %v1641
    %v1706 = vsub.f32 2.0, %v1642
    %v1707 = vsub.f32 2.0, %v1643
    %v1708 = vsub.f32 2.0, %v1644
    %v1709 = vsub.f32 2.0, %v1645
    %v1710 = vsub.f32 2.0, %v1646
    %v1711 = vsub.f32 2.0, %v1647
    %v1712 = vsub.f32 2.0, %v1648
    %v1713 = vsub.f32 2.0, %v1649
    %v1714 = vsub.f32 2.0, %v1650
    %v1715 = vmul.f32 %v1523, %v1651
    %v1716 = vmul.f32 %v1524, %v1652
    %v1717 = vmul.f32 %v1525, %v1653
    %v1718 = vmul.f32 %v1526, %v1654
    %v1719 = vmul.f32 %v1527, %v1655
    %v1720 = vmul.f32 %v1528, %v1656
    %v1721 = vmul.f32 %v1529, %v1657
    %v1722 = vmul.f32 %v1530, %v1658
    %v1723 = vmul.f32 %v1531, %v1659
    %v1724 = vmul.f32 %v1532, %v1660
    %v1725 = vmul.f32 %v1533, %v1661
    %v1726 = vmul.f32 %v1534, %v1662
    %v1727 = vmul.f32 %v1535, %v1663
    %v1728 = vmul.f32 %v1536, %v1664
    %v1729 = vmul.f32 %v1537, %v1665
    %v1730 = vmul.f32 %v1538, %v1666
    %v1731 = vmul.f32 %v1539, %v1667
    %v1732 = vmul.f32 %v1540, %v1668
    %v1733 = vmul.f32 %v1541, %v1669
    %v1734 = vmul.f32 %v1542, %v1670
    %v1735 = vmul.f32 %v1543, %v1671
    %v1736 = vmul.f32 %v1544, %v1672
    %v1737 = vmul.f32 %v1545, %v1673
    %v1738 = vmul.f32 %v1546, %v1674
    %v1739 = vmul.f32 %v1547, %v1675
    %v1740 = vmul.f32 %v1548, %v1676
    %v1741 = vmul.f32 %v1549, %v1677
    %v1742 = vmul.f32 %v1550, %v1678
    %v1743 = vmul.f32 %v1551, %v1679
    %v1744 = vmul.f32 %v1552, %v1680
    %v1745 = vmul.f32 %v1553, %v1681
    %v1746 = vmul.f32 %v1554, %v1682
    %v1747 = vmul.f32 %v1555, %v1683
    %v1748 = vmul.f32 %v1556, %v1684
    %v1749 = vmul.f32 %v1557, %v1685
    %v1750 = vmul.f32 %v1558, %v1686
    %v1751 = vmul.f32 %v1559, %v1687
    %v1752 = vmul.f32 %v1560, %v1688
    %v1753 = vmul.f32 %v1561, %v1689
    %v1754 = vmul.f32 %v1562, %v1690
    %v1755 = vmul.f32 %v1563, %v1691
    %v1756 = vmul.f32 %v1564, %v1692
    %v1757 = vmul.f32 %v1565, %v1693
    %v1758 = vmul.f32 %v1566, %v1694
    %v1759 = vmul.f32 %v1567, %v1695
    %v1760 = vmul.f32 %v1568, %v1696
    %v1761 = vmul.f32 %v1569, %v1697
    %v1762 = vmul.f32 %v1570, %v1698
    %v1763 = vmul.f32 %v1571, %v1699
    %v1764 = vmul.f32 %v1572, %v1700
    %v1765 = vmul.f32 %v1573, %v1701
    %v1766 = vmul.f32 %v1574, %v1702
    %v1767 = vmul.f32 %v1575, %v1703
    %v1768 = vmul.f32 %v1576, %v1704
    %v1769 = vmul.f32 %v1577, %v1705
    %v1770 = vmul.f32 %v1578, %v1706
    %v1771 = vmul.f32 %v1579, %v1707
    %v1772 = vmul.f32 %v1580, %v1708
    %v1773 = vmul.f32 %v1581, %v1709
    %v1774 = vmul.f32 %v1582, %v1710
    %v1775 = vmul.f32 %v1583, %v1711
    %v1776 = vmul.f32 %v1584, %v1712
    %v1777 = vmul.f32 %v1585, %v1713
    %v1778 = vmul.f32 %v1586, %v1714
    %v1779 = vmul.f32 %v1267, %v1715
    %v1780 = vmul.f32 %v1268, %v1716
    %v1781 = vmul.f32 %v1269, %v1717
    %v1782 = vmul.f32 %v1270, %v1718
    %v1783 = vmul.f32 %v1271, %v1719
    %v1784 = vmul.f32 %v1272, %v1720
    %v1785 = vmul.f32 %v1273, %v1721
    %v1786 = vmul.f32 %v1274, %v1722
    %v1787 = vmul.f32 %v1275, %v1723
    %v1788 = vmul.f32 %v1276, %v1724
    %v1789 = vmul.f32 %v1277, %v1725
    %v1790 = vmul.f32 %v1278, %v1726
    %v1791 = vmul.f32 %v1279, %v1727
    %v1792 = vmul.f32 %v1280, %v1728
    %v1793 = vmul.f32 %v1281, %v1729
    %v1794 = vmul.f32 %v1282, %v1730
    %v1795 = vmul.f32 %v1283, %v1731
    %v1796 = vmul.f32 %v1284, %v1732
    %v1797 = vmul.f32 %v1285, %v1733
    %v1798 = vmul.f32 %v1286, %v1734
    %v1799 = vmul.f32 %v1287, %v1735
    %v1800 = vmul.f32 %v1288, %v1736
    %v1801 = vmul.f32 %v1289, %v1737
    %v1802 = vmul.f32 %v1290, %v1738
    %v1803 = vmul.f32 %v1291, %v1739
    %v1804 = vmul.f32 %v1292, %v1740
    %v1805 = vmul.f32 %v1293, %v1741
    %v1806 = vmul.f32 %v1294, %v1742
    %v1807 = vmul.f32 %v1295, %v1743
    %v1808 = vmul.f32 %v1296, %v1744
    %v1809 = vmul.f32 %v1297, %v1745
    %v1810 = vmul.f32 %v1298, %v1746
    %v1811 = vmul.f32 %v1299, %v1747
    %v1812 = vmul.f32 %v1300, %v1748
    %v1813 = vmul.f32 %v1301, %v1749
    %v1814 = vmul.f32 %v1302, %v1750
    %v1815 = vmul.f32 %v1303, %v1751
    %v1816 = vmul.f32 %v1304, %v1752
    %v1817 = vmul.f32 %v1305, %v1753
    %v1818 = vmul.f32 %v1306, %v1754
    %v1819 = vmul.f32 %v1307, %v1755
    %v1820 = vmul.f32 %v1308, %v1756
    %v1821 = vmul.f32 %v1309, %v1757
    %v1822 = vmul.f32 %v1310, %v1758
    %v1823 = vmul.f32 %v1311, %v1759
    %v1824 = vmul.f32 %v1312, %v1760
    %v1825 = vmul.f32 %v1313, %v1761
    %v1826 = vmul.f32 %v1314, %v1762
    %v1827 = vmul.f32 %v1315, %v1763
    %v1828 = vmul.f32 %v1316, %v1764
    %v1829 = vmul.f32 %v1317, %v1765
    %v1830 = vmul.f32 %v1318, %v1766
    %v1831 = vmul.f32 %v1319, %v1767
    %v1832 = vmul.f32 %v1320, %v1768
    %v1833 = vmul.f32 %v1321, %v1769
    %v1834 = vmul.f32 %v1322, %v1770
    %v1835 = vmul.f32 %v1323, %v1771
    %v1836 = vmul.f32 %v1324, %v1772
    %v1837 = vmul.f32 %v1325, %v1773
    %v1838 = vmul.f32 %v1326, %v1774
    %v1839 = vmul.f32 %v1327, %v1775
    %v1840 = vmul.f32 %v1328, %v1776
    %v1841 = vmul.f32 %v1329, %v1777
    %v1842 = vmul.f32 %v1330, %v1778
    %v1844 = vsel %vm624, %v1779, 0
    %v1847 = vsel %vm624, %v1780, 0
    %v1850 = vsel %vm624, %v1781, 0
    %v1853 = vsel %vm624, %v1782, 0
    %v1856 = vsel %vm624, %v1783, 0
    %v1859 = vsel %vm624, %v1784, 0
    %v1862 = vsel %vm624, %v1785, 0
    %v1865 = vsel %vm624, %v1786, 0
    %v1868 = vsel %vm624, %v1787, 0
    %v1871 = vsel %vm624, %v1788, 0
    %v1874 = vsel %vm624, %v1789, 0
    %v1877 = vsel %vm624, %v1790, 0
    %v1880 = vsel %vm624, %v1791, 0
    %v1883 = vsel %vm624, %v1792, 0
    %v1886 = vsel %vm624, %v1793, 0
    %v1889 = vsel %vm624, %v1794, 0
    %v1892 = vsel %vm624, %v1795, 0
    %v1895 = vsel %vm624, %v1796, 0
    %v1898 = vsel %vm624, %v1797, 0
    %v1901 = vsel %vm624, %v1798, 0
    %v1904 = vsel %vm624, %v1799, 0
    %v1907 = vsel %vm624, %v1800, 0
    %v1910 = vsel %vm624, %v1801, 0
    %v1913 = vsel %vm624, %v1802, 0
    %v1916 = vsel %vm624, %v1803, 0
    %v1919 = vsel %vm624, %v1804, 0
    %v1922 = vsel %vm624, %v1805, 0
    %v1925 = vsel %vm624, %v1806, 0
    %v1928 = vsel %vm624, %v1807, 0
    %v1931 = vsel %vm624, %v1808, 0
    %v1934 = vsel %vm624, %v1809, 0
    %v1937 = vsel %vm624, %v1810, 0
    %v1940 = vsel %vm624, %v1811, 0
    %v1943 = vsel %vm624, %v1812, 0
    %v1946 = vsel %vm624, %v1813, 0
    %v1949 = vsel %vm624, %v1814, 0
    %v1952 = vsel %vm624, %v1815, 0
    %v1955 = vsel %vm624, %v1816, 0
    %v1958 = vsel %vm624, %v1817, 0
    %v1961 = vsel %vm624, %v1818, 0
    %v1964 = vsel %vm624, %v1819, 0
    %v1967 = vsel %vm624, %v1820, 0
    %v1970 = vsel %vm624, %v1821, 0
    %v1973 = vsel %vm624, %v1822, 0
    %v1976 = vsel %vm624, %v1823, 0
    %v1979 = vsel %vm624, %v1824, 0
    %v1982 = vsel %vm624, %v1825, 0
    %v1985 = vsel %vm624, %v1826, 0
    %v1988 = vsel %vm624, %v1827, 0
    %v1991 = vsel %vm624, %v1828, 0
    %v1994 = vsel %vm624, %v1829, 0
    %v1997 = vsel %vm624, %v1830, 0
    %v2000 = vsel %vm624, %v1831, 0
    %v2003 = vsel %vm624, %v1832, 0
    %v2006 = vsel %vm624, %v1833, 0
    %v2009 = vsel %vm624, %v1834, 0
    %v2012 = vsel %vm624, %v1835, 0
    %v2015 = vsel %vm624, %v1836, 0
    %v2018 = vsel %vm624, %v1837, 0
    %v2021 = vsel %vm624, %v1838, 0
    %v2024 = vsel %vm624, %v1839, 0
    %v2027 = vsel %vm624, %v1840, 0
    %v2030 = vsel %vm624, %v1841, 0
    %v2033 = vsel %vm624, %v1842, 0
    %2035 = vmatpush.msra.mxu0 0.0
    %2036 = vmatpush.msra.mxu0 0.0
    %2037 = vmatpush.msra.mxu0 0.0
    %2038 = vmatpush.msra.mxu0 0.0
    %2039 = vmatpush.msra.mxu0 0.0
    %2040 = vmatpush.msra.mxu0 0.0
    %2041 = vmatpush.msra.mxu0 0.0
    %2042 = vmatpush.msra.mxu0 0.0
    %2043 = vmatpush.msra.mxu0 %v350
    %2044 = vmatpush.msra.mxu0 %v349
    %2045 = vmatpush.msra.mxu0 %v348
    %2046 = vmatpush.msra.mxu0 %v347
    %2047 = vmatpush.msra.mxu0 %v346
    %2048 = vmatpush.msra.mxu0 %v345
    %2049 = vmatpush.msra.mxu0 %v344
    %2050 = vmatpush.msra.mxu0 %v343
    %2051 = vmatmul.f32.gmra.mxu0 %v1844
    %v2052 = vpop.f32.mrf.mxu0
    %v2053 = vadd.f32 0.0, %v2052
    %2054 = vmatmul.f32.gmra.mxu0 %v1847
    %v2055 = vpop.f32.mrf.mxu0
    %v2056 = vadd.f32 0.0, %v2055
    %2057 = vmatmul.f32.gmra.mxu0 %v1850
    %v2058 = vpop.f32.mrf.mxu0
    %v2059 = vadd.f32 0.0, %v2058
    %2060 = vmatmul.f32.gmra.mxu0 %v1853
    %v2061 = vpop.f32.mrf.mxu0
    %v2062 = vadd.f32 0.0, %v2061
    %2063 = vmatmul.f32.gmra.mxu0 %v1856
    %v2064 = vpop.f32.mrf.mxu0
    %v2065 = vadd.f32 0.0, %v2064
    %2066 = vmatmul.f32.gmra.mxu0 %v1859
    %v2067 = vpop.f32.mrf.mxu0
    %v2068 = vadd.f32 0.0, %v2067
    %2069 = vmatmul.f32.gmra.mxu0 %v1862
    %v2070 = vpop.f32.mrf.mxu0
    %v2071 = vadd.f32 0.0, %v2070
    %2072 = vmatmul.f32.gmra.mxu0 %v1865
    %v2073 = vpop.f32.mrf.mxu0
    %v2074 = vadd.f32 0.0, %v2073
    %2075 = vmatmul.f32.gmra.mxu0 %v1868
    %v2076 = vpop.f32.mrf.mxu0
    %v2077 = vadd.f32 0.0, %v2076
    %2078 = vmatmul.f32.gmra.mxu0 %v1871
    %v2079 = vpop.f32.mrf.mxu0
    %v2080 = vadd.f32 0.0, %v2079
    %2081 = vmatmul.f32.gmra.mxu0 %v1874
    %v2082 = vpop.f32.mrf.mxu0
    %v2083 = vadd.f32 0.0, %v2082
    %2084 = vmatmul.f32.gmra.mxu0 %v1877
    %v2085 = vpop.f32.mrf.mxu0
    %v2086 = vadd.f32 0.0, %v2085
    %2087 = vmatmul.f32.gmra.mxu0 %v1880
    %v2088 = vpop.f32.mrf.mxu0
    %v2089 = vadd.f32 0.0, %v2088
    %2090 = vmatmul.f32.gmra.mxu0 %v1883
    %v2091 = vpop.f32.mrf.mxu0
    %v2092 = vadd.f32 0.0, %v2091
    %2093 = vmatmul.f32.gmra.mxu0 %v1886
    %v2094 = vpop.f32.mrf.mxu0
    %v2095 = vadd.f32 0.0, %v2094
    %2096 = vmatmul.f32.gmra.mxu0 %v1889
    %v2097 = vpop.f32.mrf.mxu0
    %v2098 = vadd.f32 0.0, %v2097
    %2099 = vmatmul.f32.gmra.mxu0 %v1892
    %v2100 = vpop.f32.mrf.mxu0
    %v2101 = vadd.f32 0.0, %v2100
    %2102 = vmatmul.f32.gmra.mxu0 %v1895
    %v2103 = vpop.f32.mrf.mxu0
    %v2104 = vadd.f32 0.0, %v2103
    %2105 = vmatmul.f32.gmra.mxu0 %v1898
    %v2106 = vpop.f32.mrf.mxu0
    %v2107 = vadd.f32 0.0, %v2106
    %2108 = vmatmul.f32.gmra.mxu0 %v1901
    %v2109 = vpop.f32.mrf.mxu0
    %v2110 = vadd.f32 0.0, %v2109
    %2111 = vmatmul.f32.gmra.mxu0 %v1904
    %v2112 = vpop.f32.mrf.mxu0
    %v2113 = vadd.f32 0.0, %v2112
    %2114 = vmatmul.f32.gmra.mxu0 %v1907
    %v2115 = vpop.f32.mrf.mxu0
    %v2116 = vadd.f32 0.0, %v2115
    %2117 = vmatmul.f32.gmra.mxu0 %v1910
    %v2118 = vpop.f32.mrf.mxu0
    %v2119 = vadd.f32 0.0, %v2118
    %2120 = vmatmul.f32.gmra.mxu0 %v1913
    %v2121 = vpop.f32.mrf.mxu0
    %v2122 = vadd.f32 0.0, %v2121
    %2123 = vmatmul.f32.gmra.mxu0 %v1916
    %v2124 = vpop.f32.mrf.mxu0
    %v2125 = vadd.f32 0.0, %v2124
    %2126 = vmatmul.f32.gmra.mxu0 %v1919
    %v2127 = vpop.f32.mrf.mxu0
    %v2128 = vadd.f32 0.0, %v2127
    %2129 = vmatmul.f32.gmra.mxu0 %v1922
    %v2130 = vpop.f32.mrf.mxu0
    %v2131 = vadd.f32 0.0, %v2130
    %2132 = vmatmul.f32.gmra.mxu0 %v1925
    %v2133 = vpop.f32.mrf.mxu0
    %v2134 = vadd.f32 0.0, %v2133
    %2135 = vmatmul.f32.gmra.mxu0 %v1928
    %v2136 = vpop.f32.mrf.mxu0
    %v2137 = vadd.f32 0.0, %v2136
    %2138 = vmatmul.f32.gmra.mxu0 %v1931
    %v2139 = vpop.f32.mrf.mxu0
    %v2140 = vadd.f32 0.0, %v2139
    %2141 = vmatmul.f32.gmra.mxu0 %v1934
    %v2142 = vpop.f32.mrf.mxu0
    %v2143 = vadd.f32 0.0, %v2142
    %2144 = vmatmul.f32.gmra.mxu0 %v1937
    %v2145 = vpop.f32.mrf.mxu0
    %v2146 = vadd.f32 0.0, %v2145
    %2147 = vmatmul.f32.gmra.mxu0 %v1940
    %v2148 = vpop.f32.mrf.mxu0
    %v2149 = vadd.f32 0.0, %v2148
    %2150 = vmatmul.f32.gmra.mxu0 %v1943
    %v2151 = vpop.f32.mrf.mxu0
    %v2152 = vadd.f32 0.0, %v2151
    %2153 = vmatmul.f32.gmra.mxu0 %v1946
    %v2154 = vpop.f32.mrf.mxu0
    %v2155 = vadd.f32 0.0, %v2154
    %2156 = vmatmul.f32.gmra.mxu0 %v1949
    %v2157 = vpop.f32.mrf.mxu0
    %v2158 = vadd.f32 0.0, %v2157
    %2159 = vmatmul.f32.gmra.mxu0 %v1952
    %v2160 = vpop.f32.mrf.mxu0
    %v2161 = vadd.f32 0.0, %v2160
    %2162 = vmatmul.f32.gmra.mxu0 %v1955
    %v2163 = vpop.f32.mrf.mxu0
    %v2164 = vadd.f32 0.0, %v2163
    %2165 = vmatmul.f32.gmra.mxu0 %v1958
    %v2166 = vpop.f32.mrf.mxu0
    %v2167 = vadd.f32 0.0, %v2166
    %2168 = vmatmul.f32.gmra.mxu0 %v1961
    %v2169 = vpop.f32.mrf.mxu0
    %v2170 = vadd.f32 0.0, %v2169
    %2171 = vmatmul.f32.gmra.mxu0 %v1964
    %v2172 = vpop.f32.mrf.mxu0
    %v2173 = vadd.f32 0.0, %v2172
    %2174 = vmatmul.f32.gmra.mxu0 %v1967
    %v2175 = vpop.f32.mrf.mxu0
    %v2176 = vadd.f32 0.0, %v2175
    %2177 = vmatmul.f32.gmra.mxu0 %v1970
    %v2178 = vpop.f32.mrf.mxu0
    %v2179 = vadd.f32 0.0, %v2178
    %2180 = vmatmul.f32.gmra.mxu0 %v1973
    %v2181 = vpop.f32.mrf.mxu0
    %v2182 = vadd.f32 0.0, %v2181
    %2183 = vmatmul.f32.gmra.mxu0 %v1976
    %v2184 = vpop.f32.mrf.mxu0
    %v2185 = vadd.f32 0.0, %v2184
    %2186 = vmatmul.f32.gmra.mxu0 %v1979
    %v2187 = vpop.f32.mrf.mxu0
    %v2188 = vadd.f32 0.0, %v2187
    %2189 = vmatmul.f32.gmra.mxu0 %v1982
    %v2190 = vpop.f32.mrf.mxu0
    %v2191 = vadd.f32 0.0, %v2190
    %2192 = vmatmul.f32.gmra.mxu0 %v1985
    %v2193 = vpop.f32.mrf.mxu0
    %v2194 = vadd.f32 0.0, %v2193
    %2195 = vmatmul.f32.gmra.mxu0 %v1988
    %v2196 = vpop.f32.mrf.mxu0
    %v2197 = vadd.f32 0.0, %v2196
    %2198 = vmatmul.f32.gmra.mxu0 %v1991
    %v2199 = vpop.f32.mrf.mxu0
    %v2200 = vadd.f32 0.0, %v2199
    %2201 = vmatmul.f32.gmra.mxu0 %v1994
    %v2202 = vpop.f32.mrf.mxu0
    %v2203 = vadd.f32 0.0, %v2202
    %2204 = vmatmul.f32.gmra.mxu0 %v1997
    %v2205 = vpop.f32.mrf.mxu0
    %v2206 = vadd.f32 0.0, %v2205
    %2207 = vmatmul.f32.gmra.mxu0 %v2000
    %v2208 = vpop.f32.mrf.mxu0
    %v2209 = vadd.f32 0.0, %v2208
    %2210 = vmatmul.f32.gmra.mxu0 %v2003
    %v2211 = vpop.f32.mrf.mxu0
    %v2212 = vadd.f32 0.0, %v2211
    %2213 = vmatmul.f32.gmra.mxu0 %v2006
    %v2214 = vpop.f32.mrf.mxu0
    %v2215 = vadd.f32 0.0, %v2214
    %2216 = vmatmul.f32.gmra.mxu0 %v2009
    %v2217 = vpop.f32.mrf.mxu0
    %v2218 = vadd.f32 0.0, %v2217
    %2219 = vmatmul.f32.gmra.mxu0 %v2012
    %v2220 = vpop.f32.mrf.mxu0
    %v2221 = vadd.f32 0.0, %v2220
    %2222 = vmatmul.f32.gmra.mxu0 %v2015
    %v2223 = vpop.f32.mrf.mxu0
    %v2224 = vadd.f32 0.0, %v2223
    %2225 = vmatmul.f32.gmra.mxu0 %v2018
    %v2226 = vpop.f32.mrf.mxu0
    %v2227 = vadd.f32 0.0, %v2226
    %2228 = vmatmul.f32.gmra.mxu0 %v2021
    %v2229 = vpop.f32.mrf.mxu0
    %v2230 = vadd.f32 0.0, %v2229
    %2231 = vmatmul.f32.gmra.mxu0 %v2024
    %v2232 = vpop.f32.mrf.mxu0
    %v2233 = vadd.f32 0.0, %v2232
    %2234 = vmatmul.f32.gmra.mxu0 %v2027
    %v2235 = vpop.f32.mrf.mxu0
    %v2236 = vadd.f32 0.0, %v2235
    %2237 = vmatmul.f32.gmra.mxu0 %v2030
    %v2238 = vpop.f32.mrf.mxu0
    %v2239 = vadd.f32 0.0, %v2238
    %2240 = vmatmul.f32.gmra.mxu0 %v2033
    %v2241 = vpop.f32.mrf.mxu0
    %v2242 = vadd.f32 0.0, %v2241
    %2243 = vdwg.mxu0
    %v2244 = vmul.f32 %v2053, %v41
    %v2245 = vmul.f32 %v2056, %v41
    %v2246 = vmul.f32 %v2059, %v41
    %v2247 = vmul.f32 %v2062, %v41
    %v2248 = vmul.f32 %v2065, %v41
    %v2249 = vmul.f32 %v2068, %v41
    %v2250 = vmul.f32 %v2071, %v41
    %v2251 = vmul.f32 %v2074, %v41
    %v2252 = vmul.f32 %v2077, %v45
    %v2253 = vmul.f32 %v2080, %v45
    %v2254 = vmul.f32 %v2083, %v45
    %v2255 = vmul.f32 %v2086, %v45
    %v2256 = vmul.f32 %v2089, %v45
    %v2257 = vmul.f32 %v2092, %v45
    %v2258 = vmul.f32 %v2095, %v45
    %v2259 = vmul.f32 %v2098, %v45
    %v2260 = vadd.f32 %v2244, %v2252
    %v2261 = vadd.f32 %v2245, %v2253
    %v2262 = vadd.f32 %v2246, %v2254
    %v2263 = vadd.f32 %v2247, %v2255
    %v2264 = vadd.f32 %v2248, %v2256
    %v2265 = vadd.f32 %v2249, %v2257
    %v2266 = vadd.f32 %v2250, %v2258
    %v2267 = vadd.f32 %v2251, %v2259
    %v2268 = vmul.f32 %v2101, %v49
    %v2269 = vmul.f32 %v2104, %v49
    %v2270 = vmul.f32 %v2107, %v49
    %v2271 = vmul.f32 %v2110, %v49
    %v2272 = vmul.f32 %v2113, %v49
    %v2273 = vmul.f32 %v2116, %v49
    %v2274 = vmul.f32 %v2119, %v49
    %v2275 = vmul.f32 %v2122, %v49
    %v2276 = vadd.f32 %v2260, %v2268
    %v2277 = vadd.f32 %v2261, %v2269
    %v2278 = vadd.f32 %v2262, %v2270
    %v2279 = vadd.f32 %v2263, %v2271
    %v2280 = vadd.f32 %v2264, %v2272
    %v2281 = vadd.f32 %v2265, %v2273
    %v2282 = vadd.f32 %v2266, %v2274
    %v2283 = vadd.f32 %v2267, %v2275
    %v2284 = vmul.f32 %v2125, %v53
    %v2285 = vmul.f32 %v2128, %v53
    %v2286 = vmul.f32 %v2131, %v53
    %v2287 = vmul.f32 %v2134, %v53
    %v2288 = vmul.f32 %v2137, %v53
    %v2289 = vmul.f32 %v2140, %v53
    %v2290 = vmul.f32 %v2143, %v53
    %v2291 = vmul.f32 %v2146, %v53
    %v2292 = vadd.f32 %v2276, %v2284
    %v2293 = vadd.f32 %v2277, %v2285
    %v2294 = vadd.f32 %v2278, %v2286
    %v2295 = vadd.f32 %v2279, %v2287
    %v2296 = vadd.f32 %v2280, %v2288
    %v2297 = vadd.f32 %v2281, %v2289
    %v2298 = vadd.f32 %v2282, %v2290
    %v2299 = vadd.f32 %v2283, %v2291
    %v2300 = vmul.f32 %v2149, %v57
    %v2301 = vmul.f32 %v2152, %v57
    %v2302 = vmul.f32 %v2155, %v57
    %v2303 = vmul.f32 %v2158, %v57
    %v2304 = vmul.f32 %v2161, %v57
    %v2305 = vmul.f32 %v2164, %v57
    %v2306 = vmul.f32 %v2167, %v57
    %v2307 = vmul.f32 %v2170, %v57
    %v2308 = vadd.f32 %v2292, %v2300
    %v2309 = vadd.f32 %v2293, %v2301
    %v2310 = vadd.f32 %v2294, %v2302
    %v2311 = vadd.f32 %v2295, %v2303
    %v2312 = vadd.f32 %v2296, %v2304
    %v2313 = vadd.f32 %v2297, %v2305
    %v2314 = vadd.f32 %v2298, %v2306
    %v2315 = vadd.f32 %v2299, %v2307
    %v2316 = vmul.f32 %v2173, %v61
    %v2317 = vmul.f32 %v2176, %v61
    %v2318 = vmul.f32 %v2179, %v61
    %v2319 = vmul.f32 %v2182, %v61
    %v2320 = vmul.f32 %v2185, %v61
    %v2321 = vmul.f32 %v2188, %v61
    %v2322 = vmul.f32 %v2191, %v61
    %v2323 = vmul.f32 %v2194, %v61
    %v2324 = vadd.f32 %v2308, %v2316
    %v2325 = vadd.f32 %v2309, %v2317
    %v2326 = vadd.f32 %v2310, %v2318
    %v2327 = vadd.f32 %v2311, %v2319
    %v2328 = vadd.f32 %v2312, %v2320
    %v2329 = vadd.f32 %v2313, %v2321
    %v2330 = vadd.f32 %v2314, %v2322
    %v2331 = vadd.f32 %v2315, %v2323
    %v2332 = vmul.f32 %v2197, %v65
    %v2333 = vmul.f32 %v2200, %v65
    %v2334 = vmul.f32 %v2203, %v65
    %v2335 = vmul.f32 %v2206, %v65
    %v2336 = vmul.f32 %v2209, %v65
    %v2337 = vmul.f32 %v2212, %v65
    %v2338 = vmul.f32 %v2215, %v65
    %v2339 = vmul.f32 %v2218, %v65
    %v2340 = vadd.f32 %v2324, %v2332
    %v2341 = vadd.f32 %v2325, %v2333
    %v2342 = vadd.f32 %v2326, %v2334
    %v2343 = vadd.f32 %v2327, %v2335
    %v2344 = vadd.f32 %v2328, %v2336
    %v2345 = vadd.f32 %v2329, %v2337
    %v2346 = vadd.f32 %v2330, %v2338
    %v2347 = vadd.f32 %v2331, %v2339
    %v2348 = vmul.f32 %v2221, %v69
    %v2349 = vmul.f32 %v2224, %v69
    %v2350 = vmul.f32 %v2227, %v69
    %v2351 = vmul.f32 %v2230, %v69
    %v2352 = vmul.f32 %v2233, %v69
    %v2353 = vmul.f32 %v2236, %v69
    %v2354 = vmul.f32 %v2239, %v69
    %v2355 = vmul.f32 %v2242, %v69
    %v2356 = vadd.f32 %v2340, %v2348
    %v2357 = vadd.f32 %v2341, %v2349
    %v2358 = vadd.f32 %v2342, %v2350
    %v2359 = vadd.f32 %v2343, %v2351
    %v2360 = vadd.f32 %v2344, %v2352
    %v2361 = vadd.f32 %v2345, %v2353
    %v2362 = vadd.f32 %v2346, %v2354
    %v2363 = vadd.f32 %v2347, %v2355
    %v2364 = vld [vmem:[#allocation2 + $0x18] sm:$0xff]
    %v2365 = vld [vmem:[#allocation2 + $0x78] sm:$0xff]
    %v2366 = vld [vmem:[#allocation2 + $0xd8] sm:$0xff]
    %v2367 = vld [vmem:[#allocation2 + $0x138] sm:$0xff]
    %v2368 = vld [vmem:[#allocation2 + $0x198] sm:$0xff]
    %v2369 = vld [vmem:[#allocation2 + $0x1f8] sm:$0xff]
    %v2370 = vld [vmem:[#allocation2 + $0x258] sm:$0xff]
    %v2371 = vld [vmem:[#allocation2 + $0x2b8] sm:$0xff]
    %v2372 = vld [vmem:[#allocation2 + $0x318] sm:$0xff]
    %v2373 = vld [vmem:[#allocation2 + $0x378] sm:$0xff]
    %v2374 = vld [vmem:[#allocation2 + $0x3d8] sm:$0xff]
    %v2375 = vld [vmem:[#allocation2 + $0x438] sm:$0xff]
    %v2376 = vld [vmem:[#allocation2 + $0x498] sm:$0xff]
    %v2377 = vld [vmem:[#allocation2 + $0x4f8] sm:$0xff]
    %v2378 = vld [vmem:[#allocation2 + $0x558] sm:$0xff]
    %v2379 = vld [vmem:[#allocation2 + $0x5b8] sm:$0xff]
    %v2380 = vld [vmem:[%s4 + $0x3] sm:$0x1]
    %v2381 = vperm.slane %v2380, 0
    %2382 = vmatpush.msra.mxu0 %v2379
    %2383 = vmatpush.msra.mxu0 %v2378
    %2384 = vmatpush.msra.mxu0 %v2377
    %2385 = vmatpush.msra.mxu0 %v2376
    %2386 = vmatpush.msra.mxu0 %v2375
    %2387 = vmatpush.msra.mxu0 %v2374
    %2388 = vmatpush.msra.mxu0 %v2373
    %2389 = vmatpush.msra.mxu0 %v2372
    %2390 = vmatpush.msra.mxu0 %v2371
    %2391 = vmatpush.msra.mxu0 %v2370
    %2392 = vmatpush.msra.mxu0 %v2369
    %2393 = vmatpush.msra.mxu0 %v2368
    %2394 = vmatpush.msra.mxu0 %v2367
    %2395 = vmatpush.msra.mxu0 %v2366
    %2396 = vmatpush.msra.mxu0 %v2365
    %2397 = vmatpush.msra.mxu0 %v2364
    %2398 = vmatmul.f32.gmra.mxu0 %v2356
    %v2399 = vpop.f32.mrf.mxu0
    %v2400 = vadd.f32 %v2381, %v2399
    %2401 = vmatmul.f32.gmra.mxu0 %v2357
    %v2402 = vpop.f32.mrf.mxu0
    %v2403 = vadd.f32 %v2381, %v2402
    %2404 = vmatmul.f32.gmra.mxu0 %v2358
    %v2405 = vpop.f32.mrf.mxu0
    %v2406 = vadd.f32 %v2381, %v2405
    %2407 = vmatmul.f32.gmra.mxu0 %v2359
    %v2408 = vpop.f32.mrf.mxu0
    %v2409 = vadd.f32 %v2381, %v2408
    %2410 = vmatmul.f32.gmra.mxu0 %v2360
    %v2411 = vpop.f32.mrf.mxu0
    %v2412 = vadd.f32 %v2381, %v2411
    %2413 = vmatmul.f32.gmra.mxu0 %v2361
    %v2414 = vpop.f32.mrf.mxu0
    %v2415 = vadd.f32 %v2381, %v2414
    %2416 = vmatmul.f32.gmra.mxu0 %v2362
    %v2417 = vpop.f32.mrf.mxu0
    %v2418 = vadd.f32 %v2381, %v2417
    %2419 = vmatmul.f32.gmra.mxu0 %v2363
    %v2420 = vpop.f32.mrf.mxu0
    %v2421 = vadd.f32 %v2381, %v2420
    %2422 = vdwg.mxu0
    %v2423 = vadd.f32 %v125, %v2400
    %v2424 = vadd.f32 %v128, %v2403
    %v2425 = vadd.f32 %v131, %v2406
    %v2426 = vadd.f32 %v134, %v2409
    %v2427 = vadd.f32 %v137, %v2412
    %v2428 = vadd.f32 %v140, %v2415
    %v2429 = vadd.f32 %v143, %v2418
    %v2430 = vadd.f32 %v146, %v2421
    %v2431 = vld [vmem:[%s4 + $0xa] sm:$0x1]
    %v2432 = vld [vmem:[%s4 + $0xb] sm:$0x1]
    %2433 = vadd.xlane.f32.xlu0 %v2423
    %v2434 = vpop.xlane.xlu0 %2433
    %2435 = vadd.xlane.f32.xlu0 %v2424
    %v2436 = vpop.xlane.xlu0 %2435
    %2437 = vadd.xlane.f32.xlu0 %v2425
    %v2438 = vpop.xlane.xlu0 %2437
    %2439 = vadd.xlane.f32.xlu0 %v2426
    %v2440 = vpop.xlane.xlu0 %2439
    %2441 = vadd.xlane.f32.xlu0 %v2427
    %v2442 = vpop.xlane.xlu0 %2441
    %2443 = vadd.xlane.f32.xlu0 %v2428
    %v2444 = vpop.xlane.xlu0 %2443
    %2445 = vadd.xlane.f32.xlu0 %v2429
    %v2446 = vpop.xlane.xlu0 %2445
    %2447 = vadd.xlane.f32.xlu0 %v2430
    %v2448 = vpop.xlane.xlu0 %2447
    %v2449 = vrcp.pop 128.0
    %v2450 = vmul.f32 128.0, %v2449
    %v2451 = vsub.f32 1.0, %v2450
    %v2452 = vmul.f32 %v2449, %v2451
    %v2453 = vadd.f32 %v2449, %v2452
    %vm2454 = vweird.f32 %v2449
    %v2455 = vsel %vm2454, %v2449, %v2453
    %v2456 = vmul.f32 %v2434, %v2455
    %v2457 = vmul.f32 %v2436, %v2455
    %v2458 = vmul.f32 %v2438, %v2455
    %v2459 = vmul.f32 %v2440, %v2455
    %v2460 = vmul.f32 %v2442, %v2455
    %v2461 = vmul.f32 %v2444, %v2455
    %v2462 = vmul.f32 %v2446, %v2455
    %v2463 = vmul.f32 %v2448, %v2455
    %v2464 = vsub.f32 %v2423, %v2456
    %v2465 = vsub.f32 %v2424, %v2457
    %v2466 = vsub.f32 %v2425, %v2458
    %v2467 = vsub.f32 %v2426, %v2459
    %v2468 = vsub.f32 %v2427, %v2460
    %v2469 = vsub.f32 %v2428, %v2461
    %v2470 = vsub.f32 %v2429, %v2462
    %v2471 = vsub.f32 %v2430, %v2463
    %v2472 = vmul.f32 %v2464, %v2464
    %v2473 = vmul.f32 %v2465, %v2465
    %v2474 = vmul.f32 %v2466, %v2466
    %v2475 = vmul.f32 %v2467, %v2467
    %v2476 = vmul.f32 %v2468, %v2468
    %v2477 = vmul.f32 %v2469, %v2469
    %v2478 = vmul.f32 %v2470, %v2470
    %v2479 = vmul.f32 %v2471, %v2471
    %2480 = vadd.xlane.f32.xlu0 %v2472
    %v2481 = vpop.xlane.xlu0 %2480
    %2482 = vadd.xlane.f32.xlu0 %v2473
    %v2483 = vpop.xlane.xlu0 %2482
    %2484 = vadd.xlane.f32.xlu0 %v2474
    %v2485 = vpop.xlane.xlu0 %2484
    %2486 = vadd.xlane.f32.xlu0 %v2475
    %v2487 = vpop.xlane.xlu0 %2486
    %2488 = vadd.xlane.f32.xlu0 %v2476
    %v2489 = vpop.xlane.xlu0 %2488
    %2490 = vadd.xlane.f32.xlu0 %v2477
    %v2491 = vpop.xlane.xlu0 %2490
    %2492 = vadd.xlane.f32.xlu0 %v2478
    %v2493 = vpop.xlane.xlu0 %2492
    %2494 = vadd.xlane.f32.xlu0 %v2479
    %v2495 = vpop.xlane.xlu0 %2494
    %v2496 = vmul.f32 %v2481, %v2455
    %v2497 = vmul.f32 %v2483, %v2455
    %v2498 = vmul.f32 %v2485, %v2455
    %v2499 = vmul.f32 %v2487, %v2455
    %v2500 = vmul.f32 %v2489, %v2455
    %v2501 = vmul.f32 %v2491, %v2455
    %v2502 = vmul.f32 %v2493, %v2455
    %v2503 = vmul.f32 %v2495, %v2455
    %v2504 = vadd.f32 %v2496, 1e-05
    %v2505 = vadd.f32 %v2497, 1e-05
    %v2506 = vadd.f32 %v2498, 1e-05
    %v2507 = vadd.f32 %v2499, 1e-05
    %v2508 = vadd.f32 %v2500, 1e-05
    %v2509 = vadd.f32 %v2501, 1e-05
    %v2510 = vadd.f32 %v2502, 1e-05
    %v2511 = vadd.f32 %v2503, 1e-05
    %v2512 = vrsqrt.pop %v2504
    %v2513 = vmul.f32 %v2512, %v2504
    %v2514 = vmul.f32 %v2513, %v2512
    %v2515 = vmul.f32 0.5, %v2514
    %v2516 = vsub.f32 1.5, %v2515
    %v2517 = vmul.f32 %v2512, %v2516
    %vm2518 = vweird.f32 %v2504
    %vm2519 = vweird.f32 %v2512
    %vm2520 = vmor %vm2518, %vm2519
    %v2521 = vsel %vm2520, %v2512, %v2517
    %v2522 = vrsqrt.pop %v2505
    %v2523 = vmul.f32 %v2522, %v2505
    %v2524 = vmul.f32 %v2523, %v2522
    %v2525 = vmul.f32 0.5, %v2524
    %v2526 = vsub.f32 1.5, %v2525
    %v2527 = vmul.f32 %v2522, %v2526
    %vm2528 = vweird.f32 %v2505
    %vm2529 = vweird.f32 %v2522
    %vm2530 = vmor %vm2528, %vm2529
    %v2531 = vsel %vm2530, %v2522, %v2527
    %v2532 = vrsqrt.pop %v2506
    %v2533 = vmul.f32 %v2532, %v2506
    %v2534 = vmul.f32 %v2533, %v2532
    %v2535 = vmul.f32 0.5, %v2534
    %v2536 = vsub.f32 1.5, %v2535
    %v2537 = vmul.f32 %v2532, %v2536
    %vm2538 = vweird.f32 %v2506
    %vm2539 = vweird.f32 %v2532
    %vm2540 = vmor %vm2538, %vm2539
    %v2541 = vsel %vm2540, %v2532, %v2537
    %v2542 = vrsqrt.pop %v2507
    %v2543 = vmul.f32 %v2542, %v2507
    %v2544 = vmul.f32 %v2543, %v2542
    %v2545 = vmul.f32 0.5, %v2544
    %v2546 = vsub.f32 1.5, %v2545
    %v2547 = vmul.f32 %v2542, %v2546
    %vm2548 = vweird.f32 %v2507
    %vm2549 = vweird.f32 %v2542
    %vm2550 = vmor %vm2548, %vm2549
    %v2551 = vsel %vm2550, %v2542, %v2547
    %v2552 = vrsqrt.pop %v2508
    %v2553 = vmul.f32 %v2552, %v2508
    %v2554 = vmul.f32 %v2553, %v2552
    %v2555 = vmul.f32 0.5, %v2554
    %v2556 = vsub.f32 1.5, %v2555
    %v2557 = vmul.f32 %v2552, %v2556
    %vm2558 = vweird.f32 %v2508
    %vm2559 = vweird.f32 %v2552
    %vm2560 = vmor %vm2558, %vm2559
    %v2561 = vsel %vm2560, %v2552, %v2557
    %v2562 = vrsqrt.pop %v2509
    %v2563 = vmul.f32 %v2562, %v2509
    %v2564 = vmul.f32 %v2563, %v2562
    %v2565 = vmul.f32 0.5, %v2564
    %v2566 = vsub.f32 1.5, %v2565
    %v2567 = vmul.f32 %v2562, %v2566
    %vm2568 = vweird.f32 %v2509
    %vm2569 = vweird.f32 %v2562
    %vm2570 = vmor %vm2568, %vm2569
    %v2571 = vsel %vm2570, %v2562, %v2567
    %v2572 = vrsqrt.pop %v2510
    %v2573 = vmul.f32 %v2572, %v2510
    %v2574 = vmul.f32 %v2573, %v2572
    %v2575 = vmul.f32 0.5, %v2574
    %v2576 = vsub.f32 1.5, %v2575
    %v2577 = vmul.f32 %v2572, %v2576
    %vm2578 = vweird.f32 %v2510
    %vm2579 = vweird.f32 %v2572
    %vm2580 = vmor %vm2578, %vm2579
    %v2581 = vsel %vm2580, %v2572, %v2577
    %v2582 = vrsqrt.pop %v2511
    %v2583 = vmul.f32 %v2582, %v2511
    %v2584 = vmul.f32 %v2583, %v2582
    %v2585 = vmul.f32 0.5, %v2584
    %v2586 = vsub.f32 1.5, %v2585
    %v2587 = vmul.f32 %v2582, %v2586
    %vm2588 = vweird.f32 %v2511
    %vm2589 = vweird.f32 %v2582
    %vm2590 = vmor %vm2588, %vm2589
    %v2591 = vsel %vm2590, %v2582, %v2587
    %v2592 = vmul.f32 %v2464, %v2521
    %v2593 = vmul.f32 %v2465, %v2531
    %v2594 = vmul.f32 %v2466, %v2541
    %v2595 = vmul.f32 %v2467, %v2551
    %v2596 = vmul.f32 %v2468, %v2561
    %v2597 = vmul.f32 %v2469, %v2571
    %v2598 = vmul.f32 %v2470, %v2581
    %v2599 = vmul.f32 %v2471, %v2591
    %v2600 = vperm.slane %v2431, 0
    %v2601 = vmul.f32 %v2592, %v2600
    %v2602 = vmul.f32 %v2593, %v2600
    %v2603 = vmul.f32 %v2594, %v2600
    %v2604 = vmul.f32 %v2595, %v2600
    %v2605 = vmul.f32 %v2596, %v2600
    %v2606 = vmul.f32 %v2597, %v2600
    %v2607 = vmul.f32 %v2598, %v2600
    %v2608 = vmul.f32 %v2599, %v2600
    %v2609 = vperm.slane %v2432, 0
    %v2610 = vadd.f32 %v2601, %v2609
    %v2611 = vadd.f32 %v2602, %v2609
    %v2612 = vadd.f32 %v2603, %v2609
    %v2613 = vadd.f32 %v2604, %v2609
    %v2614 = vadd.f32 %v2605, %v2609
    %v2615 = vadd.f32 %v2606, %v2609
    %v2616 = vadd.f32 %v2607, %v2609
    %v2617 = vadd.f32 %v2608, %v2609
    %v2618 = vld [vmem:[#allocation2 + $0x20] sm:$0xff]
    %v2619 = vld [vmem:[#allocation2 + $0x80] sm:$0xff]
    %v2620 = vld [vmem:[#allocation2 + $0xe0] sm:$0xff]
    %v2621 = vld [vmem:[#allocation2 + $0x140] sm:$0xff]
    %v2622 = vld [vmem:[#allocation2 + $0x1a0] sm:$0xff]
    %v2623 = vld [vmem:[#allocation2 + $0x200] sm:$0xff]
    %v2624 = vld [vmem:[#allocation2 + $0x260] sm:$0xff]
    %v2625 = vld [vmem:[#allocation2 + $0x2c0] sm:$0xff]
    %v2626 = vld [vmem:[#allocation2 + $0x320] sm:$0xff]
    %v2627 = vld [vmem:[#allocation2 + $0x380] sm:$0xff]
    %v2628 = vld [vmem:[#allocation2 + $0x3e0] sm:$0xff]
    %v2629 = vld [vmem:[#allocation2 + $0x440] sm:$0xff]
    %v2630 = vld [vmem:[#allocation2 + $0x4a0] sm:$0xff]
    %v2631 = vld [vmem:[#allocation2 + $0x500] sm:$0xff]
    %v2632 = vld [vmem:[#allocation2 + $0x560] sm:$0xff]
    %v2633 = vld [vmem:[#allocation2 + $0x5c0] sm:$0xff]
    %v2634 = vld [vmem:[%s4 + $0x4] sm:$0x1]
    %v2635 = vperm.slane %v2634, 0
    %2636 = vmatpush.msra.mxu0 %v2633
    %2637 = vmatpush.msra.mxu0 %v2632
    %2638 = vmatpush.msra.mxu0 %v2631
    %2639 = vmatpush.msra.mxu0 %v2630
    %2640 = vmatpush.msra.mxu0 %v2629
    %2641 = vmatpush.msra.mxu0 %v2628
    %2642 = vmatpush.msra.mxu0 %v2627
    %2643 = vmatpush.msra.mxu0 %v2626
    %2644 = vmatpush.msra.mxu0 %v2625
    %2645 = vmatpush.msra.mxu0 %v2624
    %2646 = vmatpush.msra.mxu0 %v2623
    %2647 = vmatpush.msra.mxu0 %v2622
    %2648 = vmatpush.msra.mxu0 %v2621
    %2649 = vmatpush.msra.mxu0 %v2620
    %2650 = vmatpush.msra.mxu0 %v2619
    %2651 = vmatpush.msra.mxu0 %v2618
    %2652 = vmatmul.f32.gmra.mxu0 %v2610
    %v2653 = vpop.f32.mrf.mxu0
    %v2654 = vadd.f32 %v2635, %v2653
    %2655 = vmatmul.f32.gmra.mxu0 %v2611
    %v2656 = vpop.f32.mrf.mxu0
    %v2657 = vadd.f32 %v2635, %v2656
    %2658 = vmatmul.f32.gmra.mxu0 %v2612
    %v2659 = vpop.f32.mrf.mxu0
    %v2660 = vadd.f32 %v2635, %v2659
    %2661 = vmatmul.f32.gmra.mxu0 %v2613
    %v2662 = vpop.f32.mrf.mxu0
    %v2663 = vadd.f32 %v2635, %v2662
    %2664 = vmatmul.f32.gmra.mxu0 %v2614
    %v2665 = vpop.f32.mrf.mxu0
    %v2666 = vadd.f32 %v2635, %v2665
    %2667 = vmatmul.f32.gmra.mxu0 %v2615
    %v2668 = vpop.f32.mrf.mxu0
    %v2669 = vadd.f32 %v2635, %v2668
    %2670 = vmatmul.f32.gmra.mxu0 %v2616
    %v2671 = vpop.f32.mrf.mxu0
    %v2672 = vadd.f32 %v2635, %v2671
    %2673 = vmatmul.f32.gmra.mxu0 %v2617
    %v2674 = vpop.f32.mrf.mxu0
    %v2675 = vadd.f32 %v2635, %v2674
    %2676 = vdwg.mxu0
    %v2677 = vld [vmem:[#allocation2 + $0x28] sm:$0xff]
    %v2678 = vld [vmem:[#allocation2 + $0x30] sm:$0xff]
    %v2679 = vld [vmem:[#allocation2 + $0x88] sm:$0xff]
    %v2680 = vld [vmem:[#allocation2 + $0x90] sm:$0xff]
    %v2681 = vld [vmem:[#allocation2 + $0xe8] sm:$0xff]
    %v2682 = vld [vmem:[#allocation2 + $0xf0] sm:$0xff]
    %v2683 = vld [vmem:[#allocation2 + $0x148] sm:$0xff]
    %v2684 = vld [vmem:[#allocation2 + $0x150] sm:$0xff]
    %v2685 = vld [vmem:[#allocation2 + $0x1a8] sm:$0xff]
    %v2686 = vld [vmem:[#allocation2 + $0x1b0] sm:$0xff]
    %v2687 = vld [vmem:[#allocation2 + $0x208] sm:$0xff]
    %v2688 = vld [vmem:[#allocation2 + $0x210] sm:$0xff]
    %v2689 = vld [vmem:[#allocation2 + $0x268] sm:$0xff]
    %v2690 = vld [vmem:[#allocation2 + $0x270] sm:$0xff]
    %v2691 = vld [vmem:[#allocation2 + $0x2c8] sm:$0xff]
    %v2692 = vld [vmem:[#allocation2 + $0x2d0] sm:$0xff]
    %v2693 = vld [vmem:[#allocation2 + $0x328] sm:$0xff]
    %v2694 = vld [vmem:[#allocation2 + $0x330] sm:$0xff]
    %v2695 = vld [vmem:[#allocation2 + $0x388] sm:$0xff]
    %v2696 = vld [vmem:[#allocation2 + $0x390] sm:$0xff]
    %v2697 = vld [vmem:[#allocation2 + $0x3e8] sm:$0xff]
    %v2698 = vld [vmem:[#allocation2 + $0x3f0] sm:$0xff]
    %v2699 = vld [vmem:[#allocation2 + $0x448] sm:$0xff]
    %v2700 = vld [vmem:[#allocation2 + $0x450] sm:$0xff]
    %v2701 = vld [vmem:[#allocation2 + $0x4a8] sm:$0xff]
    %v2702 = vld [vmem:[#allocation2 + $0x4b0] sm:$0xff]
    %v2703 = vld [vmem:[#allocation2 + $0x508] sm:$0xff]
    %v2704 = vld [vmem:[#allocation2 + $0x510] sm:$0xff]
    %v2705 = vld [vmem:[#allocation2 + $0x568] sm:$0xff]
    %v2706 = vld [vmem:[#allocation2 + $0x570] sm:$0xff]
    %v2707 = vld [vmem:[#allocation2 + $0x5c8] sm:$0xff]
    %v2708 = vld [vmem:[#allocation2 + $0x5d0] sm:$0xff]
    %2709 = vmatpush.msra.mxu0 %v2707
    %2710 = vmatpush.msra.mxu0 %v2705
    %2711 = vmatpush.msra.mxu0 %v2703
    %2712 = vmatpush.msra.mxu0 %v2701
    %2713 = vmatpush.msra.mxu0 %v2699
    %2714 = vmatpush.msra.mxu0 %v2697
    %2715 = vmatpush.msra.mxu0 %v2695
    %2716 = vmatpush.msra.mxu0 %v2693
    %2717 = vmatpush.msra.mxu0 %v2691
    %2718 = vmatpush.msra.mxu0 %v2689
    %2719 = vmatpush.msra.mxu0 %v2687
    %2720 = vmatpush.msra.mxu0 %v2685
    %2721 = vmatpush.msra.mxu0 %v2683
    %2722 = vmatpush.msra.mxu0 %v2681
    %2723 = vmatpush.msra.mxu0 %v2679
    %2724 = vmatpush.msra.mxu0 %v2677
    %2725 = vmatmul.f32.gmra.mxu0 %v148
    %v2726 = vpop.f32.mrf.mxu0
    %v2727 = vadd.f32 0.0, %v2726
    %2728 = vmatmul.f32.gmra.mxu0 %v149
    %v2729 = vpop.f32.mrf.mxu0
    %v2730 = vadd.f32 0.0, %v2729
    %2731 = vdwg.mxu0
    %2732 = vmatpush.msra.mxu0 %v2708
    %2733 = vmatpush.msra.mxu0 %v2706
    %2734 = vmatpush.msra.mxu0 %v2704
    %2735 = vmatpush.msra.mxu0 %v2702
    %2736 = vmatpush.msra.mxu0 %v2700
    %2737 = vmatpush.msra.mxu0 %v2698
    %2738 = vmatpush.msra.mxu0 %v2696
    %2739 = vmatpush.msra.mxu0 %v2694
    %2740 = vmatpush.msra.mxu0 %v2692
    %2741 = vmatpush.msra.mxu0 %v2690
    %2742 = vmatpush.msra.mxu0 %v2688
    %2743 = vmatpush.msra.mxu0 %v2686
    %2744 = vmatpush.msra.mxu0 %v2684
    %2745 = vmatpush.msra.mxu0 %v2682
    %2746 = vmatpush.msra.mxu0 %v2680
    %2747 = vmatpush.msra.mxu0 %v2678
    %2748 = vmatmul.f32.gmra.mxu0 %v148
    %v2749 = vpop.f32.mrf.mxu0
    %v2750 = vadd.f32 0.0, %v2749
    %2751 = vmatmul.f32.gmra.mxu0 %v149
    %v2752 = vpop.f32.mrf.mxu0
    %v2753 = vadd.f32 0.0, %v2752
    %2754 = vdwg.mxu0
    %v2755 = vld [vmem:[%s4 + $0x5] sm:$0x1]
    %v2756 = vperm.slane %v2755, 0
    %v2757 = vadd.f32 %v2727, %v2756
    %v2758 = vadd.f32 %v2730, %v2756
    %v2759 = vld [vmem:[%s4 + $0x6] sm:$0x1]
    %v2760 = vperm.slane %v2759, 0
    %v2761 = vadd.f32 %v2750, %v2760
    %v2762 = vadd.f32 %v2753, %v2760
    %v2763 = vmul.f32 %v2757, %v41
    %v2764 = vmul.f32 %v2758, %v41
    %v2765 = vmul.f32 %v2757, %v45
    %v2766 = vmul.f32 %v2758, %v45
    %v2767 = vmul.f32 %v2757, %v49
    %v2768 = vmul.f32 %v2758, %v49
    %v2769 = vmul.f32 %v2757, %v53
    %v2770 = vmul.f32 %v2758, %v53
    %v2771 = vmul.f32 %v2757, %v57
    %v2772 = vmul.f32 %v2758, %v57
    %v2773 = vmul.f32 %v2757, %v61
    %v2774 = vmul.f32 %v2758, %v61
    %v2775 = vmul.f32 %v2757, %v65
    %v2776 = vmul.f32 %v2758, %v65
    %v2777 = vmul.f32 %v2757, %v69
    %v2778 = vmul.f32 %v2758, %v69
    %v2779 = vmul.f32 %v2761, %v41
    %v2780 = vmul.f32 %v2762, %v41
    %v2781 = vmul.f32 %v2761, %v45
    %v2782 = vmul.f32 %v2762, %v45
    %v2783 = vmul.f32 %v2761, %v49
    %v2784 = vmul.f32 %v2762, %v49
    %v2785 = vmul.f32 %v2761, %v53
    %v2786 = vmul.f32 %v2762, %v53
    %v2787 = vmul.f32 %v2761, %v57
    %v2788 = vmul.f32 %v2762, %v57
    %v2789 = vmul.f32 %v2761, %v61
    %v2790 = vmul.f32 %v2762, %v61
    %v2791 = vmul.f32 %v2761, %v65
    %v2792 = vmul.f32 %v2762, %v65
    %v2793 = vmul.f32 %v2761, %v69
    %v2794 = vmul.f32 %v2762, %v69
    %2795 = vmatpush.xpose.msra.mxu0 %v2778
    %2796 = vmatpush.xpose.msra.mxu0 %v2777
    %2797 = vmatpush.xpose.msra.mxu0 %v2776
    %2798 = vmatpush.xpose.msra.mxu0 %v2775
    %2799 = vmatpush.xpose.msra.mxu0 %v2774
    %2800 = vmatpush.xpose.msra.mxu0 %v2773
    %2801 = vmatpush.xpose.msra.mxu0 %v2772
    %2802 = vmatpush.xpose.msra.mxu0 %v2771
    %2803 = vmatpush.xpose.msra.mxu0 %v2770
    %2804 = vmatpush.xpose.msra.mxu0 %v2769
    %2805 = vmatpush.xpose.msra.mxu0 %v2768
    %2806 = vmatpush.xpose.msra.mxu0 %v2767
    %2807 = vmatpush.xpose.msra.mxu0 %v2766
    %2808 = vmatpush.xpose.msra.mxu0 %v2765
    %2809 = vmatpush.xpose.msra.mxu0 %v2764
    %2810 = vmatpush.xpose.msra.mxu0 %v2763
    %2811 = vmatmul.f32.gmra.mxu0 %v2654
    %v2812 = vpop.f32.mrf.mxu0
    %v2813 = vadd.f32 0.0, %v2812
    %2814 = vmatmul.f32.gmra.mxu0 %v2657
    %v2815 = vpop.f32.mrf.mxu0
    %v2816 = vadd.f32 0.0, %v2815
    %2817 = vmatmul.f32.gmra.mxu0 %v2660
    %v2818 = vpop.f32.mrf.mxu0
    %v2819 = vadd.f32 0.0, %v2818
    %2820 = vmatmul.f32.gmra.mxu0 %v2663
    %v2821 = vpop.f32.mrf.mxu0
    %v2822 = vadd.f32 0.0, %v2821
    %2823 = vmatmul.f32.gmra.mxu0 %v2666
    %v2824 = vpop.f32.mrf.mxu0
    %v2825 = vadd.f32 0.0, %v2824
    %2826 = vmatmul.f32.gmra.mxu0 %v2669
    %v2827 = vpop.f32.mrf.mxu0
    %v2828 = vadd.f32 0.0, %v2827
    %2829 = vmatmul.f32.gmra.mxu0 %v2672
    %v2830 = vpop.f32.mrf.mxu0
    %v2831 = vadd.f32 0.0, %v2830
    %2832 = vmatmul.f32.gmra.mxu0 %v2675
    %v2833 = vpop.f32.mrf.mxu0
    %v2834 = vadd.f32 0.0, %v2833
    %2835 = vdwg.mxu0
    %2836 = vmax.xlane.f32.xlu0 %v2813
    %v2837 = vpop.xlane.xlu0 %2836
    %2838 = vmax.xlane.f32.xlu0 %v2816
    %v2839 = vpop.xlane.xlu0 %2838
    %2840 = vmax.xlane.f32.xlu0 %v2819
    %v2841 = vpop.xlane.xlu0 %2840
    %2842 = vmax.xlane.f32.xlu0 %v2822
    %v2843 = vpop.xlane.xlu0 %2842
    %2844 = vmax.xlane.f32.xlu0 %v2825
    %v2845 = vpop.xlane.xlu0 %2844
    %2846 = vmax.xlane.f32.xlu0 %v2828
    %v2847 = vpop.xlane.xlu0 %2846
    %2848 = vmax.xlane.f32.xlu0 %v2831
    %v2849 = vpop.xlane.xlu0 %2848
    %2850 = vmax.xlane.f32.xlu0 %v2834
    %v2851 = vpop.xlane.xlu0 %2850
    %v2852 = vsub.f32 %v2813, %v2837
    %v2853 = vsub.f32 %v2816, %v2839
    %v2854 = vsub.f32 %v2819, %v2841
    %v2855 = vsub.f32 %v2822, %v2843
    %v2856 = vsub.f32 %v2825, %v2845
    %v2857 = vsub.f32 %v2828, %v2847
    %v2858 = vsub.f32 %v2831, %v2849
    %v2859 = vsub.f32 %v2834, %v2851
    %v2860 = vmul.f32 %v2852, 1.442695
    %v2861 = vpow.pop %v2860
    %v2862 = vmul.f32 %v2853, 1.442695
    %v2863 = vpow.pop %v2862
    %v2864 = vmul.f32 %v2854, 1.442695
    %v2865 = vpow.pop %v2864
    %v2866 = vmul.f32 %v2855, 1.442695
    %v2867 = vpow.pop %v2866
    %v2868 = vmul.f32 %v2856, 1.442695
    %v2869 = vpow.pop %v2868
    %v2870 = vmul.f32 %v2857, 1.442695
    %v2871 = vpow.pop %v2870
    %v2872 = vmul.f32 %v2858, 1.442695
    %v2873 = vpow.pop %v2872
    %v2874 = vmul.f32 %v2859, 1.442695
    %v2875 = vpow.pop %v2874
    %v2876 = vshra.s32 %v37, 3
    %v2877 = vand.u32 %v2876, 1
    %vm2878 = vcmp.eq.s32.totalorder %v1074, %v2877
    %vm2879 = vcmp.eq.s32.totalorder %v1075, %v2877
    %vm2880 = vcmp.eq.s32.totalorder %v1076, %v2877
    %vm2881 = vcmp.eq.s32.totalorder %v1077, %v2877
    %vm2882 = vcmp.eq.s32.totalorder %v1078, %v2877
    %vm2883 = vcmp.eq.s32.totalorder %v1079, %v2877
    %vm2884 = vcmp.eq.s32.totalorder %v1080, %v2877
    %vm2885 = vcmp.eq.s32.totalorder %v1081, %v2877
    %v2886 = vsel %vm2878, %v2861, 0.0
    %v2887 = vsel %vm2879, %v2863, 0.0
    %v2888 = vsel %vm2880, %v2865, 0.0
    %v2889 = vsel %vm2881, %v2867, 0.0
    %v2890 = vsel %vm2882, %v2869, 0.0
    %v2891 = vsel %vm2883, %v2871, 0.0
    %v2892 = vsel %vm2884, %v2873, 0.0
    %v2893 = vsel %vm2885, %v2875, 0.0
    %v2894 = vld [vmem:[#allocation2 + $0x58] sm:$0xff]
    %v2895 = vld [vmem:[#allocation2 + $0xb8] sm:$0xff]
    %v2896 = vld [vmem:[#allocation2 + $0x118] sm:$0xff]
    %v2897 = vld [vmem:[#allocation2 + $0x178] sm:$0xff]
    %v2898 = vld [vmem:[#allocation2 + $0x1d8] sm:$0xff]
    %v2899 = vld [vmem:[#allocation2 + $0x238] sm:$0xff]
    %v2900 = vld [vmem:[#allocation2 + $0x298] sm:$0xff]
    %v2901 = vld [vmem:[#allocation2 + $0x2f8] sm:$0xff]
    %v2902 = vld [vmem:[#allocation2 + $0x358] sm:$0xff]
    %v2903 = vld [vmem:[#allocation2 + $0x3b8] sm:$0xff]
    %v2904 = vld [vmem:[#allocation2 + $0x418] sm:$0xff]
    %v2905 = vld [vmem:[#allocation2 + $0x478] sm:$0xff]
    %v2906 = vld [vmem:[#allocation2 + $0x4d8] sm:$0xff]
    %v2907 = vld [vmem:[#allocation2 + $0x538] sm:$0xff]
    %v2908 = vld [vmem:[#allocation2 + $0x598] sm:$0xff]
    %v2909 = vld [vmem:[#allocation2 + $0x5f8] sm:$0xff]
    %2910 = vmatpush.msra.mxu0 %v2909
    %2911 = vmatpush.msra.mxu0 %v2908
    %2912 = vmatpush.msra.mxu0 %v2907
    %2913 = vmatpush.msra.mxu0 %v2906
    %2914 = vmatpush.msra.mxu0 %v2905
    %2915 = vmatpush.msra.mxu0 %v2904
    %2916 = vmatpush.msra.mxu0 %v2903
    %2917 = vmatpush.msra.mxu0 %v2902
    %2918 = vmatpush.msra.mxu0 %v2901
    %2919 = vmatpush.msra.mxu0 %v2900
    %2920 = vmatpush.msra.mxu0 %v2899
    %2921 = vmatpush.msra.mxu0 %v2898
    %2922 = vmatpush.msra.mxu0 %v2897
    %2923 = vmatpush.msra.mxu0 %v2896
    %2924 = vmatpush.msra.mxu0 %v2895
    %2925 = vmatpush.msra.mxu0 %v2894
    %2926 = vmatmul.f32.gmra.mxu0 %v2886
    %v2927 = vpop.f32.mrf.mxu0
    %v2928 = vadd.f32 0.0, %v2927
    %2929 = vmatmul.f32.gmra.mxu0 %v2887
    %v2930 = vpop.f32.mrf.mxu0
    %v2931 = vadd.f32 0.0, %v2930
    %2932 = vmatmul.f32.gmra.mxu0 %v2888
    %v2933 = vpop.f32.mrf.mxu0
    %v2934 = vadd.f32 0.0, %v2933
    %2935 = vmatmul.f32.gmra.mxu0 %v2889
    %v2936 = vpop.f32.mrf.mxu0
    %v2937 = vadd.f32 0.0, %v2936
    %2938 = vmatmul.f32.gmra.mxu0 %v2890
    %v2939 = vpop.f32.mrf.mxu0
    %v2940 = vadd.f32 0.0, %v2939
    %2941 = vmatmul.f32.gmra.mxu0 %v2891
    %v2942 = vpop.f32.mrf.mxu0
    %v2943 = vadd.f32 0.0, %v2942
    %2944 = vmatmul.f32.gmra.mxu0 %v2892
    %v2945 = vpop.f32.mrf.mxu0
    %v2946 = vadd.f32 0.0, %v2945
    %2947 = vmatmul.f32.gmra.mxu0 %v2893
    %v2948 = vpop.f32.mrf.mxu0
    %v2949 = vadd.f32 0.0, %v2948
    %2950 = vdwg.mxu0
    %v2951 = vrcp.pop %v2928
    %v2952 = vrcp.pop %v2931
    %v2953 = vrcp.pop %v2934
    %v2954 = vrcp.pop %v2937
    %v2955 = vrcp.pop %v2940
    %v2956 = vrcp.pop %v2943
    %v2957 = vrcp.pop %v2946
    %v2958 = vrcp.pop %v2949
    %v2959 = vmul.f32 %v2928, %v2951
    %v2960 = vmul.f32 %v2931, %v2952
    %v2961 = vmul.f32 %v2934, %v2953
    %v2962 = vmul.f32 %v2937, %v2954
    %v2963 = vmul.f32 %v2940, %v2955
    %v2964 = vmul.f32 %v2943, %v2956
    %v2965 = vmul.f32 %v2946, %v2957
    %v2966 = vmul.f32 %v2949, %v2958
    %v2967 = vsub.f32 2.0, %v2959
    %v2968 = vsub.f32 2.0, %v2960
    %v2969 = vsub.f32 2.0, %v2961
    %v2970 = vsub.f32 2.0, %v2962
    %v2971 = vsub.f32 2.0, %v2963
    %v2972 = vsub.f32 2.0, %v2964
    %v2973 = vsub.f32 2.0, %v2965
    %v2974 = vsub.f32 2.0, %v2966
    %v2975 = vmul.f32 %v2951, %v2967
    %v2976 = vmul.f32 %v2952, %v2968
    %v2977 = vmul.f32 %v2953, %v2969
    %v2978 = vmul.f32 %v2954, %v2970
    %v2979 = vmul.f32 %v2955, %v2971
    %v2980 = vmul.f32 %v2956, %v2972
    %v2981 = vmul.f32 %v2957, %v2973
    %v2982 = vmul.f32 %v2958, %v2974
    %v2983 = vmul.f32 %v2886, %v2975
    %v2984 = vmul.f32 %v2887, %v2976
    %v2985 = vmul.f32 %v2888, %v2977
    %v2986 = vmul.f32 %v2889, %v2978
    %v2987 = vmul.f32 %v2890, %v2979
    %v2988 = vmul.f32 %v2891, %v2980
    %v2989 = vmul.f32 %v2892, %v2981
    %v2990 = vmul.f32 %v2893, %v2982
    %2991 = vmatpush.msra.mxu0 %v2794
    %2992 = vmatpush.msra.mxu0 %v2793
    %2993 = vmatpush.msra.mxu0 %v2792
    %2994 = vmatpush.msra.mxu0 %v2791
    %2995 = vmatpush.msra.mxu0 %v2790
    %2996 = vmatpush.msra.mxu0 %v2789
    %2997 = vmatpush.msra.mxu0 %v2788
    %2998 = vmatpush.msra.mxu0 %v2787
    %2999 = vmatpush.msra.mxu0 %v2786
    %3000 = vmatpush.msra.mxu0 %v2785
    %3001 = vmatpush.msra.mxu0 %v2784
    %3002 = vmatpush.msra.mxu0 %v2783
    %3003 = vmatpush.msra.mxu0 %v2782
    %3004 = vmatpush.msra.mxu0 %v2781
    %3005 = vmatpush.msra.mxu0 %v2780
    %3006 = vmatpush.msra.mxu0 %v2779
    %3007 = vmatmul.f32.gmra.mxu0 %v2983
    %v3008 = vpop.f32.mrf.mxu0
    %v3009 = vadd.f32 0.0, %v3008
    %3010 = vmatmul.f32.gmra.mxu0 %v2984
    %v3011 = vpop.f32.mrf.mxu0
    %v3012 = vadd.f32 0.0, %v3011
    %3013 = vmatmul.f32.gmra.mxu0 %v2985
    %v3014 = vpop.f32.mrf.mxu0
    %v3015 = vadd.f32 0.0, %v3014
    %3016 = vmatmul.f32.gmra.mxu0 %v2986
    %v3017 = vpop.f32.mrf.mxu0
    %v3018 = vadd.f32 0.0, %v3017
    %3019 = vmatmul.f32.gmra.mxu0 %v2987
    %v3020 = vpop.f32.mrf.mxu0
    %v3021 = vadd.f32 0.0, %v3020
    %3022 = vmatmul.f32.gmra.mxu0 %v2988
    %v3023 = vpop.f32.mrf.mxu0
    %v3024 = vadd.f32 0.0, %v3023
    %3025 = vmatmul.f32.gmra.mxu0 %v2989
    %v3026 = vpop.f32.mrf.mxu0
    %v3027 = vadd.f32 0.0, %v3026
    %3028 = vmatmul.f32.gmra.mxu0 %v2990
    %v3029 = vpop.f32.mrf.mxu0
    %v3030 = vadd.f32 0.0, %v3029
    %3031 = vdwg.mxu0
    %v3032 = vld [vmem:[#allocation2 + $0x38] sm:$0xff]
    %v3033 = vld [vmem:[#allocation2 + $0x98] sm:$0xff]
    %v3034 = vld [vmem:[#allocation2 + $0xf8] sm:$0xff]
    %v3035 = vld [vmem:[#allocation2 + $0x158] sm:$0xff]
    %v3036 = vld [vmem:[#allocation2 + $0x1b8] sm:$0xff]
    %v3037 = vld [vmem:[#allocation2 + $0x218] sm:$0xff]
    %v3038 = vld [vmem:[#allocation2 + $0x278] sm:$0xff]
    %v3039 = vld [vmem:[#allocation2 + $0x2d8] sm:$0xff]
    %v3040 = vld [vmem:[#allocation2 + $0x338] sm:$0xff]
    %v3041 = vld [vmem:[#allocation2 + $0x398] sm:$0xff]
    %v3042 = vld [vmem:[#allocation2 + $0x3f8] sm:$0xff]
    %v3043 = vld [vmem:[#allocation2 + $0x458] sm:$0xff]
    %v3044 = vld [vmem:[#allocation2 + $0x4b8] sm:$0xff]
    %v3045 = vld [vmem:[#allocation2 + $0x518] sm:$0xff]
    %v3046 = vld [vmem:[#allocation2 + $0x578] sm:$0xff]
    %v3047 = vld [vmem:[#allocation2 + $0x5d8] sm:$0xff]
    %v3048 = vld [vmem:[%s4 + $0x7] sm:$0x1]
    %v3049 = vperm.slane %v3048, 0
    %3050 = vmatpush.msra.mxu0 %v3047
    %3051 = vmatpush.msra.mxu0 %v3046
    %3052 = vmatpush.msra.mxu0 %v3045
    %3053 = vmatpush.msra.mxu0 %v3044
    %3054 = vmatpush.msra.mxu0 %v3043
    %3055 = vmatpush.msra.mxu0 %v3042
    %3056 = vmatpush.msra.mxu0 %v3041
    %3057 = vmatpush.msra.mxu0 %v3040
    %3058 = vmatpush.msra.mxu0 %v3039
    %3059 = vmatpush.msra.mxu0 %v3038
    %3060 = vmatpush.msra.mxu0 %v3037
    %3061 = vmatpush.msra.mxu0 %v3036
    %3062 = vmatpush.msra.mxu0 %v3035
    %3063 = vmatpush.msra.mxu0 %v3034
    %3064 = vmatpush.msra.mxu0 %v3033
    %3065 = vmatpush.msra.mxu0 %v3032
    %3066 = vmatmul.f32.gmra.mxu0 %v3009
    %v3067 = vpop.f32.mrf.mxu0
    %v3068 = vadd.f32 %v3049, %v3067
    %3069 = vmatmul.f32.gmra.mxu0 %v3012
    %v3070 = vpop.f32.mrf.mxu0
    %v3071 = vadd.f32 %v3049, %v3070
    %3072 = vmatmul.f32.gmra.mxu0 %v3015
    %v3073 = vpop.f32.mrf.mxu0
    %v3074 = vadd.f32 %v3049, %v3073
    %3075 = vmatmul.f32.gmra.mxu0 %v3018
    %v3076 = vpop.f32.mrf.mxu0
    %v3077 = vadd.f32 %v3049, %v3076
    %3078 = vmatmul.f32.gmra.mxu0 %v3021
    %v3079 = vpop.f32.mrf.mxu0
    %v3080 = vadd.f32 %v3049, %v3079
    %3081 = vmatmul.f32.gmra.mxu0 %v3024
    %v3082 = vpop.f32.mrf.mxu0
    %v3083 = vadd.f32 %v3049, %v3082
    %3084 = vmatmul.f32.gmra.mxu0 %v3027
    %v3085 = vpop.f32.mrf.mxu0
    %v3086 = vadd.f32 %v3049, %v3085
    %3087 = vmatmul.f32.gmra.mxu0 %v3030
    %v3088 = vpop.f32.mrf.mxu0
    %v3089 = vadd.f32 %v3049, %v3088
    %3090 = vdwg.mxu0
    %v3091 = vadd.f32 %v2610, %v3068
    %v3092 = vadd.f32 %v2611, %v3071
    %v3093 = vadd.f32 %v2612, %v3074
    %v3094 = vadd.f32 %v2613, %v3077
    %v3095 = vadd.f32 %v2614, %v3080
    %v3096 = vadd.f32 %v2615, %v3083
    %v3097 = vadd.f32 %v2616, %v3086
    %v3098 = vadd.f32 %v2617, %v3089
    %v3099 = vld [vmem:[%s4 + $0xc] sm:$0x1]
    %v3100 = vld [vmem:[%s4 + $0xd] sm:$0x1]
    %3101 = vadd.xlane.f32.xlu0 %v3091
    %v3102 = vpop.xlane.xlu0 %3101
    %3103 = vadd.xlane.f32.xlu0 %v3092
    %v3104 = vpop.xlane.xlu0 %3103
    %3105 = vadd.xlane.f32.xlu0 %v3093
    %v3106 = vpop.xlane.xlu0 %3105
    %3107 = vadd.xlane.f32.xlu0 %v3094
    %v3108 = vpop.xlane.xlu0 %3107
    %3109 = vadd.xlane.f32.xlu0 %v3095
    %v3110 = vpop.xlane.xlu0 %3109
    %3111 = vadd.xlane.f32.xlu0 %v3096
    %v3112 = vpop.xlane.xlu0 %3111
    %3113 = vadd.xlane.f32.xlu0 %v3097
    %v3114 = vpop.xlane.xlu0 %3113
    %3115 = vadd.xlane.f32.xlu0 %v3098
    %v3116 = vpop.xlane.xlu0 %3115
    %v3117 = vmul.f32 %v3102, %v2455
    %v3118 = vmul.f32 %v3104, %v2455
    %v3119 = vmul.f32 %v3106, %v2455
    %v3120 = vmul.f32 %v3108, %v2455
    %v3121 = vmul.f32 %v3110, %v2455
    %v3122 = vmul.f32 %v3112, %v2455
    %v3123 = vmul.f32 %v3114, %v2455
    %v3124 = vmul.f32 %v3116, %v2455
    %v3125 = vsub.f32 %v3091, %v3117
    %v3126 = vsub.f32 %v3092, %v3118
    %v3127 = vsub.f32 %v3093, %v3119
    %v3128 = vsub.f32 %v3094, %v3120
    %v3129 = vsub.f32 %v3095, %v3121
    %v3130 = vsub.f32 %v3096, %v3122
    %v3131 = vsub.f32 %v3097, %v3123
    %v3132 = vsub.f32 %v3098, %v3124
    %v3133 = vmul.f32 %v3125, %v3125
    %v3134 = vmul.f32 %v3126, %v3126
    %v3135 = vmul.f32 %v3127, %v3127
    %v3136 = vmul.f32 %v3128, %v3128
    %v3137 = vmul.f32 %v3129, %v3129
    %v3138 = vmul.f32 %v3130, %v3130
    %v3139 = vmul.f32 %v3131, %v3131
    %v3140 = vmul.f32 %v3132, %v3132
    %3141 = vadd.xlane.f32.xlu0 %v3133
    %v3142 = vpop.xlane.xlu0 %3141
    %3143 = vadd.xlane.f32.xlu0 %v3134
    %v3144 = vpop.xlane.xlu0 %3143
    %3145 = vadd.xlane.f32.xlu0 %v3135
    %v3146 = vpop.xlane.xlu0 %3145
    %3147 = vadd.xlane.f32.xlu0 %v3136
    %v3148 = vpop.xlane.xlu0 %3147
    %3149 = vadd.xlane.f32.xlu0 %v3137
    %v3150 = vpop.xlane.xlu0 %3149
    %3151 = vadd.xlane.f32.xlu0 %v3138
    %v3152 = vpop.xlane.xlu0 %3151
    %3153 = vadd.xlane.f32.xlu0 %v3139
    %v3154 = vpop.xlane.xlu0 %3153
    %3155 = vadd.xlane.f32.xlu0 %v3140
    %v3156 = vpop.xlane.xlu0 %3155
    %v3157 = vmul.f32 %v3142, %v2455
    %v3158 = vmul.f32 %v3144, %v2455
    %v3159 = vmul.f32 %v3146, %v2455
    %v3160 = vmul.f32 %v3148, %v2455
    %v3161 = vmul.f32 %v3150, %v2455
    %v3162 = vmul.f32 %v3152, %v2455
    %v3163 = vmul.f32 %v3154, %v2455
    %v3164 = vmul.f32 %v3156, %v2455
    %v3165 = vadd.f32 %v3157, 1e-05
    %v3166 = vadd.f32 %v3158, 1e-05
    %v3167 = vadd.f32 %v3159, 1e-05
    %v3168 = vadd.f32 %v3160, 1e-05
    %v3169 = vadd.f32 %v3161, 1e-05
    %v3170 = vadd.f32 %v3162, 1e-05
    %v3171 = vadd.f32 %v3163, 1e-05
    %v3172 = vadd.f32 %v3164, 1e-05
    %v3173 = vrsqrt.pop %v3165
    %v3174 = vmul.f32 %v3173, %v3165
    %v3175 = vmul.f32 %v3174, %v3173
    %v3176 = vmul.f32 0.5, %v3175
    %v3177 = vsub.f32 1.5, %v3176
    %v3178 = vmul.f32 %v3173, %v3177
    %vm3179 = vweird.f32 %v3165
    %vm3180 = vweird.f32 %v3173
    %vm3181 = vmor %vm3179, %vm3180
    %v3182 = vsel %vm3181, %v3173, %v3178
    %v3183 = vrsqrt.pop %v3166
    %v3184 = vmul.f32 %v3183, %v3166
    %v3185 = vmul.f32 %v3184, %v3183
    %v3186 = vmul.f32 0.5, %v3185
    %v3187 = vsub.f32 1.5, %v3186
    %v3188 = vmul.f32 %v3183, %v3187
    %vm3189 = vweird.f32 %v3166
    %vm3190 = vweird.f32 %v3183
    %vm3191 = vmor %vm3189, %vm3190
    %v3192 = vsel %vm3191, %v3183, %v3188
    %v3193 = vrsqrt.pop %v3167
    %v3194 = vmul.f32 %v3193, %v3167
    %v3195 = vmul.f32 %v3194, %v3193
    %v3196 = vmul.f32 0.5, %v3195
    %v3197 = vsub.f32 1.5, %v3196
    %v3198 = vmul.f32 %v3193, %v3197
    %vm3199 = vweird.f32 %v3167
    %vm3200 = vweird.f32 %v3193
    %vm3201 = vmor %vm3199, %vm3200
    %v3202 = vsel %vm3201, %v3193, %v3198
    %v3203 = vrsqrt.pop %v3168
    %v3204 = vmul.f32 %v3203, %v3168
    %v3205 = vmul.f32 %v3204, %v3203
    %v3206 = vmul.f32 0.5, %v3205
    %v3207 = vsub.f32 1.5, %v3206
    %v3208 = vmul.f32 %v3203, %v3207
    %vm3209 = vweird.f32 %v3168
    %vm3210 = vweird.f32 %v3203
    %vm3211 = vmor %vm3209, %vm3210
    %v3212 = vsel %vm3211, %v3203, %v3208
    %v3213 = vrsqrt.pop %v3169
    %v3214 = vmul.f32 %v3213, %v3169
    %v3215 = vmul.f32 %v3214, %v3213
    %v3216 = vmul.f32 0.5, %v3215
    %v3217 = vsub.f32 1.5, %v3216
    %v3218 = vmul.f32 %v3213, %v3217
    %vm3219 = vweird.f32 %v3169
    %vm3220 = vweird.f32 %v3213
    %vm3221 = vmor %vm3219, %vm3220
    %v3222 = vsel %vm3221, %v3213, %v3218
    %v3223 = vrsqrt.pop %v3170
    %v3224 = vmul.f32 %v3223, %v3170
    %v3225 = vmul.f32 %v3224, %v3223
    %v3226 = vmul.f32 0.5, %v3225
    %v3227 = vsub.f32 1.5, %v3226
    %v3228 = vmul.f32 %v3223, %v3227
    %vm3229 = vweird.f32 %v3170
    %vm3230 = vweird.f32 %v3223
    %vm3231 = vmor %vm3229, %vm3230
    %v3232 = vsel %vm3231, %v3223, %v3228
    %v3233 = vrsqrt.pop %v3171
    %v3234 = vmul.f32 %v3233, %v3171
    %v3235 = vmul.f32 %v3234, %v3233
    %v3236 = vmul.f32 0.5, %v3235
    %v3237 = vsub.f32 1.5, %v3236
    %v3238 = vmul.f32 %v3233, %v3237
    %vm3239 = vweird.f32 %v3171
    %vm3240 = vweird.f32 %v3233
    %vm3241 = vmor %vm3239, %vm3240
    %v3242 = vsel %vm3241, %v3233, %v3238
    %v3243 = vrsqrt.pop %v3172
    %v3244 = vmul.f32 %v3243, %v3172
    %v3245 = vmul.f32 %v3244, %v3243
    %v3246 = vmul.f32 0.5, %v3245
    %v3247 = vsub.f32 1.5, %v3246
    %v3248 = vmul.f32 %v3243, %v3247
    %vm3249 = vweird.f32 %v3172
    %vm3250 = vweird.f32 %v3243
    %vm3251 = vmor %vm3249, %vm3250
    %v3252 = vsel %vm3251, %v3243, %v3248
    %v3253 = vmul.f32 %v3125, %v3182
    %v3254 = vmul.f32 %v3126, %v3192
    %v3255 = vmul.f32 %v3127, %v3202
    %v3256 = vmul.f32 %v3128, %v3212
    %v3257 = vmul.f32 %v3129, %v3222
    %v3258 = vmul.f32 %v3130, %v3232
    %v3259 = vmul.f32 %v3131, %v3242
    %v3260 = vmul.f32 %v3132, %v3252
    %v3261 = vperm.slane %v3099, 0
    %v3262 = vmul.f32 %v3253, %v3261
    %v3263 = vmul.f32 %v3254, %v3261
    %v3264 = vmul.f32 %v3255, %v3261
    %v3265 = vmul.f32 %v3256, %v3261
    %v3266 = vmul.f32 %v3257, %v3261
    %v3267 = vmul.f32 %v3258, %v3261
    %v3268 = vmul.f32 %v3259, %v3261
    %v3269 = vmul.f32 %v3260, %v3261
    %v3270 = vperm.slane %v3100, 0
    %v3271 = vadd.f32 %v3262, %v3270
    %v3272 = vadd.f32 %v3263, %v3270
    %v3273 = vadd.f32 %v3264, %v3270
    %v3274 = vadd.f32 %v3265, %v3270
    %v3275 = vadd.f32 %v3266, %v3270
    %v3276 = vadd.f32 %v3267, %v3270
    %v3277 = vadd.f32 %v3268, %v3270
    %v3278 = vadd.f32 %v3269, %v3270
    %v3279 = vld [vmem:[#allocation2 + $0x40] sm:$0xff]
    %v3280 = vld [vmem:[#allocation2 + $0xa0] sm:$0xff]
    %v3281 = vld [vmem:[#allocation2 + $0x100] sm:$0xff]
    %v3282 = vld [vmem:[#allocation2 + $0x160] sm:$0xff]
    %v3283 = vld [vmem:[#allocation2 + $0x1c0] sm:$0xff]
    %v3284 = vld [vmem:[#allocation2 + $0x220] sm:$0xff]
    %v3285 = vld [vmem:[#allocation2 + $0x280] sm:$0xff]
    %v3286 = vld [vmem:[#allocation2 + $0x2e0] sm:$0xff]
    %v3287 = vld [vmem:[#allocation2 + $0x340] sm:$0xff]
    %v3288 = vld [vmem:[#allocation2 + $0x3a0] sm:$0xff]
    %v3289 = vld [vmem:[#allocation2 + $0x400] sm:$0xff]
    %v3290 = vld [vmem:[#allocation2 + $0x460] sm:$0xff]
    %v3291 = vld [vmem:[#allocation2 + $0x4c0] sm:$0xff]
    %v3292 = vld [vmem:[#allocation2 + $0x520] sm:$0xff]
    %v3293 = vld [vmem:[#allocation2 + $0x580] sm:$0xff]
    %v3294 = vld [vmem:[#allocation2 + $0x5e0] sm:$0xff]
    %v3295 = vld [vmem:[%s4 + $0x8] sm:$0x1]
    %v3296 = vperm.slane %v3295, 0
    %3297 = vmatpush.msra.mxu0 %v3294
    %3298 = vmatpush.msra.mxu0 %v3293
    %3299 = vmatpush.msra.mxu0 %v3292
    %3300 = vmatpush.msra.mxu0 %v3291
    %3301 = vmatpush.msra.mxu0 %v3290
    %3302 = vmatpush.msra.mxu0 %v3289
    %3303 = vmatpush.msra.mxu0 %v3288
    %3304 = vmatpush.msra.mxu0 %v3287
    %3305 = vmatpush.msra.mxu0 %v3286
    %3306 = vmatpush.msra.mxu0 %v3285
    %3307 = vmatpush.msra.mxu0 %v3284
    %3308 = vmatpush.msra.mxu0 %v3283
    %3309 = vmatpush.msra.mxu0 %v3282
    %3310 = vmatpush.msra.mxu0 %v3281
    %3311 = vmatpush.msra.mxu0 %v3280
    %3312 = vmatpush.msra.mxu0 %v3279
    %3313 = vmatmul.f32.gmra.mxu0 %v3271
    %v3314 = vpop.f32.mrf.mxu0
    %v3315 = vadd.f32 %v3296, %v3314
    %3316 = vmatmul.f32.gmra.mxu0 %v3272
    %v3317 = vpop.f32.mrf.mxu0
    %v3318 = vadd.f32 %v3296, %v3317
    %3319 = vmatmul.f32.gmra.mxu0 %v3273
    %v3320 = vpop.f32.mrf.mxu0
    %v3321 = vadd.f32 %v3296, %v3320
    %3322 = vmatmul.f32.gmra.mxu0 %v3274
    %v3323 = vpop.f32.mrf.mxu0
    %v3324 = vadd.f32 %v3296, %v3323
    %3325 = vmatmul.f32.gmra.mxu0 %v3275
    %v3326 = vpop.f32.mrf.mxu0
    %v3327 = vadd.f32 %v3296, %v3326
    %3328 = vmatmul.f32.gmra.mxu0 %v3276
    %v3329 = vpop.f32.mrf.mxu0
    %v3330 = vadd.f32 %v3296, %v3329
    %3331 = vmatmul.f32.gmra.mxu0 %v3277
    %v3332 = vpop.f32.mrf.mxu0
    %v3333 = vadd.f32 %v3296, %v3332
    %3334 = vmatmul.f32.gmra.mxu0 %v3278
    %v3335 = vpop.f32.mrf.mxu0
    %v3336 = vadd.f32 %v3296, %v3335
    %3337 = vdwg.mxu0
    %v3338 = vmax.f32 %v3315, 0.0
    %v3339 = vmax.f32 %v3318, 0.0
    %v3340 = vmax.f32 %v3321, 0.0
    %v3341 = vmax.f32 %v3324, 0.0
    %v3342 = vmax.f32 %v3327, 0.0
    %v3343 = vmax.f32 %v3330, 0.0
    %v3344 = vmax.f32 %v3333, 0.0
    %v3345 = vmax.f32 %v3336, 0.0
    %v3346 = vld [vmem:[#allocation2 + $0x48] sm:$0xff]
    %v3347 = vld [vmem:[#allocation2 + $0xa8] sm:$0xff]
    %v3348 = vld [vmem:[#allocation2 + $0x108] sm:$0xff]
    %v3349 = vld [vmem:[#allocation2 + $0x168] sm:$0xff]
    %v3350 = vld [vmem:[#allocation2 + $0x1c8] sm:$0xff]
    %v3351 = vld [vmem:[#allocation2 + $0x228] sm:$0xff]
    %v3352 = vld [vmem:[#allocation2 + $0x288] sm:$0xff]
    %v3353 = vld [vmem:[#allocation2 + $0x2e8] sm:$0xff]
    %v3354 = vld [vmem:[#allocation2 + $0x348] sm:$0xff]
    %v3355 = vld [vmem:[#allocation2 + $0x3a8] sm:$0xff]
    %v3356 = vld [vmem:[#allocation2 + $0x408] sm:$0xff]
    %v3357 = vld [vmem:[#allocation2 + $0x468] sm:$0xff]
    %v3358 = vld [vmem:[#allocation2 + $0x4c8] sm:$0xff]
    %v3359 = vld [vmem:[#allocation2 + $0x528] sm:$0xff]
    %v3360 = vld [vmem:[#allocation2 + $0x588] sm:$0xff]
    %v3361 = vld [vmem:[#allocation2 + $0x5e8] sm:$0xff]
    %v3362 = vld [vmem:[%s4 + $0x9] sm:$0x1]
    %v3363 = vperm.slane %v3362, 0
    %3364 = vmatpush.msra.mxu0 %v3361
    %3365 = vmatpush.msra.mxu0 %v3360
    %3366 = vmatpush.msra.mxu0 %v3359
    %3367 = vmatpush.msra.mxu0 %v3358
    %3368 = vmatpush.msra.mxu0 %v3357
    %3369 = vmatpush.msra.mxu0 %v3356
    %3370 = vmatpush.msra.mxu0 %v3355
    %3371 = vmatpush.msra.mxu0 %v3354
    %3372 = vmatpush.msra.mxu0 %v3353
    %3373 = vmatpush.msra.mxu0 %v3352
    %3374 = vmatpush.msra.mxu0 %v3351
    %3375 = vmatpush.msra.mxu0 %v3350
    %3376 = vmatpush.msra.mxu0 %v3349
    %3377 = vmatpush.msra.mxu0 %v3348
    %3378 = vmatpush.msra.mxu0 %v3347
    %3379 = vmatpush.msra.mxu0 %v3346
    %3380 = vmatmul.f32.gmra.mxu0 %v3338
    %v3381 = vpop.f32.mrf.mxu0
    %v3382 = vadd.f32 %v3363, %v3381
    %3383 = vmatmul.f32.gmra.mxu0 %v3339
    %v3384 = vpop.f32.mrf.mxu0
    %v3385 = vadd.f32 %v3363, %v3384
    %3386 = vmatmul.f32.gmra.mxu0 %v3340
    %v3387 = vpop.f32.mrf.mxu0
    %v3388 = vadd.f32 %v3363, %v3387
    %3389 = vmatmul.f32.gmra.mxu0 %v3341
    %v3390 = vpop.f32.mrf.mxu0
    %v3391 = vadd.f32 %v3363, %v3390
    %3392 = vmatmul.f32.gmra.mxu0 %v3342
    %v3393 = vpop.f32.mrf.mxu0
    %v3394 = vadd.f32 %v3363, %v3393
    %3395 = vmatmul.f32.gmra.mxu0 %v3343
    %v3396 = vpop.f32.mrf.mxu0
    %v3397 = vadd.f32 %v3363, %v3396
    %3398 = vmatmul.f32.gmra.mxu0 %v3344
    %v3399 = vpop.f32.mrf.mxu0
    %v3400 = vadd.f32 %v3363, %v3399
    %3401 = vmatmul.f32.gmra.mxu0 %v3345
    %v3402 = vpop.f32.mrf.mxu0
    %v3403 = vadd.f32 %v3363, %v3402
    %3404 = vdwg.mxu0
    %v3405 = vadd.f32 %v3271, %v3382
    %v3406 = vadd.f32 %v3272, %v3385
    %v3407 = vadd.f32 %v3273, %v3388
    %v3408 = vadd.f32 %v3274, %v3391
    %v3409 = vadd.f32 %v3275, %v3394
    %v3410 = vadd.f32 %v3276, %v3397
    %v3411 = vadd.f32 %v3277, %v3400
    %v3412 = vadd.f32 %v3278, %v3403
    %v3413 = vld [vmem:[%s4 + $0xe] sm:$0x1]
    %v3414 = vld [vmem:[%s4 + $0xf] sm:$0x1]
    %3415 = vadd.xlane.f32.xlu0 %v3405
    %v3416 = vpop.xlane.xlu0 %3415
    %3417 = vadd.xlane.f32.xlu0 %v3406
    %v3418 = vpop.xlane.xlu0 %3417
    %3419 = vadd.xlane.f32.xlu0 %v3407
    %v3420 = vpop.xlane.xlu0 %3419
    %3421 = vadd.xlane.f32.xlu0 %v3408
    %v3422 = vpop.xlane.xlu0 %3421
    %3423 = vadd.xlane.f32.xlu0 %v3409
    %v3424 = vpop.xlane.xlu0 %3423
    %3425 = vadd.xlane.f32.xlu0 %v3410
    %v3426 = vpop.xlane.xlu0 %3425
    %3427 = vadd.xlane.f32.xlu0 %v3411
    %v3428 = vpop.xlane.xlu0 %3427
    %3429 = vadd.xlane.f32.xlu0 %v3412
    %v3430 = vpop.xlane.xlu0 %3429
    %v3431 = vmul.f32 %v3416, %v2455
    %v3432 = vmul.f32 %v3418, %v2455
    %v3433 = vmul.f32 %v3420, %v2455
    %v3434 = vmul.f32 %v3422, %v2455
    %v3435 = vmul.f32 %v3424, %v2455
    %v3436 = vmul.f32 %v3426, %v2455
    %v3437 = vmul.f32 %v3428, %v2455
    %v3438 = vmul.f32 %v3430, %v2455
    %v3439 = vsub.f32 %v3405, %v3431
    %v3440 = vsub.f32 %v3406, %v3432
    %v3441 = vsub.f32 %v3407, %v3433
    %v3442 = vsub.f32 %v3408, %v3434
    %v3443 = vsub.f32 %v3409, %v3435
    %v3444 = vsub.f32 %v3410, %v3436
    %v3445 = vsub.f32 %v3411, %v3437
    %v3446 = vsub.f32 %v3412, %v3438
    %v3447 = vmul.f32 %v3439, %v3439
    %v3448 = vmul.f32 %v3440, %v3440
    %v3449 = vmul.f32 %v3441, %v3441
    %v3450 = vmul.f32 %v3442, %v3442
    %v3451 = vmul.f32 %v3443, %v3443
    %v3452 = vmul.f32 %v3444, %v3444
    %v3453 = vmul.f32 %v3445, %v3445
    %v3454 = vmul.f32 %v3446, %v3446
    %3455 = vadd.xlane.f32.xlu0 %v3447
    %v3456 = vpop.xlane.xlu0 %3455
    %3457 = vadd.xlane.f32.xlu0 %v3448
    %v3458 = vpop.xlane.xlu0 %3457
    %3459 = vadd.xlane.f32.xlu0 %v3449
    %v3460 = vpop.xlane.xlu0 %3459
    %3461 = vadd.xlane.f32.xlu0 %v3450
    %v3462 = vpop.xlane.xlu0 %3461
    %3463 = vadd.xlane.f32.xlu0 %v3451
    %v3464 = vpop.xlane.xlu0 %3463
    %3465 = vadd.xlane.f32.xlu0 %v3452
    %v3466 = vpop.xlane.xlu0 %3465
    %3467 = vadd.xlane.f32.xlu0 %v3453
    %v3468 = vpop.xlane.xlu0 %3467
    %3469 = vadd.xlane.f32.xlu0 %v3454
    %v3470 = vpop.xlane.xlu0 %3469
    %v3471 = vmul.f32 %v3456, %v2455
    %v3472 = vmul.f32 %v3458, %v2455
    %v3473 = vmul.f32 %v3460, %v2455
    %v3474 = vmul.f32 %v3462, %v2455
    %v3475 = vmul.f32 %v3464, %v2455
    %v3476 = vmul.f32 %v3466, %v2455
    %v3477 = vmul.f32 %v3468, %v2455
    %v3478 = vmul.f32 %v3470, %v2455
    %v3479 = vadd.f32 %v3471, 1e-05
    %v3480 = vadd.f32 %v3472, 1e-05
    %v3481 = vadd.f32 %v3473, 1e-05
    %v3482 = vadd.f32 %v3474, 1e-05
    %v3483 = vadd.f32 %v3475, 1e-05
    %v3484 = vadd.f32 %v3476, 1e-05
    %v3485 = vadd.f32 %v3477, 1e-05
    %v3486 = vadd.f32 %v3478, 1e-05
    %v3487 = vrsqrt.pop %v3479
    %v3488 = vmul.f32 %v3487, %v3479
    %v3489 = vmul.f32 %v3488, %v3487
    %v3490 = vmul.f32 0.5, %v3489
    %v3491 = vsub.f32 1.5, %v3490
    %v3492 = vmul.f32 %v3487, %v3491
    %vm3493 = vweird.f32 %v3479
    %vm3494 = vweird.f32 %v3487
    %vm3495 = vmor %vm3493, %vm3494
    %v3496 = vsel %vm3495, %v3487, %v3492
    %v3497 = vrsqrt.pop %v3480
    %v3498 = vmul.f32 %v3497, %v3480
    %v3499 = vmul.f32 %v3498, %v3497
    %v3500 = vmul.f32 0.5, %v3499
    %v3501 = vsub.f32 1.5, %v3500
    %v3502 = vmul.f32 %v3497, %v3501
    %vm3503 = vweird.f32 %v3480
    %vm3504 = vweird.f32 %v3497
    %vm3505 = vmor %vm3503, %vm3504
    %v3506 = vsel %vm3505, %v3497, %v3502
    %v3507 = vrsqrt.pop %v3481
    %v3508 = vmul.f32 %v3507, %v3481
    %v3509 = vmul.f32 %v3508, %v3507
    %v3510 = vmul.f32 0.5, %v3509
    %v3511 = vsub.f32 1.5, %v3510
    %v3512 = vmul.f32 %v3507, %v3511
    %vm3513 = vweird.f32 %v3481
    %vm3514 = vweird.f32 %v3507
    %vm3515 = vmor %vm3513, %vm3514
    %v3516 = vsel %vm3515, %v3507, %v3512
    %v3517 = vrsqrt.pop %v3482
    %v3518 = vmul.f32 %v3517, %v3482
    %v3519 = vmul.f32 %v3518, %v3517
    %v3520 = vmul.f32 0.5, %v3519
    %v3521 = vsub.f32 1.5, %v3520
    %v3522 = vmul.f32 %v3517, %v3521
    %vm3523 = vweird.f32 %v3482
    %vm3524 = vweird.f32 %v3517
    %vm3525 = vmor %vm3523, %vm3524
    %v3526 = vsel %vm3525, %v3517, %v3522
    %v3527 = vrsqrt.pop %v3483
    %v3528 = vmul.f32 %v3527, %v3483
    %v3529 = vmul.f32 %v3528, %v3527
    %v3530 = vmul.f32 0.5, %v3529
    %v3531 = vsub.f32 1.5, %v3530
    %v3532 = vmul.f32 %v3527, %v3531
    %vm3533 = vweird.f32 %v3483
    %vm3534 = vweird.f32 %v3527
    %vm3535 = vmor %vm3533, %vm3534
    %v3536 = vsel %vm3535, %v3527, %v3532
    %v3537 = vrsqrt.pop %v3484
    %v3538 = vmul.f32 %v3537, %v3484
    %v3539 = vmul.f32 %v3538, %v3537
    %v3540 = vmul.f32 0.5, %v3539
    %v3541 = vsub.f32 1.5, %v3540
    %v3542 = vmul.f32 %v3537, %v3541
    %vm3543 = vweird.f32 %v3484
    %vm3544 = vweird.f32 %v3537
    %vm3545 = vmor %vm3543, %vm3544
    %v3546 = vsel %vm3545, %v3537, %v3542
    %v3547 = vrsqrt.pop %v3485
    %v3548 = vmul.f32 %v3547, %v3485
    %v3549 = vmul.f32 %v3548, %v3547
    %v3550 = vmul.f32 0.5, %v3549
    %v3551 = vsub.f32 1.5, %v3550
    %v3552 = vmul.f32 %v3547, %v3551
    %vm3553 = vweird.f32 %v3485
    %vm3554 = vweird.f32 %v3547
    %vm3555 = vmor %vm3553, %vm3554
    %v3556 = vsel %vm3555, %v3547, %v3552
    %v3557 = vrsqrt.pop %v3486
    %v3558 = vmul.f32 %v3557, %v3486
    %v3559 = vmul.f32 %v3558, %v3557
    %v3560 = vmul.f32 0.5, %v3559
    %v3561 = vsub.f32 1.5, %v3560
    %v3562 = vmul.f32 %v3557, %v3561
    %vm3563 = vweird.f32 %v3486
    %vm3564 = vweird.f32 %v3557
    %vm3565 = vmor %vm3563, %vm3564
    %v3566 = vsel %vm3565, %v3557, %v3562
    %v3567 = vmul.f32 %v3439, %v3496
    %v3568 = vmul.f32 %v3440, %v3506
    %v3569 = vmul.f32 %v3441, %v3516
    %v3570 = vmul.f32 %v3442, %v3526
    %v3571 = vmul.f32 %v3443, %v3536
    %v3572 = vmul.f32 %v3444, %v3546
    %v3573 = vmul.f32 %v3445, %v3556
    %v3574 = vmul.f32 %v3446, %v3566
    %v3575 = vperm.slane %v3413, 0
    %v3576 = vmul.f32 %v3567, %v3575
    %v3577 = vmul.f32 %v3568, %v3575
    %v3578 = vmul.f32 %v3569, %v3575
    %v3579 = vmul.f32 %v3570, %v3575
    %v3580 = vmul.f32 %v3571, %v3575
    %v3581 = vmul.f32 %v3572, %v3575
    %v3582 = vmul.f32 %v3573, %v3575
    %v3583 = vmul.f32 %v3574, %v3575
    %v3584 = vperm.slane %v3414, 0
    %v3585 = vadd.f32 %v3576, %v3584
    %v3586 = vadd.f32 %v3577, %v3584
    %v3587 = vadd.f32 %v3578, %v3584
    %v3588 = vadd.f32 %v3579, %v3584
    %v3589 = vadd.f32 %v3580, %v3584
    %v3590 = vadd.f32 %v3581, %v3584
    %v3591 = vadd.f32 %v3582, %v3584
    %v3592 = vadd.f32 %v3583, %v3584
    %v3593 = vld [vmem:[#allocation2 + $0x50] sm:$0xff]
    %v3594 = vld [vmem:[#allocation2 + $0xb0] sm:$0xff]
    %v3595 = vld [vmem:[#allocation2 + $0x110] sm:$0xff]
    %v3596 = vld [vmem:[#allocation2 + $0x170] sm:$0xff]
    %v3597 = vld [vmem:[#allocation2 + $0x1d0] sm:$0xff]
    %v3598 = vld [vmem:[#allocation2 + $0x230] sm:$0xff]
    %v3599 = vld [vmem:[#allocation2 + $0x290] sm:$0xff]
    %v3600 = vld [vmem:[#allocation2 + $0x2f0] sm:$0xff]
    %v3601 = vld [vmem:[#allocation2 + $0x350] sm:$0xff]
    %v3602 = vld [vmem:[#allocation2 + $0x3b0] sm:$0xff]
    %v3603 = vld [vmem:[#allocation2 + $0x410] sm:$0xff]
    %v3604 = vld [vmem:[#allocation2 + $0x470] sm:$0xff]
    %v3605 = vld [vmem:[#allocation2 + $0x4d0] sm:$0xff]
    %v3606 = vld [vmem:[#allocation2 + $0x530] sm:$0xff]
    %v3607 = vld [vmem:[#allocation2 + $0x590] sm:$0xff]
    %v3608 = vld [vmem:[#allocation2 + $0x5f0] sm:$0xff]
    %v3609 = vadd.f32 %v3585, %v3586
    %v3610 = vmax.f32 %v3585, %v3586
    %v3611 = vadd.f32 %v3609, %v3587
    %v3612 = vmax.f32 %v3610, %v3587
    %v3613 = vadd.f32 %v3611, %v3588
    %v3614 = vmax.f32 %v3612, %v3588
    %v3615 = vmul.f32 %v3613, 0.25
    %v3616 = vadd.f32 %v3615, %v3614
    %v3617 = vadd.f32 %v3589, %v3590
    %v3618 = vmax.f32 %v3589, %v3590
    %v3619 = vadd.f32 %v3617, %v3591
    %v3620 = vmax.f32 %v3618, %v3591
    %v3621 = vadd.f32 %v3619, %v3592
    %v3622 = vmax.f32 %v3620, %v3592
    %v3623 = vmul.f32 %v3621, 0.25
    %v3624 = vadd.f32 %v3623, %v3622
    %v3625 = vld [vmem:[%s4 + $0x10] sm:$0x1]
    %v3626 = vld [vmem:[%s4 + $0x11] sm:$0x1]
    %v3627 = vmul.f32 %v3616, %v3616
    %v3628 = vmul.f32 %v3624, %v3624
    %3629 = vmatpush.msra.mxu0 %v3608
    %3630 = vmatpush.msra.mxu0 %v3607
    %3631 = vmatpush.msra.mxu0 %v3606
    %3632 = vmatpush.msra.mxu0 %v3605
    %3633 = vmatpush.msra.mxu0 %v3604
    %3634 = vmatpush.msra.mxu0 %v3603
    %3635 = vmatpush.msra.mxu0 %v3602
    %3636 = vmatpush.msra.mxu0 %v3601
    %3637 = vmatpush.msra.mxu0 %v3600
    %3638 = vmatpush.msra.mxu0 %v3599
    %3639 = vmatpush.msra.mxu0 %v3598
    %3640 = vmatpush.msra.mxu0 %v3597
    %3641 = vmatpush.msra.mxu0 %v3596
    %3642 = vmatpush.msra.mxu0 %v3595
    %3643 = vmatpush.msra.mxu0 %v3594
    %3644 = vmatpush.msra.mxu0 %v3593
    %3645 = vmatmul.f32.gmra.mxu0 %v3616
    %v3646 = vpop.f32.mrf.mxu0
    %v3647 = vadd.f32 0.0, %v3646
    %3648 = vmatmul.f32.gmra.mxu0 %v3624
    %v3649 = vpop.f32.mrf.mxu0
    %v3650 = vadd.f32 0.0, %v3649
    %3651 = vmatmul.f32.gmra.mxu0 %v3627
    %v3652 = vpop.f32.mrf.mxu0
    %v3653 = vadd.f32 0.0, %v3652
    %3654 = vmatmul.f32.gmra.mxu0 %v3628
    %v3655 = vpop.f32.mrf.mxu0
    %v3656 = vadd.f32 0.0, %v3655
    %3657 = vdwg.mxu0
    %v3658 = vmul.f32 %v3647, %v3647
    %v3659 = vmul.f32 %v3650, %v3650
    %v3660 = vsub.f32 %v3653, %v3658
    %v3661 = vsub.f32 %v3656, %v3659
    %v3662 = vsub.f32 %v3616, %v3647
    %v3663 = vsub.f32 %v3624, %v3650
    %v3664 = vadd.f32 %v3660, 1e-05
    %v3665 = vadd.f32 %v3661, 1e-05
    %v3666 = vrsqrt.pop %v3664
    %v3667 = vmul.f32 %v3666, %v3664
    %v3668 = vmul.f32 %v3667, %v3666
    %v3669 = vmul.f32 0.5, %v3668
    %v3670 = vsub.f32 1.5, %v3669
    %v3671 = vmul.f32 %v3666, %v3670
    %vm3672 = vweird.f32 %v3664
    %vm3673 = vweird.f32 %v3666
    %vm3674 = vmor %vm3672, %vm3673
    %v3675 = vsel %vm3674, %v3666, %v3671
    %v3676 = vrsqrt.pop %v3665
    %v3677 = vmul.f32 %v3676, %v3665
    %v3678 = vmul.f32 %v3677, %v3676
    %v3679 = vmul.f32 0.5, %v3678
    %v3680 = vsub.f32 1.5, %v3679
    %v3681 = vmul.f32 %v3676, %v3680
    %vm3682 = vweird.f32 %v3665
    %vm3683 = vweird.f32 %v3676
    %vm3684 = vmor %vm3682, %vm3683
    %v3685 = vsel %vm3684, %v3676, %v3681
    %v3686 = vmul.f32 %v3662, %v3675
    %v3687 = vmul.f32 %v3663, %v3685
    %v3688 = vperm.slane %v3625, 0
    %v3689 = vmul.f32 %v3686, %v3688
    %v3690 = vmul.f32 %v3687, %v3688
    %v3691 = vperm.slane %v3626, 0
    %v3692 = vadd.f32 %v3689, %v3691
    %v3693 = vadd.f32 %v3690, %v3691
    %v3694 = vadd.f32 %v148, %v3692
    %v3695 = vadd.f32 %v149, %v3693
    %v3696 = vld [vmem:[%s4 + $0x12] sm:$0x1]
    %v3697 = vld [vmem:[%s4 + $0x13] sm:$0x1]
    %v3698 = vmul.f32 %v3694, %v3694
    %v3699 = vmul.f32 %v3695, %v3695
    %3700 = vmatpush.msra.mxu0 %v3608
    %3701 = vmatpush.msra.mxu0 %v3607
    %3702 = vmatpush.msra.mxu0 %v3606
    %3703 = vmatpush.msra.mxu0 %v3605
    %3704 = vmatpush.msra.mxu0 %v3604
    %3705 = vmatpush.msra.mxu0 %v3603
    %3706 = vmatpush.msra.mxu0 %v3602
    %3707 = vmatpush.msra.mxu0 %v3601
    %3708 = vmatpush.msra.mxu0 %v3600
    %3709 = vmatpush.msra.mxu0 %v3599
    %3710 = vmatpush.msra.mxu0 %v3598
    %3711 = vmatpush.msra.mxu0 %v3597
    %3712 = vmatpush.msra.mxu0 %v3596
    %3713 = vmatpush.msra.mxu0 %v3595
    %3714 = vmatpush.msra.mxu0 %v3594
    %3715 = vmatpush.msra.mxu0 %v3593
    %3716 = vmatmul.f32.gmra.mxu0 %v3694
    %v3717 = vpop.f32.mrf.mxu0
    %v3718 = vadd.f32 0.0, %v3717
    %3719 = vmatmul.f32.gmra.mxu0 %v3695
    %v3720 = vpop.f32.mrf.mxu0
    %v3721 = vadd.f32 0.0, %v3720
    %3722 = vmatmul.f32.gmra.mxu0 %v3698
    %v3723 = vpop.f32.mrf.mxu0
    %v3724 = vadd.f32 0.0, %v3723
    %3725 = vmatmul.f32.gmra.mxu0 %v3699
    %v3726 = vpop.f32.mrf.mxu0
    %v3727 = vadd.f32 0.0, %v3726
    %3728 = vdwg.mxu0
    %v3729 = vmul.f32 %v3718, %v3718
    %v3730 = vmul.f32 %v3721, %v3721
    %v3731 = vsub.f32 %v3724, %v3729
    %v3732 = vsub.f32 %v3727, %v3730
    %v3733 = vsub.f32 %v3694, %v3718
    %v3734 = vsub.f32 %v3695, %v3721
    %v3735 = vadd.f32 %v3731, 1e-05
    %v3736 = vadd.f32 %v3732, 1e-05
    %v3737 = vrsqrt.pop %v3735
    %v3738 = vmul.f32 %v3737, %v3735
    %v3739 = vmul.f32 %v3738, %v3737
    %v3740 = vmul.f32 0.5, %v3739
    %v3741 = vsub.f32 1.5, %v3740
    %v3742 = vmul.f32 %v3737, %v3741
    %vm3743 = vweird.f32 %v3735
    %vm3744 = vweird.f32 %v3737
    %vm3745 = vmor %vm3743, %vm3744
    %v3746 = vsel %vm3745, %v3737, %v3742
    %v3747 = vrsqrt.pop %v3736
    %v3748 = vmul.f32 %v3747, %v3736
    %v3749 = vmul.f32 %v3748, %v3747
    %v3750 = vmul.f32 0.5, %v3749
    %v3751 = vsub.f32 1.5, %v3750
    %v3752 = vmul.f32 %v3747, %v3751
    %vm3753 = vweird.f32 %v3736
    %vm3754 = vweird.f32 %v3747
    %vm3755 = vmor %vm3753, %vm3754
    %v3756 = vsel %vm3755, %v3747, %v3752
    %v3757 = vmul.f32 %v3733, %v3746
    %v3758 = vmul.f32 %v3734, %v3756
    %v3759 = vperm.slane %v3696, 0
    %v3760 = vmul.f32 %v3757, %v3759
    %v3761 = vmul.f32 %v3758, %v3759
    %v3762 = vperm.slane %v3697, 0
    %v3763 = vadd.f32 %v3760, %v3762
    %v3764 = vadd.f32 %v3761, %v3762
    %3765 = vst [vmem:[%s5] sm:$0xff] %v3763
    %3766 = vst [vmem:[%s5 + $0x8] sm:$0xff] %v3764
    // Predicated region
    $region26: #{channel_wise_transformer_layer.1} parent=1 // pred_check
      _
    $region27: #{channel_wise_transformer_layer.1} parent=1 // pred_check_branch
      %3768 = sbr.rel (0) target = $region29
    $region28: #{channel_wise_transformer_layer.1} parent=1 // pred_region
      _
    $region29: #{channel_wise_transformer_layer.1} parent=1 // pred_fallthru
      _
    // Predicated region
    $region30: #{channel_wise_transformer_layer.1} parent=1 // pred_check
      _
    $region31: #{channel_wise_transformer_layer.1} parent=1 // pred_check_branch
      %3770 = sbr.rel (0) target = $region33
    $region32: #{channel_wise_transformer_layer.1} parent=1 // pred_region
      _
    $region33: #{channel_wise_transformer_layer.1} parent=1 // pred_fallthru
      _
    %3771 = vsyncpa [#allocation3], 1

</llo_original>
